<compile_context>
chip_gen: v5e
topology: v5e:2x2
jax: 0.10.0
libtpu: 0.0.40
codegen_flags: <defaults>
</compile_context>

<pallas_src>
import jax
import jax.numpy as jnp
from jax.experimental import pallas as pl
from jax.experimental.pallas import tpu as pltpu

D = 768  # embed_dim of the backbone / self.num_features


def _round_up(x, m):
    return (x + m - 1) // m * m


def _layernorm(x, gamma, beta, eps=1e-6):
    mu = jnp.mean(x, axis=-1, keepdims=True)
    var = jnp.mean((x - mu) * (x - mu), axis=-1, keepdims=True)
    return (x - mu) * jax.lax.rsqrt(var + eps) * gamma + beta


def _gelu_exact(x):
    # nn.GELU() default (approximate='none') -> exact erf-based GELU.
    return 0.5 * x * (1.0 + jax.lax.erf(x * 0.7071067811865476))


# --------------------------------------------------------------------------------------
# Fused kernel: for one batch tile, run BOTH MLP branches
#   mlp_k: Linear(cat[fg, prefeat], no bias) -> LN(eps=1e-6) -> GELU -> Linear(+bias)
#   mlp_b: Linear(fl, no bias)               -> LN(eps=1e-6) -> GELU -> Linear(+bias)
# then the Gompertz combine  pred = vmk * (1 - exp(-vmb * tt))  and masked SmoothL1
# partial sums, all without leaving VMEM.
# --------------------------------------------------------------------------------------
def fused_growth_kernel(fg_ref, fl_ref, aux_ref, wk1_ref, wb1_ref, lnp_ref,
                        w2k_ref, w2b_ref, b2_ref, pred_ref, loss_ref):
    lnp = lnp_ref[...]                        # (8, D) f32: rows [gk, bk, gb, bb, pre_k, 0, 0, 0]
    b2 = b2_ref[...]                          # (2, 2) f32: rows [bk2, bb2]

    # --- mlp_k branch (bf16 features/weights, f32 accumulation on the MXU) ---
    hk = jnp.dot(fg_ref[...], wk1_ref[...], preferred_element_type=jnp.float32)   # (TB, D)
    hk = hk + lnp[4:5]                        # hoisted prefeat_token @ Wk1[D:2D]
    hk = _gelu_exact(_layernorm(hk, lnp[0:1], lnp[1:2]))
    vmk = jnp.dot(hk.astype(jnp.bfloat16), w2k_ref[...],
                  preferred_element_type=jnp.float32) + b2[0:1]                   # (TB, 2)

    # --- mlp_b branch ---
    hb = jnp.dot(fl_ref[...], wb1_ref[...], preferred_element_type=jnp.float32)   # (TB, D)
    hb = _gelu_exact(_layernorm(hb, lnp[2:3], lnp[3:4]))
    vmb = jnp.dot(hb.astype(jnp.bfloat16), w2b_ref[...],
                  preferred_element_type=jnp.float32) + b2[1:2]                   # (TB, 2)

    # --- Gompertz combine + masked SmoothL1 partial sums (fused epilogue) ---
    aux = aux_ref[...]                        # (TB, 4): [tt, lnv, lnm, valid]
    tt = aux[:, 0:1]
    tgt = aux[:, 1:3]
    mask = aux[:, 3:4]
    pred = vmk * (1.0 - jnp.exp(-vmb * tt))   # cols: [predlnv, predlnm]
    pred_ref[...] = pred
    diff = pred - tgt
    ad = jnp.abs(diff)
    sl1 = jnp.where(ad < 1.0, 0.5 * diff * diff, ad - 0.5)
    part = jnp.sum(sl1 * mask, axis=0, keepdims=True)        # (1, 2) per-tile partial sum
    loss_ref[...] = jnp.broadcast_to(part, loss_ref.shape)   # (8, 2) block, row 0 is the data


@jax.jit
def lngrowth_forward(fg, fl, tt, lnv, lnm, packed):
    B = fg.shape[0]
    f32 = jnp.float32
    # bf16 feature tiles need a multiple-of-16 sublane tile; 256 fills the v6e/v7x MXU and
    # cuts per-step pipeline overhead (v5e is fine with it too — it is traffic-bound anyway).
    TB = min(256, _round_up(B, 16))
    Bp = _round_up(B, TB)
    nb = Bp // TB

    def pad_rows(x):
        return x if x.shape[0] == Bp else jnp.pad(x, ((0, Bp - x.shape[0]), (0, 0)))

    # Features go in as bf16 (halves activation HBM traffic); no stacked f32 copy.
    fg_p = pad_rows(fg.astype(jnp.bfloat16))
    fl_p = pad_rows(fl.astype(jnp.bfloat16))
    aux = pad_rows(jnp.stack([tt.astype(f32), lnv.astype(f32), lnm.astype(f32),
                              jnp.ones((B,), f32)], axis=-1))            # (Bp, 4)

    pred, loss_part = pl.pallas_call(
        fused_growth_kernel,
        out_shape=(jax.ShapeDtypeStruct((Bp, 2), f32),       # [predlnv, predlnm]
                   jax.ShapeDtypeStruct((nb, 8, 2), f32)),   # per-tile SmoothL1 partial sums
        grid_spec=pltpu.PrefetchScalarGridSpec(
            num_scalar_prefetch=0,
            grid=(nb,),
            in_specs=[
                pl.BlockSpec((TB, D), lambda i: (i, 0)),      # fg tile (bf16, pipelined)
                pl.BlockSpec((TB, D), lambda i: (i, 0)),      # fl tile (bf16, pipelined)
                pl.BlockSpec((TB, 4), lambda i: (i, 0)),      # [tt, lnv, lnm, mask]
                pl.BlockSpec((D, D), lambda i: (0, 0)),       # Wk1[:D] bf16, VMEM-resident
                pl.BlockSpec((D, D), lambda i: (0, 0)),       # Wb1 bf16, VMEM-resident
                pl.BlockSpec((8, D), lambda i: (0, 0)),       # LN params + hoisted prefeat bias
                pl.BlockSpec((D, 2), lambda i: (0, 0)),       # Wk2 bf16
                pl.BlockSpec((D, 2), lambda i: (0, 0)),       # Wb2 bf16
                pl.BlockSpec((2, 2), lambda i: (0, 0)),       # [bk2; bb2]
            ],
            out_specs=[
                pl.BlockSpec((TB, 2), lambda i: (i, 0)),          # pred (vm never hits HBM)
                pl.BlockSpec((None, 8, 2), lambda i: (i, 0, 0)),  # loss partials
            ],
        ),
        compiler_params=pltpu.CompilerParams(dimension_semantics=("parallel",)),
    )(fg_p, fl_p, aux, packed["wk1"], packed["wb1"], packed["lnp"],
      packed["w2k"], packed["w2b"], packed["b2"])

    # SmoothL1Loss(reduction='mean') per column == (sum over valid rows) / B.
    losses = jnp.sum(loss_part[:, 0, :], axis=0) * (1.0 / B)
    loss_vrate = losses[0]
    loss_mrate = losses[1]
    result = {
        "loss": loss_vrate + loss_mrate,
        "loss_vrate": loss_vrate,
        "loss_mrate": loss_mrate,
        "predlnv": pred[:B, 0],
        "predlnm": pred[:B, 1],
    }
    return result, {}


def init_params(seed=45):
    # Deterministic synthetic init in the PyTorch layout (Linear weights stored as [in, out]).
    k = jax.random.split(jax.random.PRNGKey(seed), 5)
    p = {}
    # prefeat_token: (1, 768), trunc_normal std=0.02
    p["prefeat"] = 0.02 * jax.random.truncated_normal(k[0], -2.0, 2.0, (1, D), jnp.float32)
    # mlp_k: Linear(1536->768, no bias) -> LayerNorm(768) -> GELU -> Linear(768->2, bias)
    p["wk1"] = 0.02 * jax.random.normal(k[1], (2 * D, D), jnp.float32)
    p["gk"] = jnp.ones((1, D), jnp.float32)
    p["bk"] = jnp.zeros((1, D), jnp.float32)
    p["wk2"] = 0.02 * jax.random.normal(k[2], (D, 2), jnp.float32)
    p["bk2"] = jnp.zeros((1, 2), jnp.float32)
    # mlp_b: Linear(768->768, no bias) -> LayerNorm(768) -> GELU -> Linear(768->2, bias)
    p["wb1"] = 0.02 * jax.random.normal(k[3], (D, D), jnp.float32)
    p["gb"] = jnp.ones((1, D), jnp.float32)
    p["bb"] = jnp.zeros((1, D), jnp.float32)
    p["wb2"] = 0.02 * jax.random.normal(k[4], (D, 2), jnp.float32)
    p["bb2"] = jnp.zeros((1, 2), jnp.float32)
    return p


def pack_params(p):
    """One-time (per weight update) repack:
    - big first-layer weights in bf16 (halves weight HBM traffic; they are VMEM-resident),
    - LN gammas/betas and the hoisted prefeat_token @ Wk1[D:2D] term packed into one (8, D)
      f32 array, so the kernel never reads that 768x768 half of Wk1,
    - second-layer weights in bf16, the two 2-wide biases stacked into one (2, 2) array."""
    f32 = jnp.float32
    pre_bias_k = jnp.dot(p["prefeat"].astype(f32), p["wk1"][D:2 * D].astype(f32))  # (1, D)
    lnp = jnp.zeros((8, D), f32)
    lnp = (lnp.at[0].set(p["gk"][0]).at[1].set(p["bk"][0])
              .at[2].set(p["gb"][0]).at[3].set(p["bb"][0])
              .at[4].set(pre_bias_k[0]))
    return {
        "wk1": p["wk1"][0:D].astype(jnp.bfloat16),                  # (D, D)
        "wb1": p["wb1"].astype(jnp.bfloat16),                       # (D, D)
        "lnp": lnp,                                                 # (8, D)
        "w2k": p["wk2"].astype(jnp.bfloat16),                       # (D, 2)
        "w2b": p["wb2"].astype(jnp.bfloat16),                       # (D, 2)
        "b2": jnp.concatenate([p["bk2"], p["bb2"]], axis=0).astype(f32),  # (2, 2)
    }


def lngrowth_reference(fg, fl, tt, lnv, lnm, packed):
    """Pure-JAX reference using the same bf16-quantized packed weights (validation path)."""
    f32 = jnp.float32
    lnp = packed["lnp"]
    hk = jnp.dot(fg.astype(jnp.bfloat16), packed["wk1"], preferred_element_type=f32) + lnp[4:5]
    hk = _gelu_exact(_layernorm(hk, lnp[0:1], lnp[1:2]))
    vmk = jnp.dot(hk.astype(jnp.bfloat16), packed["w2k"],
                  preferred_element_type=f32) + packed["b2"][0:1]
    hb = jnp.dot(fl.astype(jnp.bfloat16), packed["wb1"], preferred_element_type=f32)
    hb = _gelu_exact(_layernorm(hb, lnp[2:3], lnp[3:4]))
    vmb = jnp.dot(hb.astype(jnp.bfloat16), packed["w2b"],
                  preferred_element_type=f32) + packed["b2"][1:2]
    pred = vmk * (1.0 - jnp.exp(-vmb * tt[:, None].astype(f32)))

    def sl1_mean(x, t):
        d = x - t
        a = jnp.abs(d)
        return jnp.mean(jnp.where(a < 1.0, 0.5 * d * d, a - 0.5))

    return pred, sl1_mean(pred[:, 0], lnv.astype(f32)), sl1_mean(pred[:, 1], lnm.astype(f32))


if __name__ == "__main__":
    B = 8
    packed = pack_params(init_params(45))

    key = jax.random.PRNGKey(0)
    kf, kl, kt, kv, km = jax.random.split(key, 5)
    fg = jax.random.normal(kf, (B, D), jnp.float32)            # global backbone feature
    fl = jax.random.normal(kl, (B, D), jnp.float32)            # local backbone feature
    tt = jax.random.uniform(kt, (B,), jnp.float32, 0.5, 2.0)   # time interval
    lnv = jax.random.normal(kv, (B,), jnp.float32)             # target ln volume growth
    lnm = jax.random.normal(km, (B,), jnp.float32)             # target ln mass growth

    result, _ = lngrowth_forward(fg, fl, tt, lnv, lnm, packed)
    jax.block_until_ready(result)

    assert result["predlnv"].shape == (B,) and result["predlnm"].shape == (B,)
    assert result["loss"].shape == ()
    assert bool(jnp.isfinite(result["loss"]))

    # Validate against the pure-JAX reference (same bf16 quantization of the weights).
    ref_pred, ref_lv, ref_lm = lngrowth_reference(fg, fl, tt, lnv, lnm, packed)
    assert float(jnp.max(jnp.abs(result["predlnv"] - ref_pred[:, 0]))) < 2e-2
    assert float(jnp.max(jnp.abs(result["predlnm"] - ref_pred[:, 1]))) < 2e-2
    assert abs(float(result["loss_vrate"]) - float(ref_lv)) < 2e-2
    assert abs(float(result["loss_mrate"]) - float(ref_lm)) < 2e-2

    print("KERNEL_OK")
</pallas_src>

<mosaic_0001>
module attributes {stable_mosaic.version = 11 : i64} {
  func.func @fused_growth_kernel(%arg0: i32, %arg1: memref<16x768xbf16, #tpu.memory_space<vmem>>, %arg2: memref<16x768xbf16, #tpu.memory_space<vmem>>, %arg3: memref<16x4xf32, #tpu.memory_space<vmem>>, %arg4: memref<768x768xbf16, #tpu.memory_space<vmem>>, %arg5: memref<768x768xbf16, #tpu.memory_space<vmem>>, %arg6: memref<8x768xf32, #tpu.memory_space<vmem>>, %arg7: memref<768x2xbf16, #tpu.memory_space<vmem>>, %arg8: memref<768x2xbf16, #tpu.memory_space<vmem>>, %arg9: memref<2x2xf32, #tpu.memory_space<vmem>>, %arg10: memref<16x2xf32, #tpu.memory_space<vmem>>, %arg11: memref<1x8x2xf32, #tpu.memory_space<vmem>>) attributes {dimension_semantics = [#tpu.dimension_semantics<parallel>], iteration_bounds = array<i64: 1>, scalar_prefetch = 0 : i64, scratch_operands = 0 : i64, tpu.core_type = #tpu.core_type<tc>, window_params = [{transform_indices = @transform_0, window_bounds = array<i64: 16, 768>}, {transform_indices = @transform_1, window_bounds = array<i64: 16, 768>}, {transform_indices = @transform_2, window_bounds = array<i64: 16, 4>}, {pipeline_mode = #tpu.pipeline_mode<synchronous>, transform_indices = @transform_3, window_bounds = array<i64: 768, 768>}, {pipeline_mode = #tpu.pipeline_mode<synchronous>, transform_indices = @transform_4, window_bounds = array<i64: 768, 768>}, {pipeline_mode = #tpu.pipeline_mode<synchronous>, transform_indices = @transform_5, window_bounds = array<i64: 8, 768>}, {pipeline_mode = #tpu.pipeline_mode<synchronous>, transform_indices = @transform_6, window_bounds = array<i64: 768, 2>}, {pipeline_mode = #tpu.pipeline_mode<synchronous>, transform_indices = @transform_7, window_bounds = array<i64: 768, 2>}, {pipeline_mode = #tpu.pipeline_mode<synchronous>, transform_indices = @transform_8, window_bounds = array<i64: 2, 2>}, {transform_indices = @transform_9, window_bounds = array<i64: 16, 2>}, {transform_indices = @transform_10, window_bounds = array<i64: 1, 8, 2>}]} {
    %c0 = arith.constant 0 : index
    %c0_0 = arith.constant 0 : index
    %0 = vector.load %arg6[%c0, %c0_0] : memref<8x768xf32, #tpu.memory_space<vmem>>, vector<8x768xf32>
    %c0_1 = arith.constant 0 : index
    %c0_2 = arith.constant 0 : index
    %1 = vector.load %arg9[%c0_1, %c0_2] : memref<2x2xf32, #tpu.memory_space<vmem>>, vector<2x2xf32>
    %c0_3 = arith.constant 0 : index
    %c0_4 = arith.constant 0 : index
    %2 = vector.load %arg1[%c0_3, %c0_4] : memref<16x768xbf16, #tpu.memory_space<vmem>>, vector<16x768xbf16>
    %c0_5 = arith.constant 0 : index
    %c0_6 = arith.constant 0 : index
    %3 = vector.load %arg4[%c0_5, %c0_6] : memref<768x768xbf16, #tpu.memory_space<vmem>>, vector<768x768xbf16>
    %cst = arith.constant dense<0.000000e+00> : vector<16x768xf32>
    %4 = tpu.matmul %2, %3, %cst {dimension_numbers = #tpu.dot_dimension_numbers<[1], [0], [0], [1], [0, 0, 1, 1], [], []>} : vector<16x768xbf16>, vector<768x768xbf16>, vector<16x768xf32> -> vector<16x768xf32>
    %5 = vector.extract_strided_slice %0 {offsets = [4, 0], sizes = [1, 768], strides = [1, 1]} : vector<8x768xf32> to vector<1x768xf32>
    %6 = vector.broadcast %5 : vector<1x768xf32> to vector<16x768xf32>
    %7 = arith.addf %4, %6 : vector<16x768xf32>
    %8 = vector.extract_strided_slice %0 {offsets = [0, 0], sizes = [1, 768], strides = [1, 1]} : vector<8x768xf32> to vector<1x768xf32>
    %9 = vector.extract_strided_slice %0 {offsets = [1, 0], sizes = [1, 768], strides = [1, 1]} : vector<8x768xf32> to vector<1x768xf32>
    %cst_7 = arith.constant dense<0.000000e+00> : vector<16xf32>
    %10 = vector.multi_reduction <add>, %7, %cst_7 [1] : vector<16x768xf32> to vector<16xf32>
    %11 = vector.shape_cast %10 : vector<16xf32> to vector<16x1xf32>
    %cst_8 = arith.constant 7.680000e+02 : f32
    %12 = vector.broadcast %cst_8 : f32 to vector<16x1xf32>
    %13 = arith.divf %11, %12 : vector<16x1xf32>
    %14 = vector.broadcast %13 : vector<16x1xf32> to vector<16x768xf32>
    %15 = arith.subf %7, %14 : vector<16x768xf32>
    %16 = vector.broadcast %13 : vector<16x1xf32> to vector<16x768xf32>
    %17 = arith.subf %7, %16 : vector<16x768xf32>
    %18 = arith.mulf %15, %17 : vector<16x768xf32>
    %cst_9 = arith.constant dense<0.000000e+00> : vector<16xf32>
    %19 = vector.multi_reduction <add>, %18, %cst_9 [1] : vector<16x768xf32> to vector<16xf32>
    %20 = vector.shape_cast %19 : vector<16xf32> to vector<16x1xf32>
    %cst_10 = arith.constant 7.680000e+02 : f32
    %21 = vector.broadcast %cst_10 : f32 to vector<16x1xf32>
    %22 = arith.divf %20, %21 : vector<16x1xf32>
    %23 = vector.broadcast %13 : vector<16x1xf32> to vector<16x768xf32>
    %24 = arith.subf %7, %23 : vector<16x768xf32>
    %cst_11 = arith.constant 9.99999997E-7 : f32
    %25 = vector.broadcast %cst_11 : f32 to vector<16x1xf32>
    %26 = arith.addf %22, %25 : vector<16x1xf32>
    %27 = math.rsqrt %26 : vector<16x1xf32>
    %28 = vector.broadcast %27 : vector<16x1xf32> to vector<16x768xf32>
    %29 = arith.mulf %24, %28 : vector<16x768xf32>
    %30 = vector.broadcast %8 : vector<1x768xf32> to vector<16x768xf32>
    %31 = arith.mulf %29, %30 : vector<16x768xf32>
    %32 = vector.broadcast %9 : vector<1x768xf32> to vector<16x768xf32>
    %33 = arith.addf %31, %32 : vector<16x768xf32>
    %cst_12 = arith.constant 5.000000e-01 : f32
    %34 = vector.broadcast %cst_12 : f32 to vector<16x768xf32>
    %35 = arith.mulf %34, %33 : vector<16x768xf32>
    %cst_13 = arith.constant 0.707106769 : f32
    %36 = vector.broadcast %cst_13 : f32 to vector<16x768xf32>
    %37 = arith.mulf %33, %36 : vector<16x768xf32>
    %38 = math.erf %37 : vector<16x768xf32>
    %cst_14 = arith.constant 1.000000e+00 : f32
    %39 = vector.broadcast %cst_14 : f32 to vector<16x768xf32>
    %40 = arith.addf %39, %38 : vector<16x768xf32>
    %41 = arith.mulf %35, %40 : vector<16x768xf32>
    %42 = arith.truncf %41 : vector<16x768xf32> to vector<16x768xbf16>
    %c0_15 = arith.constant 0 : index
    %c0_16 = arith.constant 0 : index
    %43 = vector.load %arg7[%c0_15, %c0_16] : memref<768x2xbf16, #tpu.memory_space<vmem>>, vector<768x2xbf16>
    %cst_17 = arith.constant dense<0.000000e+00> : vector<16x2xf32>
    %44 = tpu.matmul %42, %43, %cst_17 {dimension_numbers = #tpu.dot_dimension_numbers<[1], [0], [0], [1], [0, 0, 1, 1], [], []>} : vector<16x768xbf16>, vector<768x2xbf16>, vector<16x2xf32> -> vector<16x2xf32>
    %45 = vector.extract_strided_slice %1 {offsets = [0, 0], sizes = [1, 2], strides = [1, 1]} : vector<2x2xf32> to vector<1x2xf32>
    %46 = vector.broadcast %45 : vector<1x2xf32> to vector<16x2xf32>
    %47 = arith.addf %44, %46 : vector<16x2xf32>
    %c0_18 = arith.constant 0 : index
    %c0_19 = arith.constant 0 : index
    %48 = vector.load %arg2[%c0_18, %c0_19] : memref<16x768xbf16, #tpu.memory_space<vmem>>, vector<16x768xbf16>
    %c0_20 = arith.constant 0 : index
    %c0_21 = arith.constant 0 : index
    %49 = vector.load %arg5[%c0_20, %c0_21] : memref<768x768xbf16, #tpu.memory_space<vmem>>, vector<768x768xbf16>
    %cst_22 = arith.constant dense<0.000000e+00> : vector<16x768xf32>
    %50 = tpu.matmul %48, %49, %cst_22 {dimension_numbers = #tpu.dot_dimension_numbers<[1], [0], [0], [1], [0, 0, 1, 1], [], []>} : vector<16x768xbf16>, vector<768x768xbf16>, vector<16x768xf32> -> vector<16x768xf32>
    %51 = vector.extract_strided_slice %0 {offsets = [2, 0], sizes = [1, 768], strides = [1, 1]} : vector<8x768xf32> to vector<1x768xf32>
    %52 = vector.extract_strided_slice %0 {offsets = [3, 0], sizes = [1, 768], strides = [1, 1]} : vector<8x768xf32> to vector<1x768xf32>
    %cst_23 = arith.constant dense<0.000000e+00> : vector<16xf32>
    %53 = vector.multi_reduction <add>, %50, %cst_23 [1] : vector<16x768xf32> to vector<16xf32>
    %54 = vector.shape_cast %53 : vector<16xf32> to vector<16x1xf32>
    %cst_24 = arith.constant 7.680000e+02 : f32
    %55 = vector.broadcast %cst_24 : f32 to vector<16x1xf32>
    %56 = arith.divf %54, %55 : vector<16x1xf32>
    %57 = vector.broadcast %56 : vector<16x1xf32> to vector<16x768xf32>
    %58 = arith.subf %50, %57 : vector<16x768xf32>
    %59 = vector.broadcast %56 : vector<16x1xf32> to vector<16x768xf32>
    %60 = arith.subf %50, %59 : vector<16x768xf32>
    %61 = arith.mulf %58, %60 : vector<16x768xf32>
    %cst_25 = arith.constant dense<0.000000e+00> : vector<16xf32>
    %62 = vector.multi_reduction <add>, %61, %cst_25 [1] : vector<16x768xf32> to vector<16xf32>
    %63 = vector.shape_cast %62 : vector<16xf32> to vector<16x1xf32>
    %cst_26 = arith.constant 7.680000e+02 : f32
    %64 = vector.broadcast %cst_26 : f32 to vector<16x1xf32>
    %65 = arith.divf %63, %64 : vector<16x1xf32>
    %66 = vector.broadcast %56 : vector<16x1xf32> to vector<16x768xf32>
    %67 = arith.subf %50, %66 : vector<16x768xf32>
    %cst_27 = arith.constant 9.99999997E-7 : f32
    %68 = vector.broadcast %cst_27 : f32 to vector<16x1xf32>
    %69 = arith.addf %65, %68 : vector<16x1xf32>
    %70 = math.rsqrt %69 : vector<16x1xf32>
    %71 = vector.broadcast %70 : vector<16x1xf32> to vector<16x768xf32>
    %72 = arith.mulf %67, %71 : vector<16x768xf32>
    %73 = vector.broadcast %51 : vector<1x768xf32> to vector<16x768xf32>
    %74 = arith.mulf %72, %73 : vector<16x768xf32>
    %75 = vector.broadcast %52 : vector<1x768xf32> to vector<16x768xf32>
    %76 = arith.addf %74, %75 : vector<16x768xf32>
    %cst_28 = arith.constant 5.000000e-01 : f32
    %77 = vector.broadcast %cst_28 : f32 to vector<16x768xf32>
    %78 = arith.mulf %77, %76 : vector<16x768xf32>
    %cst_29 = arith.constant 0.707106769 : f32
    %79 = vector.broadcast %cst_29 : f32 to vector<16x768xf32>
    %80 = arith.mulf %76, %79 : vector<16x768xf32>
    %81 = math.erf %80 : vector<16x768xf32>
    %cst_30 = arith.constant 1.000000e+00 : f32
    %82 = vector.broadcast %cst_30 : f32 to vector<16x768xf32>
    %83 = arith.addf %82, %81 : vector<16x768xf32>
    %84 = arith.mulf %78, %83 : vector<16x768xf32>
    %85 = arith.truncf %84 : vector<16x768xf32> to vector<16x768xbf16>
    %c0_31 = arith.constant 0 : index
    %c0_32 = arith.constant 0 : index
    %86 = vector.load %arg8[%c0_31, %c0_32] : memref<768x2xbf16, #tpu.memory_space<vmem>>, vector<768x2xbf16>
    %cst_33 = arith.constant dense<0.000000e+00> : vector<16x2xf32>
    %87 = tpu.matmul %85, %86, %cst_33 {dimension_numbers = #tpu.dot_dimension_numbers<[1], [0], [0], [1], [0, 0, 1, 1], [], []>} : vector<16x768xbf16>, vector<768x2xbf16>, vector<16x2xf32> -> vector<16x2xf32>
    %88 = vector.extract_strided_slice %1 {offsets = [1, 0], sizes = [1, 2], strides = [1, 1]} : vector<2x2xf32> to vector<1x2xf32>
    %89 = vector.broadcast %88 : vector<1x2xf32> to vector<16x2xf32>
    %90 = arith.addf %87, %89 : vector<16x2xf32>
    %c0_34 = arith.constant 0 : index
    %c0_35 = arith.constant 0 : index
    %91 = vector.load %arg3[%c0_34, %c0_35] : memref<16x4xf32, #tpu.memory_space<vmem>>, vector<16x4xf32>
    %92 = vector.extract_strided_slice %91 {offsets = [0, 0], sizes = [16, 1], strides = [1, 1]} : vector<16x4xf32> to vector<16x1xf32>
    %93 = vector.extract_strided_slice %91 {offsets = [0, 1], sizes = [16, 2], strides = [1, 1]} : vector<16x4xf32> to vector<16x2xf32>
    %94 = vector.extract_strided_slice %91 {offsets = [0, 3], sizes = [16, 1], strides = [1, 1]} : vector<16x4xf32> to vector<16x1xf32>
    %cst_36 = arith.constant 0.000000e+00 : f32
    %95 = vector.broadcast %cst_36 : f32 to vector<16x2xf32>
    %96 = arith.subf %95, %90 : vector<16x2xf32>
    %97 = vector.broadcast %92 : vector<16x1xf32> to vector<16x2xf32>
    %98 = arith.mulf %96, %97 : vector<16x2xf32>
    %99 = math.exp %98 : vector<16x2xf32>
    %cst_37 = arith.constant 1.000000e+00 : f32
    %100 = vector.broadcast %cst_37 : f32 to vector<16x2xf32>
    %101 = arith.subf %100, %99 : vector<16x2xf32>
    %102 = arith.mulf %47, %101 : vector<16x2xf32>
    %c0_38 = arith.constant 0 : index
    %c0_39 = arith.constant 0 : index
    %103 = vector.load %arg10[%c0_38, %c0_39] : memref<16x2xf32, #tpu.memory_space<vmem>>, vector<16x2xf32>
    tpu.vector_store %arg10[%c0_38, %c0_39], %102 {strides = array<i32>} : memref<16x2xf32, #tpu.memory_space<vmem>>, vector<16x2xf32>,
    %104 = arith.subf %102, %93 : vector<16x2xf32>
    %105 = math.absf %104 : vector<16x2xf32>
    %cst_40 = arith.constant 1.000000e+00 : f32
    %106 = vector.broadcast %cst_40 : f32 to vector<16x2xf32>
    %107 = arith.cmpf olt, %105, %106 : vector<16x2xf32>
    %cst_41 = arith.constant 5.000000e-01 : f32
    %108 = vector.broadcast %cst_41 : f32 to vector<16x2xf32>
    %109 = arith.mulf %108, %104 : vector<16x2xf32>
    %110 = arith.mulf %109, %104 : vector<16x2xf32>
    %cst_42 = arith.constant 5.000000e-01 : f32
    %111 = vector.broadcast %cst_42 : f32 to vector<16x2xf32>
    %112 = arith.subf %105, %111 : vector<16x2xf32>
    %113 = arith.select %107, %110, %112 : vector<16x2xi1>, vector<16x2xf32>
    %114 = vector.broadcast %94 : vector<16x1xf32> to vector<16x2xf32>
    %115 = arith.mulf %113, %114 : vector<16x2xf32>
    %cst_43 = arith.constant dense<0.000000e+00> : vector<2xf32>
    %116 = vector.multi_reduction <add>, %115, %cst_43 [0] : vector<16x2xf32> to vector<2xf32>
    %117 = vector.shape_cast %116 : vector<2xf32> to vector<1x2xf32>
    %118 = vector.shape_cast %117 : vector<1x2xf32> to vector<1x2xf32>
    %119 = vector.broadcast %118 : vector<1x2xf32> to vector<8x2xf32>
    %c0_44 = arith.constant 0 : index
    %c0_45 = arith.constant 0 : index
    %c0_46 = arith.constant 0 : index
    %120 = vector.load %arg11[%c0_44, %c0_45, %c0_46] : memref<1x8x2xf32, #tpu.memory_space<vmem>>, vector<1x8x2xf32>
    %121 = vector.shape_cast %120 : vector<1x8x2xf32> to vector<8x2xf32>
    %122 = vector.shape_cast %119 : vector<8x2xf32> to vector<1x8x2xf32>
    tpu.vector_store %arg11[%c0_44, %c0_45, %c0_46], %122 {strides = array<i32>} : memref<1x8x2xf32, #tpu.memory_space<vmem>>, vector<1x8x2xf32>,
    return
  }
  func.func @transform_0(%arg0: i32) -> (i32, i32) {
    %c0_i32 = arith.constant 0 : i32
    %c0_i32_0 = arith.constant 0 : i32
    return %arg0, %c0_i32 : i32, i32
  }
  func.func @transform_1(%arg0: i32) -> (i32, i32) {
    %c0_i32 = arith.constant 0 : i32
    %c0_i32_0 = arith.constant 0 : i32
    return %arg0, %c0_i32 : i32, i32
  }
  func.func @transform_2(%arg0: i32) -> (i32, i32) {
    %c0_i32 = arith.constant 0 : i32
    %c0_i32_0 = arith.constant 0 : i32
    return %arg0, %c0_i32 : i32, i32
  }
  func.func @transform_3(%arg0: i32) -> (i32, i32) {
    %c0_i32 = arith.constant 0 : i32
    %c0_i32_0 = arith.constant 0 : i32
    %c0_i32_1 = arith.constant 0 : i32
    return %c0_i32, %c0_i32_0 : i32, i32
  }
  func.func @transform_4(%arg0: i32) -> (i32, i32) {
    %c0_i32 = arith.constant 0 : i32
    %c0_i32_0 = arith.constant 0 : i32
    %c0_i32_1 = arith.constant 0 : i32
    return %c0_i32, %c0_i32_0 : i32, i32
  }
  func.func @transform_5(%arg0: i32) -> (i32, i32) {
    %c0_i32 = arith.constant 0 : i32
    %c0_i32_0 = arith.constant 0 : i32
    %c0_i32_1 = arith.constant 0 : i32
    return %c0_i32, %c0_i32_0 : i32, i32
  }
  func.func @transform_6(%arg0: i32) -> (i32, i32) {
    %c0_i32 = arith.constant 0 : i32
    %c0_i32_0 = arith.constant 0 : i32
    %c0_i32_1 = arith.constant 0 : i32
    return %c0_i32, %c0_i32_0 : i32, i32
  }
  func.func @transform_7(%arg0: i32) -> (i32, i32) {
    %c0_i32 = arith.constant 0 : i32
    %c0_i32_0 = arith.constant 0 : i32
    %c0_i32_1 = arith.constant 0 : i32
    return %c0_i32, %c0_i32_0 : i32, i32
  }
  func.func @transform_8(%arg0: i32) -> (i32, i32) {
    %c0_i32 = arith.constant 0 : i32
    %c0_i32_0 = arith.constant 0 : i32
    %c0_i32_1 = arith.constant 0 : i32
    return %c0_i32, %c0_i32_0 : i32, i32
  }
  func.func @transform_9(%arg0: i32) -> (i32, i32) {
    %c0_i32 = arith.constant 0 : i32
    %c0_i32_0 = arith.constant 0 : i32
    return %arg0, %c0_i32 : i32, i32
  }
  func.func @transform_10(%arg0: i32) -> (i32, i32, i32) {
    %c0_i32 = arith.constant 0 : i32
    %c0_i32_0 = arith.constant 0 : i32
    %c0_i32_1 = arith.constant 0 : i32
    return %arg0, %c0_i32, %c0_i32_0 : i32, i32, i32
  }
}

</mosaic_0001>

<llo_original>
// kernel: lngrowth_forward.1
$region0: #{lngrowth_forward.1}
  #allocation0 [shape = 'u32[]', space=smem, size = 0x4, offset = 0x4, fixed_abs, tag = 'smem constant byte address 0x4 - core index']
  #allocation1 [shape = 'u32[72,128]{1,0:T(1,128)}', space=vmem, size = 0x9000, scoped, tag = 'internal scratch']
  %s0 = inlined_call_operand.vmem [shape: bf16[16,768], index: 0, kind: input, shape index: {}]
  %s1 = inlined_call_operand.vmem [shape: bf16[16,768], index: 1, kind: input, shape index: {}]
  %s2 = inlined_call_operand.vmem [shape: f32[16,4], index: 2, kind: input, shape index: {}]
  %s3 = inlined_call_operand.hbm [shape: bf16[768,768], index: 3, kind: input, shape index: {}]
  %s4 = inlined_call_operand.hbm [shape: bf16[768,768], index: 4, kind: input, shape index: {}]
  %s5 = inlined_call_operand.hbm [shape: f32[8,768], index: 5, kind: input, shape index: {}]
  %s6 = inlined_call_operand.vmem [shape: bf16[768,2], index: 6, kind: input, shape index: {}]
  %s7 = inlined_call_operand.vmem [shape: bf16[768,2], index: 7, kind: input, shape index: {}]
  %s8 = inlined_call_operand.hbm [shape: f32[2,2], index: 8, kind: input, shape index: {}]
  %s9 = inlined_call_operand.vmem [shape: f32[16,2], index: 9, kind: output, shape index: {0}]
  %s10 = inlined_call_operand.vmem [shape: f32[1,8,2], index: 10, kind: output, shape index: {1}]
  %11 = xla_tuple %s9, %s10
  %s12 = sld [smem:[#allocation0]]
  $region70: #{lngrowth_forward.1} parent=0
    _
  %s14 = ssub.s32 1, %s12
  %s15 = scalar_select 0, %s14, %s12
  $region1: #{lngrowth_forward.1} parent=0
    #allocation2 [shape = 'u8[1179648]{0}', space=vmem, size = 0x120000, scoped, tag = 'input window, operand 3, single buffered']
    #allocation3 [shape = 's32[1]{0}', space=sflag, size = 0x4, scoped, tag = 'scoped memory for lngrowth_forward.1']
    #allocation4 [shape = 'u8[1179648]{0}', space=vmem, size = 0x120000, scoped, tag = 'input window, operand 4, single buffered']
    #allocation5 [shape = 's32[1]{0}', space=sflag, size = 0x4, scoped, tag = 'scoped memory for lngrowth_forward.1']
    #allocation6 [shape = 'u8[24576]{0}', space=vmem, size = 0x6000, scoped, tag = 'input window, operand 5, single buffered']
    #allocation7 [shape = 'u8[1024]{0}', space=vmem, size = 0x400, scoped, tag = 'input window, operand 8, single buffered']
    #allocation8 [shape = 's32[1]{0}', space=sflag, size = 0x4, scoped, tag = 'scoped memory for lngrowth_forward.1']
    %16 = vsyncpa [#allocation3], 0
    %17 = vsyncpa [#allocation5], 0
    %18 = vsyncpa [#allocation8], 0
    // Predicated region
    $region2: #{lngrowth_forward.1} parent=1 // pred_check
      _
    $region3: #{lngrowth_forward.1} parent=1 // pred_check_branch
      %20 = sbr.rel (0) target = $region5
    $region4: #{lngrowth_forward.1} parent=1 // pred_region
      _
    $region5: #{lngrowth_forward.1} parent=1 // pred_fallthru
      _
    // Predicated region
    $region6: #{lngrowth_forward.1} parent=1 // pred_check
      _
    $region7: #{lngrowth_forward.1} parent=1 // pred_check_branch
      %22 = sbr.rel (0) target = $region9
    $region8: #{lngrowth_forward.1} parent=1 // pred_region
      _
    $region9: #{lngrowth_forward.1} parent=1 // pred_fallthru
      _
    // Predicated region
    $region10: #{lngrowth_forward.1} parent=1 // pred_check
      _
    $region11: #{lngrowth_forward.1} parent=1 // pred_check_branch
      %24 = sbr.rel (0) target = $region13
    $region12: #{lngrowth_forward.1} parent=1 // pred_region
      _
    $region13: #{lngrowth_forward.1} parent=1 // pred_fallthru
      _
    // Predicated region
    $region14: #{lngrowth_forward.1} parent=1 // pred_check
      _
    $region15: #{lngrowth_forward.1} parent=1 // pred_check_branch
      %26 = sbr.rel (0) target = $region17
    $region16: #{lngrowth_forward.1} parent=1 // pred_region
      %28 = vsyncadd [#allocation3], 0
      %s29 = sshll.u32 %s3, 4
      %s30 = int_to_ptr.hbm [resolvable:$true] %s29
      %s31 = sshll.u32 [#allocation2], 4
      %s32 = int_to_ptr.vmem [resolvable:$true] %s31
      %37 = dma.hbm_to_vmem [thread:$0]  %s30, 36864, %s32, [#allocation3], 384, 384, 24
    $region17: #{lngrowth_forward.1} parent=1 // pred_fallthru
      _
    // Predicated region
    $region18: #{lngrowth_forward.1} parent=1 // pred_check
      _
    $region19: #{lngrowth_forward.1} parent=1 // pred_check_branch
      %39 = sbr.rel (0) target = $region21
    $region20: #{lngrowth_forward.1} parent=1 // pred_region
      %41 = vsyncadd [#allocation5], 0
      %s42 = sshll.u32 %s4, 4
      %s43 = int_to_ptr.hbm [resolvable:$true] %s42
      %s44 = sshll.u32 [#allocation4], 4
      %s45 = int_to_ptr.vmem [resolvable:$true] %s44
      %50 = dma.hbm_to_vmem [thread:$0]  %s43, 36864, %s45, [#allocation5], 384, 384, 24
    $region21: #{lngrowth_forward.1} parent=1 // pred_fallthru
      _
    // Predicated region
    $region22: #{lngrowth_forward.1} parent=1 // pred_check
      _
    $region23: #{lngrowth_forward.1} parent=1 // pred_check_branch
      %52 = sbr.rel (0) target = $region25
    $region24: #{lngrowth_forward.1} parent=1 // pred_region
      %54 = vsyncadd [#allocation5], 0
      %s56 = sshll.u32 %s5, 4
      %s57 = int_to_ptr.hbm [resolvable:$true] %s56
      %s58 = sshll.u32 [#allocation6], 4
      %s59 = int_to_ptr.vmem [resolvable:$true] %s58
      %61 = dma.hbm_to_vmem [thread:$0]  %s57, 768, %s59, [#allocation5]
    $region25: #{lngrowth_forward.1} parent=1 // pred_fallthru
      _
    // Predicated region
    $region26: #{lngrowth_forward.1} parent=1 // pred_check
      _
    $region27: #{lngrowth_forward.1} parent=1 // pred_check_branch
      %63 = sbr.rel (0) target = $region29
    $region28: #{lngrowth_forward.1} parent=1 // pred_region
      _
    $region29: #{lngrowth_forward.1} parent=1 // pred_fallthru
      _
    // Predicated region
    $region30: #{lngrowth_forward.1} parent=1 // pred_check
      _
    $region31: #{lngrowth_forward.1} parent=1 // pred_check_branch
      %65 = sbr.rel (0) target = $region33
    $region32: #{lngrowth_forward.1} parent=1 // pred_region
      _
    $region33: #{lngrowth_forward.1} parent=1 // pred_fallthru
      _
    // Predicated region
    $region34: #{lngrowth_forward.1} parent=1 // pred_check
      _
    $region35: #{lngrowth_forward.1} parent=1 // pred_check_branch
      %67 = sbr.rel (0) target = $region37
    $region36: #{lngrowth_forward.1} parent=1 // pred_region
      %69 = vsyncadd [#allocation8], 0
      %s71 = sshll.u32 %s8, 4
      %s72 = int_to_ptr.hbm [resolvable:$true] %s71
      %s73 = sshll.u32 [#allocation7], 4
      %s74 = int_to_ptr.vmem [resolvable:$true] %s73
      %76 = dma.hbm_to_vmem [thread:$0]  %s72, 32, %s74, [#allocation8]
    $region37: #{lngrowth_forward.1} parent=1 // pred_fallthru
      _
    // Predicated region
    $region38: #{lngrowth_forward.1} parent=1 // pred_check
      _
    $region39: #{lngrowth_forward.1} parent=1 // pred_check_branch
      %78 = sbr.rel (0) target = $region41
    $region40: #{lngrowth_forward.1} parent=1 // pred_region
      %80 = dma.done [#allocation3], 36864
    $region41: #{lngrowth_forward.1} parent=1 // pred_fallthru
      _
    // Predicated region
    $region42: #{lngrowth_forward.1} parent=1 // pred_check
      _
    $region43: #{lngrowth_forward.1} parent=1 // pred_check_branch
      %82 = sbr.rel (0) target = $region45
    $region44: #{lngrowth_forward.1} parent=1 // pred_region
      %84 = dma.done [#allocation5], 36864
    $region45: #{lngrowth_forward.1} parent=1 // pred_fallthru
      _
    // Predicated region
    $region46: #{lngrowth_forward.1} parent=1 // pred_check
      _
    $region47: #{lngrowth_forward.1} parent=1 // pred_check_branch
      %86 = sbr.rel (0) target = $region49
    $region48: #{lngrowth_forward.1} parent=1 // pred_region
      %88 = dma.done [#allocation5], 768
    $region49: #{lngrowth_forward.1} parent=1 // pred_fallthru
      _
    // Predicated region
    $region50: #{lngrowth_forward.1} parent=1 // pred_check
      _
    $region51: #{lngrowth_forward.1} parent=1 // pred_check_branch
      %90 = sbr.rel (0) target = $region53
    $region52: #{lngrowth_forward.1} parent=1 // pred_region
      %92 = dma.done [#allocation8], 32
    $region53: #{lngrowth_forward.1} parent=1 // pred_fallthru
      _
    %v93 = vld [vmem:[#allocation6] sm:$0xff]
    %v94 = vld [vmem:[#allocation6 + $0x8] sm:$0xff]
    %v95 = vld [vmem:[#allocation6 + $0x10] sm:$0xff]
    %v96 = vld [vmem:[#allocation6 + $0x18] sm:$0xff]
    %v97 = vld [vmem:[#allocation6 + $0x20] sm:$0xff]
    %v98 = vld [vmem:[#allocation6 + $0x28] sm:$0xff]
    %v99 = vld [vmem:[#allocation7] sm:$0x3]
    %v100 = vld [vmem:[%s0] sm:$0xff]
    %v101 = vld [vmem:[%s0 + $0x8] sm:$0xff]
    %v102 = vld [vmem:[%s0 + $0x10] sm:$0xff]
    %v103 = vld [vmem:[%s0 + $0x18] sm:$0xff]
    %v104 = vld [vmem:[%s0 + $0x20] sm:$0xff]
    %v105 = vld [vmem:[%s0 + $0x28] sm:$0xff]
    %v106 = vld [vmem:[#allocation2] sm:$0xff]
    %v107 = vld [vmem:[#allocation2 + $0x8] sm:$0xff]
    %v108 = vld [vmem:[#allocation2 + $0x10] sm:$0xff]
    %v109 = vld [vmem:[#allocation2 + $0x18] sm:$0xff]
    %v110 = vld [vmem:[#allocation2 + $0x20] sm:$0xff]
    %v111 = vld [vmem:[#allocation2 + $0x28] sm:$0xff]
    %v112 = vld [vmem:[#allocation2 + $0x30] sm:$0xff]
    %v113 = vld [vmem:[#allocation2 + $0x38] sm:$0xff]
    %v114 = vld [vmem:[#allocation2 + $0x40] sm:$0xff]
    %v115 = vld [vmem:[#allocation2 + $0x48] sm:$0xff]
    %v116 = vld [vmem:[#allocation2 + $0x50] sm:$0xff]
    %v117 = vld [vmem:[#allocation2 + $0x58] sm:$0xff]
    %v118 = vld [vmem:[#allocation2 + $0x60] sm:$0xff]
    %v119 = vld [vmem:[#allocation2 + $0x68] sm:$0xff]
    %v120 = vld [vmem:[#allocation2 + $0x70] sm:$0xff]
    %v121 = vld [vmem:[#allocation2 + $0x78] sm:$0xff]
    %v122 = vld [vmem:[#allocation2 + $0x80] sm:$0xff]
    %v123 = vld [vmem:[#allocation2 + $0x88] sm:$0xff]
    %v124 = vld [vmem:[#allocation2 + $0x90] sm:$0xff]
    %v125 = vld [vmem:[#allocation2 + $0x98] sm:$0xff]
    %v126 = vld [vmem:[#allocation2 + $0xa0] sm:$0xff]
    %v127 = vld [vmem:[#allocation2 + $0xa8] sm:$0xff]
    %v128 = vld [vmem:[#allocation2 + $0xb0] sm:$0xff]
    %v129 = vld [vmem:[#allocation2 + $0xb8] sm:$0xff]
    %v130 = vld [vmem:[#allocation2 + $0xc0] sm:$0xff]
    %v131 = vld [vmem:[#allocation2 + $0xc8] sm:$0xff]
    %v132 = vld [vmem:[#allocation2 + $0xd0] sm:$0xff]
    %v133 = vld [vmem:[#allocation2 + $0xd8] sm:$0xff]
    %v134 = vld [vmem:[#allocation2 + $0xe0] sm:$0xff]
    %v135 = vld [vmem:[#allocation2 + $0xe8] sm:$0xff]
    %v136 = vld [vmem:[#allocation2 + $0xf0] sm:$0xff]
    %v137 = vld [vmem:[#allocation2 + $0xf8] sm:$0xff]
    %v138 = vld [vmem:[#allocation2 + $0x100] sm:$0xff]
    %v139 = vld [vmem:[#allocation2 + $0x108] sm:$0xff]
    %v140 = vld [vmem:[#allocation2 + $0x110] sm:$0xff]
    %v141 = vld [vmem:[#allocation2 + $0x118] sm:$0xff]
    %v142 = vld [vmem:[#allocation2 + $0x120] sm:$0xff]
    %v143 = vld [vmem:[#allocation2 + $0x128] sm:$0xff]
    %v144 = vld [vmem:[#allocation2 + $0x130] sm:$0xff]
    %v145 = vld [vmem:[#allocation2 + $0x138] sm:$0xff]
    %v146 = vld [vmem:[#allocation2 + $0x140] sm:$0xff]
    %v147 = vld [vmem:[#allocation2 + $0x148] sm:$0xff]
    %v148 = vld [vmem:[#allocation2 + $0x150] sm:$0xff]
    %v149 = vld [vmem:[#allocation2 + $0x158] sm:$0xff]
    %v150 = vld [vmem:[#allocation2 + $0x160] sm:$0xff]
    %v151 = vld [vmem:[#allocation2 + $0x168] sm:$0xff]
    %v152 = vld [vmem:[#allocation2 + $0x170] sm:$0xff]
    %v153 = vld [vmem:[#allocation2 + $0x178] sm:$0xff]
    %v154 = vld [vmem:[#allocation2 + $0x180] sm:$0xff]
    %v155 = vld [vmem:[#allocation2 + $0x188] sm:$0xff]
    %v156 = vld [vmem:[#allocation2 + $0x190] sm:$0xff]
    %v157 = vld [vmem:[#allocation2 + $0x198] sm:$0xff]
    %v158 = vld [vmem:[#allocation2 + $0x1a0] sm:$0xff]
    %v159 = vld [vmem:[#allocation2 + $0x1a8] sm:$0xff]
    %v160 = vld [vmem:[#allocation2 + $0x1b0] sm:$0xff]
    %v161 = vld [vmem:[#allocation2 + $0x1b8] sm:$0xff]
    %v162 = vld [vmem:[#allocation2 + $0x1c0] sm:$0xff]
    %v163 = vld [vmem:[#allocation2 + $0x1c8] sm:$0xff]
    %v164 = vld [vmem:[#allocation2 + $0x1d0] sm:$0xff]
    %v165 = vld [vmem:[#allocation2 + $0x1d8] sm:$0xff]
    %v166 = vld [vmem:[#allocation2 + $0x1e0] sm:$0xff]
    %v167 = vld [vmem:[#allocation2 + $0x1e8] sm:$0xff]
    %v168 = vld [vmem:[#allocation2 + $0x1f0] sm:$0xff]
    %v169 = vld [vmem:[#allocation2 + $0x1f8] sm:$0xff]
    %v170 = vld [vmem:[#allocation2 + $0x200] sm:$0xff]
    %v171 = vld [vmem:[#allocation2 + $0x208] sm:$0xff]
    %v172 = vld [vmem:[#allocation2 + $0x210] sm:$0xff]
    %v173 = vld [vmem:[#allocation2 + $0x218] sm:$0xff]
    %v174 = vld [vmem:[#allocation2 + $0x220] sm:$0xff]
    %v175 = vld [vmem:[#allocation2 + $0x228] sm:$0xff]
    %v176 = vld [vmem:[#allocation2 + $0x230] sm:$0xff]
    %v177 = vld [vmem:[#allocation2 + $0x238] sm:$0xff]
    %v178 = vld [vmem:[#allocation2 + $0x240] sm:$0xff]
    %v179 = vld [vmem:[#allocation2 + $0x248] sm:$0xff]
    %v180 = vld [vmem:[#allocation2 + $0x250] sm:$0xff]
    %v181 = vld [vmem:[#allocation2 + $0x258] sm:$0xff]
    %v182 = vld [vmem:[#allocation2 + $0x260] sm:$0xff]
    %v183 = vld [vmem:[#allocation2 + $0x268] sm:$0xff]
    %v184 = vld [vmem:[#allocation2 + $0x270] sm:$0xff]
    %v185 = vld [vmem:[#allocation2 + $0x278] sm:$0xff]
    %v186 = vld [vmem:[#allocation2 + $0x280] sm:$0xff]
    %v187 = vld [vmem:[#allocation2 + $0x288] sm:$0xff]
    %v188 = vld [vmem:[#allocation2 + $0x290] sm:$0xff]
    %v189 = vld [vmem:[#allocation2 + $0x298] sm:$0xff]
    %v190 = vld [vmem:[#allocation2 + $0x2a0] sm:$0xff]
    %v191 = vld [vmem:[#allocation2 + $0x2a8] sm:$0xff]
    %v192 = vld [vmem:[#allocation2 + $0x2b0] sm:$0xff]
    %v193 = vld [vmem:[#allocation2 + $0x2b8] sm:$0xff]
    %v194 = vld [vmem:[#allocation2 + $0x2c0] sm:$0xff]
    %v195 = vld [vmem:[#allocation2 + $0x2c8] sm:$0xff]
    %v196 = vld [vmem:[#allocation2 + $0x2d0] sm:$0xff]
    %v197 = vld [vmem:[#allocation2 + $0x2d8] sm:$0xff]
    %v198 = vld [vmem:[#allocation2 + $0x2e0] sm:$0xff]
    %v199 = vld [vmem:[#allocation2 + $0x2e8] sm:$0xff]
    %v200 = vld [vmem:[#allocation2 + $0x2f0] sm:$0xff]
    %v201 = vld [vmem:[#allocation2 + $0x2f8] sm:$0xff]
    %v202 = vld [vmem:[#allocation2 + $0x300] sm:$0xff]
    %v203 = vld [vmem:[#allocation2 + $0x308] sm:$0xff]
    %v204 = vld [vmem:[#allocation2 + $0x310] sm:$0xff]
    %v205 = vld [vmem:[#allocation2 + $0x318] sm:$0xff]
    %v206 = vld [vmem:[#allocation2 + $0x320] sm:$0xff]
    %v207 = vld [vmem:[#allocation2 + $0x328] sm:$0xff]
    %v208 = vld [vmem:[#allocation2 + $0x330] sm:$0xff]
    %v209 = vld [vmem:[#allocation2 + $0x338] sm:$0xff]
    %v210 = vld [vmem:[#allocation2 + $0x340] sm:$0xff]
    %v211 = vld [vmem:[#allocation2 + $0x348] sm:$0xff]
    %v212 = vld [vmem:[#allocation2 + $0x350] sm:$0xff]
    %v213 = vld [vmem:[#allocation2 + $0x358] sm:$0xff]
    %v214 = vld [vmem:[#allocation2 + $0x360] sm:$0xff]
    %v215 = vld [vmem:[#allocation2 + $0x368] sm:$0xff]
    %v216 = vld [vmem:[#allocation2 + $0x370] sm:$0xff]
    %v217 = vld [vmem:[#allocation2 + $0x378] sm:$0xff]
    %v218 = vld [vmem:[#allocation2 + $0x380] sm:$0xff]
    %v219 = vld [vmem:[#allocation2 + $0x388] sm:$0xff]
    %v220 = vld [vmem:[#allocation2 + $0x390] sm:$0xff]
    %v221 = vld [vmem:[#allocation2 + $0x398] sm:$0xff]
    %v222 = vld [vmem:[#allocation2 + $0x3a0] sm:$0xff]
    %v223 = vld [vmem:[#allocation2 + $0x3a8] sm:$0xff]
    %v224 = vld [vmem:[#allocation2 + $0x3b0] sm:$0xff]
    %v225 = vld [vmem:[#allocation2 + $0x3b8] sm:$0xff]
    %v226 = vld [vmem:[#allocation2 + $0x3c0] sm:$0xff]
    %v227 = vld [vmem:[#allocation2 + $0x3c8] sm:$0xff]
    %v228 = vld [vmem:[#allocation2 + $0x3d0] sm:$0xff]
    %v229 = vld [vmem:[#allocation2 + $0x3d8] sm:$0xff]
    %v230 = vld [vmem:[#allocation2 + $0x3e0] sm:$0xff]
    %v231 = vld [vmem:[#allocation2 + $0x3e8] sm:$0xff]
    %v232 = vld [vmem:[#allocation2 + $0x3f0] sm:$0xff]
    %v233 = vld [vmem:[#allocation2 + $0x3f8] sm:$0xff]
    %v234 = vld [vmem:[#allocation2 + $0x400] sm:$0xff]
    %v235 = vld [vmem:[#allocation2 + $0x408] sm:$0xff]
    %v236 = vld [vmem:[#allocation2 + $0x410] sm:$0xff]
    %v237 = vld [vmem:[#allocation2 + $0x418] sm:$0xff]
    %v238 = vld [vmem:[#allocation2 + $0x420] sm:$0xff]
    %v239 = vld [vmem:[#allocation2 + $0x428] sm:$0xff]
    %v240 = vld [vmem:[#allocation2 + $0x430] sm:$0xff]
    %v241 = vld [vmem:[#allocation2 + $0x438] sm:$0xff]
    %v242 = vld [vmem:[#allocation2 + $0x440] sm:$0xff]
    %v243 = vld [vmem:[#allocation2 + $0x448] sm:$0xff]
    %v244 = vld [vmem:[#allocation2 + $0x450] sm:$0xff]
    %v245 = vld [vmem:[#allocation2 + $0x458] sm:$0xff]
    %v246 = vld [vmem:[#allocation2 + $0x460] sm:$0xff]
    %v247 = vld [vmem:[#allocation2 + $0x468] sm:$0xff]
    %v248 = vld [vmem:[#allocation2 + $0x470] sm:$0xff]
    %v249 = vld [vmem:[#allocation2 + $0x478] sm:$0xff]
    %v250 = vld [vmem:[#allocation2 + $0x480] sm:$0xff]
    %v251 = vld [vmem:[#allocation2 + $0x488] sm:$0xff]
    %v252 = vld [vmem:[#allocation2 + $0x490] sm:$0xff]
    %v253 = vld [vmem:[#allocation2 + $0x498] sm:$0xff]
    %v254 = vld [vmem:[#allocation2 + $0x4a0] sm:$0xff]
    %v255 = vld [vmem:[#allocation2 + $0x4a8] sm:$0xff]
    %v256 = vld [vmem:[#allocation2 + $0x4b0] sm:$0xff]
    %v257 = vld [vmem:[#allocation2 + $0x4b8] sm:$0xff]
    %v258 = vld [vmem:[#allocation2 + $0x4c0] sm:$0xff]
    %v259 = vld [vmem:[#allocation2 + $0x4c8] sm:$0xff]
    %v260 = vld [vmem:[#allocation2 + $0x4d0] sm:$0xff]
    %v261 = vld [vmem:[#allocation2 + $0x4d8] sm:$0xff]
    %v262 = vld [vmem:[#allocation2 + $0x4e0] sm:$0xff]
    %v263 = vld [vmem:[#allocation2 + $0x4e8] sm:$0xff]
    %v264 = vld [vmem:[#allocation2 + $0x4f0] sm:$0xff]
    %v265 = vld [vmem:[#allocation2 + $0x4f8] sm:$0xff]
    %v266 = vld [vmem:[#allocation2 + $0x500] sm:$0xff]
    %v267 = vld [vmem:[#allocation2 + $0x508] sm:$0xff]
    %v268 = vld [vmem:[#allocation2 + $0x510] sm:$0xff]
    %v269 = vld [vmem:[#allocation2 + $0x518] sm:$0xff]
    %v270 = vld [vmem:[#allocation2 + $0x520] sm:$0xff]
    %v271 = vld [vmem:[#allocation2 + $0x528] sm:$0xff]
    %v272 = vld [vmem:[#allocation2 + $0x530] sm:$0xff]
    %v273 = vld [vmem:[#allocation2 + $0x538] sm:$0xff]
    %v274 = vld [vmem:[#allocation2 + $0x540] sm:$0xff]
    %v275 = vld [vmem:[#allocation2 + $0x548] sm:$0xff]
    %v276 = vld [vmem:[#allocation2 + $0x550] sm:$0xff]
    %v277 = vld [vmem:[#allocation2 + $0x558] sm:$0xff]
    %v278 = vld [vmem:[#allocation2 + $0x560] sm:$0xff]
    %v279 = vld [vmem:[#allocation2 + $0x568] sm:$0xff]
    %v280 = vld [vmem:[#allocation2 + $0x570] sm:$0xff]
    %v281 = vld [vmem:[#allocation2 + $0x578] sm:$0xff]
    %v282 = vld [vmem:[#allocation2 + $0x580] sm:$0xff]
    %v283 = vld [vmem:[#allocation2 + $0x588] sm:$0xff]
    %v284 = vld [vmem:[#allocation2 + $0x590] sm:$0xff]
    %v285 = vld [vmem:[#allocation2 + $0x598] sm:$0xff]
    %v286 = vld [vmem:[#allocation2 + $0x5a0] sm:$0xff]
    %v287 = vld [vmem:[#allocation2 + $0x5a8] sm:$0xff]
    %v288 = vld [vmem:[#allocation2 + $0x5b0] sm:$0xff]
    %v289 = vld [vmem:[#allocation2 + $0x5b8] sm:$0xff]
    %v290 = vld [vmem:[#allocation2 + $0x5c0] sm:$0xff]
    %v291 = vld [vmem:[#allocation2 + $0x5c8] sm:$0xff]
    %v292 = vld [vmem:[#allocation2 + $0x5d0] sm:$0xff]
    %v293 = vld [vmem:[#allocation2 + $0x5d8] sm:$0xff]
    %v294 = vld [vmem:[#allocation2 + $0x5e0] sm:$0xff]
    %v295 = vld [vmem:[#allocation2 + $0x5e8] sm:$0xff]
    %v296 = vld [vmem:[#allocation2 + $0x5f0] sm:$0xff]
    %v297 = vld [vmem:[#allocation2 + $0x5f8] sm:$0xff]
    %v298 = vld [vmem:[#allocation2 + $0x600] sm:$0xff]
    %v299 = vld [vmem:[#allocation2 + $0x608] sm:$0xff]
    %v300 = vld [vmem:[#allocation2 + $0x610] sm:$0xff]
    %v301 = vld [vmem:[#allocation2 + $0x618] sm:$0xff]
    %v302 = vld [vmem:[#allocation2 + $0x620] sm:$0xff]
    %v303 = vld [vmem:[#allocation2 + $0x628] sm:$0xff]
    %v304 = vld [vmem:[#allocation2 + $0x630] sm:$0xff]
    %v305 = vld [vmem:[#allocation2 + $0x638] sm:$0xff]
    %v306 = vld [vmem:[#allocation2 + $0x640] sm:$0xff]
    %v307 = vld [vmem:[#allocation2 + $0x648] sm:$0xff]
    %v308 = vld [vmem:[#allocation2 + $0x650] sm:$0xff]
    %v309 = vld [vmem:[#allocation2 + $0x658] sm:$0xff]
    %v310 = vld [vmem:[#allocation2 + $0x660] sm:$0xff]
    %v311 = vld [vmem:[#allocation2 + $0x668] sm:$0xff]
    %v312 = vld [vmem:[#allocation2 + $0x670] sm:$0xff]
    %v313 = vld [vmem:[#allocation2 + $0x678] sm:$0xff]
    %v314 = vld [vmem:[#allocation2 + $0x680] sm:$0xff]
    %v315 = vld [vmem:[#allocation2 + $0x688] sm:$0xff]
    %v316 = vld [vmem:[#allocation2 + $0x690] sm:$0xff]
    %v317 = vld [vmem:[#allocation2 + $0x698] sm:$0xff]
    %v318 = vld [vmem:[#allocation2 + $0x6a0] sm:$0xff]
    %v319 = vld [vmem:[#allocation2 + $0x6a8] sm:$0xff]
    %v320 = vld [vmem:[#allocation2 + $0x6b0] sm:$0xff]
    %v321 = vld [vmem:[#allocation2 + $0x6b8] sm:$0xff]
    %v322 = vld [vmem:[#allocation2 + $0x6c0] sm:$0xff]
    %v323 = vld [vmem:[#allocation2 + $0x6c8] sm:$0xff]
    %v324 = vld [vmem:[#allocation2 + $0x6d0] sm:$0xff]
    %v325 = vld [vmem:[#allocation2 + $0x6d8] sm:$0xff]
    %v326 = vld [vmem:[#allocation2 + $0x6e0] sm:$0xff]
    %v327 = vld [vmem:[#allocation2 + $0x6e8] sm:$0xff]
    %v328 = vld [vmem:[#allocation2 + $0x6f0] sm:$0xff]
    %v329 = vld [vmem:[#allocation2 + $0x6f8] sm:$0xff]
    %v330 = vld [vmem:[#allocation2 + $0x700] sm:$0xff]
    %v331 = vld [vmem:[#allocation2 + $0x708] sm:$0xff]
    %v332 = vld [vmem:[#allocation2 + $0x710] sm:$0xff]
    %v333 = vld [vmem:[#allocation2 + $0x718] sm:$0xff]
    %v334 = vld [vmem:[#allocation2 + $0x720] sm:$0xff]
    %v335 = vld [vmem:[#allocation2 + $0x728] sm:$0xff]
    %v336 = vld [vmem:[#allocation2 + $0x730] sm:$0xff]
    %v337 = vld [vmem:[#allocation2 + $0x738] sm:$0xff]
    %v338 = vld [vmem:[#allocation2 + $0x740] sm:$0xff]
    %v339 = vld [vmem:[#allocation2 + $0x748] sm:$0xff]
    %v340 = vld [vmem:[#allocation2 + $0x750] sm:$0xff]
    %v341 = vld [vmem:[#allocation2 + $0x758] sm:$0xff]
    %v342 = vld [vmem:[#allocation2 + $0x760] sm:$0xff]
    %v343 = vld [vmem:[#allocation2 + $0x768] sm:$0xff]
    %v344 = vld [vmem:[#allocation2 + $0x770] sm:$0xff]
    %v345 = vld [vmem:[#allocation2 + $0x778] sm:$0xff]
    %v346 = vld [vmem:[#allocation2 + $0x780] sm:$0xff]
    %v347 = vld [vmem:[#allocation2 + $0x788] sm:$0xff]
    %v348 = vld [vmem:[#allocation2 + $0x790] sm:$0xff]
    %v349 = vld [vmem:[#allocation2 + $0x798] sm:$0xff]
    %v350 = vld [vmem:[#allocation2 + $0x7a0] sm:$0xff]
    %v351 = vld [vmem:[#allocation2 + $0x7a8] sm:$0xff]
    %v352 = vld [vmem:[#allocation2 + $0x7b0] sm:$0xff]
    %v353 = vld [vmem:[#allocation2 + $0x7b8] sm:$0xff]
    %v354 = vld [vmem:[#allocation2 + $0x7c0] sm:$0xff]
    %v355 = vld [vmem:[#allocation2 + $0x7c8] sm:$0xff]
    %v356 = vld [vmem:[#allocation2 + $0x7d0] sm:$0xff]
    %v357 = vld [vmem:[#allocation2 + $0x7d8] sm:$0xff]
    %v358 = vld [vmem:[#allocation2 + $0x7e0] sm:$0xff]
    %v359 = vld [vmem:[#allocation2 + $0x7e8] sm:$0xff]
    %v360 = vld [vmem:[#allocation2 + $0x7f0] sm:$0xff]
    %v361 = vld [vmem:[#allocation2 + $0x7f8] sm:$0xff]
    %v362 = vld [vmem:[#allocation2 + $0x800] sm:$0xff]
    %v363 = vld [vmem:[#allocation2 + $0x808] sm:$0xff]
    %v364 = vld [vmem:[#allocation2 + $0x810] sm:$0xff]
    %v365 = vld [vmem:[#allocation2 + $0x818] sm:$0xff]
    %v366 = vld [vmem:[#allocation2 + $0x820] sm:$0xff]
    %v367 = vld [vmem:[#allocation2 + $0x828] sm:$0xff]
    %v368 = vld [vmem:[#allocation2 + $0x830] sm:$0xff]
    %v369 = vld [vmem:[#allocation2 + $0x838] sm:$0xff]
    %v370 = vld [vmem:[#allocation2 + $0x840] sm:$0xff]
    %v371 = vld [vmem:[#allocation2 + $0x848] sm:$0xff]
    %v372 = vld [vmem:[#allocation2 + $0x850] sm:$0xff]
    %v373 = vld [vmem:[#allocation2 + $0x858] sm:$0xff]
    %v374 = vld [vmem:[#allocation2 + $0x860] sm:$0xff]
    %v375 = vld [vmem:[#allocation2 + $0x868] sm:$0xff]
    %v376 = vld [vmem:[#allocation2 + $0x870] sm:$0xff]
    %v377 = vld [vmem:[#allocation2 + $0x878] sm:$0xff]
    %v378 = vld [vmem:[#allocation2 + $0x880] sm:$0xff]
    %v379 = vld [vmem:[#allocation2 + $0x888] sm:$0xff]
    %v380 = vld [vmem:[#allocation2 + $0x890] sm:$0xff]
    %v381 = vld [vmem:[#allocation2 + $0x898] sm:$0xff]
    %v382 = vld [vmem:[#allocation2 + $0x8a0] sm:$0xff]
    %v383 = vld [vmem:[#allocation2 + $0x8a8] sm:$0xff]
    %v384 = vld [vmem:[#allocation2 + $0x8b0] sm:$0xff]
    %v385 = vld [vmem:[#allocation2 + $0x8b8] sm:$0xff]
    %v386 = vld [vmem:[#allocation2 + $0x8c0] sm:$0xff]
    %v387 = vld [vmem:[#allocation2 + $0x8c8] sm:$0xff]
    %v388 = vld [vmem:[#allocation2 + $0x8d0] sm:$0xff]
    %v389 = vld [vmem:[#allocation2 + $0x8d8] sm:$0xff]
    %v390 = vld [vmem:[#allocation2 + $0x8e0] sm:$0xff]
    %v391 = vld [vmem:[#allocation2 + $0x8e8] sm:$0xff]
    %v392 = vld [vmem:[#allocation2 + $0x8f0] sm:$0xff]
    %v393 = vld [vmem:[#allocation2 + $0x8f8] sm:$0xff]
    %v394 = vperm.slane %v93, 4
    %v395 = vperm.slane %v94, 4
    %v396 = vperm.slane %v95, 4
    %v397 = vperm.slane %v96, 4
    %v398 = vperm.slane %v97, 4
    %v399 = vperm.slane %v98, 4
    %v406 = vunpack.c.l.b16 %v100
    %v407 = vunpack.c.h.b16 %v100
    %v408 = vunpack.c.l.b16 %v101
    %v409 = vunpack.c.h.b16 %v101
    %v410 = vunpack.c.l.b16 %v102
    %v411 = vunpack.c.h.b16 %v102
    %v412 = vunpack.c.l.b16 %v103
    %v413 = vunpack.c.h.b16 %v103
    %v414 = vunpack.c.l.b16 %v104
    %v415 = vunpack.c.h.b16 %v104
    %v416 = vunpack.c.l.b16 %v105
    %v417 = vunpack.c.h.b16 %v105
    %v418 = vpack.c.b16 %v412, %v406
    %v419 = vpack.c.b16 %v413, %v407
    %v420 = vpack.c.b16 %v414, %v408
    %v421 = vpack.c.b16 %v415, %v409
    %v422 = vpack.c.b16 %v416, %v410
    %v423 = vpack.c.b16 %v417, %v411
    %v718 = vunpack.c.l.b16 %v106
    %v719 = vunpack.c.h.b16 %v106
    %v720 = vunpack.c.l.b16 %v107
    %v721 = vunpack.c.h.b16 %v107
    %v722 = vunpack.c.l.b16 %v108
    %v723 = vunpack.c.h.b16 %v108
    %v724 = vunpack.c.l.b16 %v109
    %v725 = vunpack.c.h.b16 %v109
    %v726 = vunpack.c.l.b16 %v110
    %v727 = vunpack.c.h.b16 %v110
    %v728 = vunpack.c.l.b16 %v111
    %v729 = vunpack.c.h.b16 %v111
    %v730 = vunpack.c.l.b16 %v112
    %v731 = vunpack.c.h.b16 %v112
    %v732 = vunpack.c.l.b16 %v113
    %v733 = vunpack.c.h.b16 %v113
    %v734 = vunpack.c.l.b16 %v114
    %v735 = vunpack.c.h.b16 %v114
    %v736 = vunpack.c.l.b16 %v115
    %v737 = vunpack.c.h.b16 %v115
    %v738 = vunpack.c.l.b16 %v116
    %v739 = vunpack.c.h.b16 %v116
    %v740 = vunpack.c.l.b16 %v117
    %v741 = vunpack.c.h.b16 %v117
    %v742 = vunpack.c.l.b16 %v118
    %v743 = vunpack.c.h.b16 %v118
    %v744 = vunpack.c.l.b16 %v119
    %v745 = vunpack.c.h.b16 %v119
    %v746 = vunpack.c.l.b16 %v120
    %v747 = vunpack.c.h.b16 %v120
    %v748 = vunpack.c.l.b16 %v121
    %v749 = vunpack.c.h.b16 %v121
    %v750 = vunpack.c.l.b16 %v122
    %v751 = vunpack.c.h.b16 %v122
    %v752 = vunpack.c.l.b16 %v123
    %v753 = vunpack.c.h.b16 %v123
    %v754 = vunpack.c.l.b16 %v124
    %v755 = vunpack.c.h.b16 %v124
    %v756 = vunpack.c.l.b16 %v125
    %v757 = vunpack.c.h.b16 %v125
    %v758 = vunpack.c.l.b16 %v126
    %v759 = vunpack.c.h.b16 %v126
    %v760 = vunpack.c.l.b16 %v127
    %v761 = vunpack.c.h.b16 %v127
    %v762 = vunpack.c.l.b16 %v128
    %v763 = vunpack.c.h.b16 %v128
    %v764 = vunpack.c.l.b16 %v129
    %v765 = vunpack.c.h.b16 %v129
    %v766 = vunpack.c.l.b16 %v130
    %v767 = vunpack.c.h.b16 %v130
    %v768 = vunpack.c.l.b16 %v131
    %v769 = vunpack.c.h.b16 %v131
    %v770 = vunpack.c.l.b16 %v132
    %v771 = vunpack.c.h.b16 %v132
    %v772 = vunpack.c.l.b16 %v133
    %v773 = vunpack.c.h.b16 %v133
    %v774 = vunpack.c.l.b16 %v134
    %v775 = vunpack.c.h.b16 %v134
    %v776 = vunpack.c.l.b16 %v135
    %v777 = vunpack.c.h.b16 %v135
    %v778 = vunpack.c.l.b16 %v136
    %v779 = vunpack.c.h.b16 %v136
    %v780 = vunpack.c.l.b16 %v137
    %v781 = vunpack.c.h.b16 %v137
    %v782 = vunpack.c.l.b16 %v138
    %v783 = vunpack.c.h.b16 %v138
    %v784 = vunpack.c.l.b16 %v139
    %v785 = vunpack.c.h.b16 %v139
    %v786 = vunpack.c.l.b16 %v140
    %v787 = vunpack.c.h.b16 %v140
    %v788 = vunpack.c.l.b16 %v141
    %v789 = vunpack.c.h.b16 %v141
    %v790 = vunpack.c.l.b16 %v142
    %v791 = vunpack.c.h.b16 %v142
    %v792 = vunpack.c.l.b16 %v143
    %v793 = vunpack.c.h.b16 %v143
    %v794 = vunpack.c.l.b16 %v144
    %v795 = vunpack.c.h.b16 %v144
    %v796 = vunpack.c.l.b16 %v145
    %v797 = vunpack.c.h.b16 %v145
    %v798 = vunpack.c.l.b16 %v146
    %v799 = vunpack.c.h.b16 %v146
    %v800 = vunpack.c.l.b16 %v147
    %v801 = vunpack.c.h.b16 %v147
    %v802 = vunpack.c.l.b16 %v148
    %v803 = vunpack.c.h.b16 %v148
    %v804 = vunpack.c.l.b16 %v149
    %v805 = vunpack.c.h.b16 %v149
    %v806 = vunpack.c.l.b16 %v150
    %v807 = vunpack.c.h.b16 %v150
    %v808 = vunpack.c.l.b16 %v151
    %v809 = vunpack.c.h.b16 %v151
    %v810 = vunpack.c.l.b16 %v152
    %v811 = vunpack.c.h.b16 %v152
    %v812 = vunpack.c.l.b16 %v153
    %v813 = vunpack.c.h.b16 %v153
    %v814 = vunpack.c.l.b16 %v154
    %v815 = vunpack.c.h.b16 %v154
    %v816 = vunpack.c.l.b16 %v155
    %v817 = vunpack.c.h.b16 %v155
    %v818 = vunpack.c.l.b16 %v156
    %v819 = vunpack.c.h.b16 %v156
    %v820 = vunpack.c.l.b16 %v157
    %v821 = vunpack.c.h.b16 %v157
    %v822 = vunpack.c.l.b16 %v158
    %v823 = vunpack.c.h.b16 %v158
    %v824 = vunpack.c.l.b16 %v159
    %v825 = vunpack.c.h.b16 %v159
    %v826 = vunpack.c.l.b16 %v160
    %v827 = vunpack.c.h.b16 %v160
    %v828 = vunpack.c.l.b16 %v161
    %v829 = vunpack.c.h.b16 %v161
    %v830 = vunpack.c.l.b16 %v162
    %v831 = vunpack.c.h.b16 %v162
    %v832 = vunpack.c.l.b16 %v163
    %v833 = vunpack.c.h.b16 %v163
    %v834 = vunpack.c.l.b16 %v164
    %v835 = vunpack.c.h.b16 %v164
    %v836 = vunpack.c.l.b16 %v165
    %v837 = vunpack.c.h.b16 %v165
    %v838 = vunpack.c.l.b16 %v166
    %v839 = vunpack.c.h.b16 %v166
    %v840 = vunpack.c.l.b16 %v167
    %v841 = vunpack.c.h.b16 %v167
    %v842 = vunpack.c.l.b16 %v168
    %v843 = vunpack.c.h.b16 %v168
    %v844 = vunpack.c.l.b16 %v169
    %v845 = vunpack.c.h.b16 %v169
    %v846 = vunpack.c.l.b16 %v170
    %v847 = vunpack.c.h.b16 %v170
    %v848 = vunpack.c.l.b16 %v171
    %v849 = vunpack.c.h.b16 %v171
    %v850 = vunpack.c.l.b16 %v172
    %v851 = vunpack.c.h.b16 %v172
    %v852 = vunpack.c.l.b16 %v173
    %v853 = vunpack.c.h.b16 %v173
    %v854 = vunpack.c.l.b16 %v174
    %v855 = vunpack.c.h.b16 %v174
    %v856 = vunpack.c.l.b16 %v175
    %v857 = vunpack.c.h.b16 %v175
    %v858 = vunpack.c.l.b16 %v176
    %v859 = vunpack.c.h.b16 %v176
    %v860 = vunpack.c.l.b16 %v177
    %v861 = vunpack.c.h.b16 %v177
    %v862 = vunpack.c.l.b16 %v178
    %v863 = vunpack.c.h.b16 %v178
    %v864 = vunpack.c.l.b16 %v179
    %v865 = vunpack.c.h.b16 %v179
    %v866 = vunpack.c.l.b16 %v180
    %v867 = vunpack.c.h.b16 %v180
    %v868 = vunpack.c.l.b16 %v181
    %v869 = vunpack.c.h.b16 %v181
    %v870 = vunpack.c.l.b16 %v182
    %v871 = vunpack.c.h.b16 %v182
    %v872 = vunpack.c.l.b16 %v183
    %v873 = vunpack.c.h.b16 %v183
    %v874 = vunpack.c.l.b16 %v184
    %v875 = vunpack.c.h.b16 %v184
    %v876 = vunpack.c.l.b16 %v185
    %v877 = vunpack.c.h.b16 %v185
    %v878 = vunpack.c.l.b16 %v186
    %v879 = vunpack.c.h.b16 %v186
    %v880 = vunpack.c.l.b16 %v187
    %v881 = vunpack.c.h.b16 %v187
    %v882 = vunpack.c.l.b16 %v188
    %v883 = vunpack.c.h.b16 %v188
    %v884 = vunpack.c.l.b16 %v189
    %v885 = vunpack.c.h.b16 %v189
    %v886 = vunpack.c.l.b16 %v190
    %v887 = vunpack.c.h.b16 %v190
    %v888 = vunpack.c.l.b16 %v191
    %v889 = vunpack.c.h.b16 %v191
    %v890 = vunpack.c.l.b16 %v192
    %v891 = vunpack.c.h.b16 %v192
    %v892 = vunpack.c.l.b16 %v193
    %v893 = vunpack.c.h.b16 %v193
    %v894 = vunpack.c.l.b16 %v194
    %v895 = vunpack.c.h.b16 %v194
    %v896 = vunpack.c.l.b16 %v195
    %v897 = vunpack.c.h.b16 %v195
    %v898 = vunpack.c.l.b16 %v196
    %v899 = vunpack.c.h.b16 %v196
    %v900 = vunpack.c.l.b16 %v197
    %v901 = vunpack.c.h.b16 %v197
    %v902 = vunpack.c.l.b16 %v198
    %v903 = vunpack.c.h.b16 %v198
    %v904 = vunpack.c.l.b16 %v199
    %v905 = vunpack.c.h.b16 %v199
    %v906 = vunpack.c.l.b16 %v200
    %v907 = vunpack.c.h.b16 %v200
    %v908 = vunpack.c.l.b16 %v201
    %v909 = vunpack.c.h.b16 %v201
    %v910 = vunpack.c.l.b16 %v202
    %v911 = vunpack.c.h.b16 %v202
    %v912 = vunpack.c.l.b16 %v203
    %v913 = vunpack.c.h.b16 %v203
    %v914 = vunpack.c.l.b16 %v204
    %v915 = vunpack.c.h.b16 %v204
    %v916 = vunpack.c.l.b16 %v205
    %v917 = vunpack.c.h.b16 %v205
    %v918 = vunpack.c.l.b16 %v206
    %v919 = vunpack.c.h.b16 %v206
    %v920 = vunpack.c.l.b16 %v207
    %v921 = vunpack.c.h.b16 %v207
    %v922 = vunpack.c.l.b16 %v208
    %v923 = vunpack.c.h.b16 %v208
    %v924 = vunpack.c.l.b16 %v209
    %v925 = vunpack.c.h.b16 %v209
    %v926 = vunpack.c.l.b16 %v210
    %v927 = vunpack.c.h.b16 %v210
    %v928 = vunpack.c.l.b16 %v211
    %v929 = vunpack.c.h.b16 %v211
    %v930 = vunpack.c.l.b16 %v212
    %v931 = vunpack.c.h.b16 %v212
    %v932 = vunpack.c.l.b16 %v213
    %v933 = vunpack.c.h.b16 %v213
    %v934 = vunpack.c.l.b16 %v214
    %v935 = vunpack.c.h.b16 %v214
    %v936 = vunpack.c.l.b16 %v215
    %v937 = vunpack.c.h.b16 %v215
    %v938 = vunpack.c.l.b16 %v216
    %v939 = vunpack.c.h.b16 %v216
    %v940 = vunpack.c.l.b16 %v217
    %v941 = vunpack.c.h.b16 %v217
    %v942 = vunpack.c.l.b16 %v218
    %v943 = vunpack.c.h.b16 %v218
    %v944 = vunpack.c.l.b16 %v219
    %v945 = vunpack.c.h.b16 %v219
    %v946 = vunpack.c.l.b16 %v220
    %v947 = vunpack.c.h.b16 %v220
    %v948 = vunpack.c.l.b16 %v221
    %v949 = vunpack.c.h.b16 %v221
    %v950 = vunpack.c.l.b16 %v222
    %v951 = vunpack.c.h.b16 %v222
    %v952 = vunpack.c.l.b16 %v223
    %v953 = vunpack.c.h.b16 %v223
    %v954 = vunpack.c.l.b16 %v224
    %v955 = vunpack.c.h.b16 %v224
    %v956 = vunpack.c.l.b16 %v225
    %v957 = vunpack.c.h.b16 %v225
    %v958 = vunpack.c.l.b16 %v226
    %v959 = vunpack.c.h.b16 %v226
    %v960 = vunpack.c.l.b16 %v227
    %v961 = vunpack.c.h.b16 %v227
    %v962 = vunpack.c.l.b16 %v228
    %v963 = vunpack.c.h.b16 %v228
    %v964 = vunpack.c.l.b16 %v229
    %v965 = vunpack.c.h.b16 %v229
    %v966 = vunpack.c.l.b16 %v230
    %v967 = vunpack.c.h.b16 %v230
    %v968 = vunpack.c.l.b16 %v231
    %v969 = vunpack.c.h.b16 %v231
    %v970 = vunpack.c.l.b16 %v232
    %v971 = vunpack.c.h.b16 %v232
    %v972 = vunpack.c.l.b16 %v233
    %v973 = vunpack.c.h.b16 %v233
    %v974 = vunpack.c.l.b16 %v234
    %v975 = vunpack.c.h.b16 %v234
    %v976 = vunpack.c.l.b16 %v235
    %v977 = vunpack.c.h.b16 %v235
    %v978 = vunpack.c.l.b16 %v236
    %v979 = vunpack.c.h.b16 %v236
    %v980 = vunpack.c.l.b16 %v237
    %v981 = vunpack.c.h.b16 %v237
    %v982 = vunpack.c.l.b16 %v238
    %v983 = vunpack.c.h.b16 %v238
    %v984 = vunpack.c.l.b16 %v239
    %v985 = vunpack.c.h.b16 %v239
    %v986 = vunpack.c.l.b16 %v240
    %v987 = vunpack.c.h.b16 %v240
    %v988 = vunpack.c.l.b16 %v241
    %v989 = vunpack.c.h.b16 %v241
    %v990 = vunpack.c.l.b16 %v242
    %v991 = vunpack.c.h.b16 %v242
    %v992 = vunpack.c.l.b16 %v243
    %v993 = vunpack.c.h.b16 %v243
    %v994 = vunpack.c.l.b16 %v244
    %v995 = vunpack.c.h.b16 %v244
    %v996 = vunpack.c.l.b16 %v245
    %v997 = vunpack.c.h.b16 %v245
    %v998 = vunpack.c.l.b16 %v246
    %v999 = vunpack.c.h.b16 %v246
    %v1000 = vunpack.c.l.b16 %v247
    %v1001 = vunpack.c.h.b16 %v247
    %v1002 = vunpack.c.l.b16 %v248
    %v1003 = vunpack.c.h.b16 %v248
    %v1004 = vunpack.c.l.b16 %v249
    %v1005 = vunpack.c.h.b16 %v249
    %v1006 = vunpack.c.l.b16 %v250
    %v1007 = vunpack.c.h.b16 %v250
    %v1008 = vunpack.c.l.b16 %v251
    %v1009 = vunpack.c.h.b16 %v251
    %v1010 = vunpack.c.l.b16 %v252
    %v1011 = vunpack.c.h.b16 %v252
    %v1012 = vunpack.c.l.b16 %v253
    %v1013 = vunpack.c.h.b16 %v253
    %v1014 = vunpack.c.l.b16 %v254
    %v1015 = vunpack.c.h.b16 %v254
    %v1016 = vunpack.c.l.b16 %v255
    %v1017 = vunpack.c.h.b16 %v255
    %v1018 = vunpack.c.l.b16 %v256
    %v1019 = vunpack.c.h.b16 %v256
    %v1020 = vunpack.c.l.b16 %v257
    %v1021 = vunpack.c.h.b16 %v257
    %v1022 = vunpack.c.l.b16 %v258
    %v1023 = vunpack.c.h.b16 %v258
    %v1024 = vunpack.c.l.b16 %v259
    %v1025 = vunpack.c.h.b16 %v259
    %v1026 = vunpack.c.l.b16 %v260
    %v1027 = vunpack.c.h.b16 %v260
    %v1028 = vunpack.c.l.b16 %v261
    %v1029 = vunpack.c.h.b16 %v261
    %v1030 = vunpack.c.l.b16 %v262
    %v1031 = vunpack.c.h.b16 %v262
    %v1032 = vunpack.c.l.b16 %v263
    %v1033 = vunpack.c.h.b16 %v263
    %v1034 = vunpack.c.l.b16 %v264
    %v1035 = vunpack.c.h.b16 %v264
    %v1036 = vunpack.c.l.b16 %v265
    %v1037 = vunpack.c.h.b16 %v265
    %v1038 = vunpack.c.l.b16 %v266
    %v1039 = vunpack.c.h.b16 %v266
    %v1040 = vunpack.c.l.b16 %v267
    %v1041 = vunpack.c.h.b16 %v267
    %v1042 = vunpack.c.l.b16 %v268
    %v1043 = vunpack.c.h.b16 %v268
    %v1044 = vunpack.c.l.b16 %v269
    %v1045 = vunpack.c.h.b16 %v269
    %v1046 = vunpack.c.l.b16 %v270
    %v1047 = vunpack.c.h.b16 %v270
    %v1048 = vunpack.c.l.b16 %v271
    %v1049 = vunpack.c.h.b16 %v271
    %v1050 = vunpack.c.l.b16 %v272
    %v1051 = vunpack.c.h.b16 %v272
    %v1052 = vunpack.c.l.b16 %v273
    %v1053 = vunpack.c.h.b16 %v273
    %v1054 = vunpack.c.l.b16 %v274
    %v1055 = vunpack.c.h.b16 %v274
    %v1056 = vunpack.c.l.b16 %v275
    %v1057 = vunpack.c.h.b16 %v275
    %v1058 = vunpack.c.l.b16 %v276
    %v1059 = vunpack.c.h.b16 %v276
    %v1060 = vunpack.c.l.b16 %v277
    %v1061 = vunpack.c.h.b16 %v277
    %v1062 = vunpack.c.l.b16 %v278
    %v1063 = vunpack.c.h.b16 %v278
    %v1064 = vunpack.c.l.b16 %v279
    %v1065 = vunpack.c.h.b16 %v279
    %v1066 = vunpack.c.l.b16 %v280
    %v1067 = vunpack.c.h.b16 %v280
    %v1068 = vunpack.c.l.b16 %v281
    %v1069 = vunpack.c.h.b16 %v281
    %v1070 = vunpack.c.l.b16 %v282
    %v1071 = vunpack.c.h.b16 %v282
    %v1072 = vunpack.c.l.b16 %v283
    %v1073 = vunpack.c.h.b16 %v283
    %v1074 = vunpack.c.l.b16 %v284
    %v1075 = vunpack.c.h.b16 %v284
    %v1076 = vunpack.c.l.b16 %v285
    %v1077 = vunpack.c.h.b16 %v285
    %v1078 = vunpack.c.l.b16 %v286
    %v1079 = vunpack.c.h.b16 %v286
    %v1080 = vunpack.c.l.b16 %v287
    %v1081 = vunpack.c.h.b16 %v287
    %v1082 = vunpack.c.l.b16 %v288
    %v1083 = vunpack.c.h.b16 %v288
    %v1084 = vunpack.c.l.b16 %v289
    %v1085 = vunpack.c.h.b16 %v289
    %v1086 = vunpack.c.l.b16 %v290
    %v1087 = vunpack.c.h.b16 %v290
    %v1088 = vunpack.c.l.b16 %v291
    %v1089 = vunpack.c.h.b16 %v291
    %v1090 = vunpack.c.l.b16 %v292
    %v1091 = vunpack.c.h.b16 %v292
    %v1092 = vunpack.c.l.b16 %v293
    %v1093 = vunpack.c.h.b16 %v293
    %v1094 = vunpack.c.l.b16 %v294
    %v1095 = vunpack.c.h.b16 %v294
    %v1096 = vunpack.c.l.b16 %v295
    %v1097 = vunpack.c.h.b16 %v295
    %v1098 = vunpack.c.l.b16 %v296
    %v1099 = vunpack.c.h.b16 %v296
    %v1100 = vunpack.c.l.b16 %v297
    %v1101 = vunpack.c.h.b16 %v297
    %v1102 = vunpack.c.l.b16 %v298
    %v1103 = vunpack.c.h.b16 %v298
    %v1104 = vunpack.c.l.b16 %v299
    %v1105 = vunpack.c.h.b16 %v299
    %v1106 = vunpack.c.l.b16 %v300
    %v1107 = vunpack.c.h.b16 %v300
    %v1108 = vunpack.c.l.b16 %v301
    %v1109 = vunpack.c.h.b16 %v301
    %v1110 = vunpack.c.l.b16 %v302
    %v1111 = vunpack.c.h.b16 %v302
    %v1112 = vunpack.c.l.b16 %v303
    %v1113 = vunpack.c.h.b16 %v303
    %v1114 = vunpack.c.l.b16 %v304
    %v1115 = vunpack.c.h.b16 %v304
    %v1116 = vunpack.c.l.b16 %v305
    %v1117 = vunpack.c.h.b16 %v305
    %v1118 = vunpack.c.l.b16 %v306
    %v1119 = vunpack.c.h.b16 %v306
    %v1120 = vunpack.c.l.b16 %v307
    %v1121 = vunpack.c.h.b16 %v307
    %v1122 = vunpack.c.l.b16 %v308
    %v1123 = vunpack.c.h.b16 %v308
    %v1124 = vunpack.c.l.b16 %v309
    %v1125 = vunpack.c.h.b16 %v309
    %v1126 = vunpack.c.l.b16 %v310
    %v1127 = vunpack.c.h.b16 %v310
    %v1128 = vunpack.c.l.b16 %v311
    %v1129 = vunpack.c.h.b16 %v311
    %v1130 = vunpack.c.l.b16 %v312
    %v1131 = vunpack.c.h.b16 %v312
    %v1132 = vunpack.c.l.b16 %v313
    %v1133 = vunpack.c.h.b16 %v313
    %v1134 = vunpack.c.l.b16 %v314
    %v1135 = vunpack.c.h.b16 %v314
    %v1136 = vunpack.c.l.b16 %v315
    %v1137 = vunpack.c.h.b16 %v315
    %v1138 = vunpack.c.l.b16 %v316
    %v1139 = vunpack.c.h.b16 %v316
    %v1140 = vunpack.c.l.b16 %v317
    %v1141 = vunpack.c.h.b16 %v317
    %v1142 = vunpack.c.l.b16 %v318
    %v1143 = vunpack.c.h.b16 %v318
    %v1144 = vunpack.c.l.b16 %v319
    %v1145 = vunpack.c.h.b16 %v319
    %v1146 = vunpack.c.l.b16 %v320
    %v1147 = vunpack.c.h.b16 %v320
    %v1148 = vunpack.c.l.b16 %v321
    %v1149 = vunpack.c.h.b16 %v321
    %v1150 = vunpack.c.l.b16 %v322
    %v1151 = vunpack.c.h.b16 %v322
    %v1152 = vunpack.c.l.b16 %v323
    %v1153 = vunpack.c.h.b16 %v323
    %v1154 = vunpack.c.l.b16 %v324
    %v1155 = vunpack.c.h.b16 %v324
    %v1156 = vunpack.c.l.b16 %v325
    %v1157 = vunpack.c.h.b16 %v325
    %v1158 = vunpack.c.l.b16 %v326
    %v1159 = vunpack.c.h.b16 %v326
    %v1160 = vunpack.c.l.b16 %v327
    %v1161 = vunpack.c.h.b16 %v327
    %v1162 = vunpack.c.l.b16 %v328
    %v1163 = vunpack.c.h.b16 %v328
    %v1164 = vunpack.c.l.b16 %v329
    %v1165 = vunpack.c.h.b16 %v329
    %v1166 = vunpack.c.l.b16 %v330
    %v1167 = vunpack.c.h.b16 %v330
    %v1168 = vunpack.c.l.b16 %v331
    %v1169 = vunpack.c.h.b16 %v331
    %v1170 = vunpack.c.l.b16 %v332
    %v1171 = vunpack.c.h.b16 %v332
    %v1172 = vunpack.c.l.b16 %v333
    %v1173 = vunpack.c.h.b16 %v333
    %v1174 = vunpack.c.l.b16 %v334
    %v1175 = vunpack.c.h.b16 %v334
    %v1176 = vunpack.c.l.b16 %v335
    %v1177 = vunpack.c.h.b16 %v335
    %v1178 = vunpack.c.l.b16 %v336
    %v1179 = vunpack.c.h.b16 %v336
    %v1180 = vunpack.c.l.b16 %v337
    %v1181 = vunpack.c.h.b16 %v337
    %v1182 = vunpack.c.l.b16 %v338
    %v1183 = vunpack.c.h.b16 %v338
    %v1184 = vunpack.c.l.b16 %v339
    %v1185 = vunpack.c.h.b16 %v339
    %v1186 = vunpack.c.l.b16 %v340
    %v1187 = vunpack.c.h.b16 %v340
    %v1188 = vunpack.c.l.b16 %v341
    %v1189 = vunpack.c.h.b16 %v341
    %v1190 = vunpack.c.l.b16 %v342
    %v1191 = vunpack.c.h.b16 %v342
    %v1192 = vunpack.c.l.b16 %v343
    %v1193 = vunpack.c.h.b16 %v343
    %v1194 = vunpack.c.l.b16 %v344
    %v1195 = vunpack.c.h.b16 %v344
    %v1196 = vunpack.c.l.b16 %v345
    %v1197 = vunpack.c.h.b16 %v345
    %v1198 = vunpack.c.l.b16 %v346
    %v1199 = vunpack.c.h.b16 %v346
    %v1200 = vunpack.c.l.b16 %v347
    %v1201 = vunpack.c.h.b16 %v347
    %v1202 = vunpack.c.l.b16 %v348
    %v1203 = vunpack.c.h.b16 %v348
    %v1204 = vunpack.c.l.b16 %v349
    %v1205 = vunpack.c.h.b16 %v349
    %v1206 = vunpack.c.l.b16 %v350
    %v1207 = vunpack.c.h.b16 %v350
    %v1208 = vunpack.c.l.b16 %v351
    %v1209 = vunpack.c.h.b16 %v351
    %v1210 = vunpack.c.l.b16 %v352
    %v1211 = vunpack.c.h.b16 %v352
    %v1212 = vunpack.c.l.b16 %v353
    %v1213 = vunpack.c.h.b16 %v353
    %v1214 = vunpack.c.l.b16 %v354
    %v1215 = vunpack.c.h.b16 %v354
    %v1216 = vunpack.c.l.b16 %v355
    %v1217 = vunpack.c.h.b16 %v355
    %v1218 = vunpack.c.l.b16 %v356
    %v1219 = vunpack.c.h.b16 %v356
    %v1220 = vunpack.c.l.b16 %v357
    %v1221 = vunpack.c.h.b16 %v357
    %v1222 = vunpack.c.l.b16 %v358
    %v1223 = vunpack.c.h.b16 %v358
    %v1224 = vunpack.c.l.b16 %v359
    %v1225 = vunpack.c.h.b16 %v359
    %v1226 = vunpack.c.l.b16 %v360
    %v1227 = vunpack.c.h.b16 %v360
    %v1228 = vunpack.c.l.b16 %v361
    %v1229 = vunpack.c.h.b16 %v361
    %v1230 = vunpack.c.l.b16 %v362
    %v1231 = vunpack.c.h.b16 %v362
    %v1232 = vunpack.c.l.b16 %v363
    %v1233 = vunpack.c.h.b16 %v363
    %v1234 = vunpack.c.l.b16 %v364
    %v1235 = vunpack.c.h.b16 %v364
    %v1236 = vunpack.c.l.b16 %v365
    %v1237 = vunpack.c.h.b16 %v365
    %v1238 = vunpack.c.l.b16 %v366
    %v1239 = vunpack.c.h.b16 %v366
    %v1240 = vunpack.c.l.b16 %v367
    %v1241 = vunpack.c.h.b16 %v367
    %v1242 = vunpack.c.l.b16 %v368
    %v1243 = vunpack.c.h.b16 %v368
    %v1244 = vunpack.c.l.b16 %v369
    %v1245 = vunpack.c.h.b16 %v369
    %v1246 = vunpack.c.l.b16 %v370
    %v1247 = vunpack.c.h.b16 %v370
    %v1248 = vunpack.c.l.b16 %v371
    %v1249 = vunpack.c.h.b16 %v371
    %v1250 = vunpack.c.l.b16 %v372
    %v1251 = vunpack.c.h.b16 %v372
    %v1252 = vunpack.c.l.b16 %v373
    %v1253 = vunpack.c.h.b16 %v373
    %v1254 = vunpack.c.l.b16 %v374
    %v1255 = vunpack.c.h.b16 %v374
    %v1256 = vunpack.c.l.b16 %v375
    %v1257 = vunpack.c.h.b16 %v375
    %v1258 = vunpack.c.l.b16 %v376
    %v1259 = vunpack.c.h.b16 %v376
    %v1260 = vunpack.c.l.b16 %v377
    %v1261 = vunpack.c.h.b16 %v377
    %v1262 = vunpack.c.l.b16 %v378
    %v1263 = vunpack.c.h.b16 %v378
    %v1264 = vunpack.c.l.b16 %v379
    %v1265 = vunpack.c.h.b16 %v379
    %v1266 = vunpack.c.l.b16 %v380
    %v1267 = vunpack.c.h.b16 %v380
    %v1268 = vunpack.c.l.b16 %v381
    %v1269 = vunpack.c.h.b16 %v381
    %v1270 = vunpack.c.l.b16 %v382
    %v1271 = vunpack.c.h.b16 %v382
    %v1272 = vunpack.c.l.b16 %v383
    %v1273 = vunpack.c.h.b16 %v383
    %v1274 = vunpack.c.l.b16 %v384
    %v1275 = vunpack.c.h.b16 %v384
    %v1276 = vunpack.c.l.b16 %v385
    %v1277 = vunpack.c.h.b16 %v385
    %v1278 = vunpack.c.l.b16 %v386
    %v1279 = vunpack.c.h.b16 %v386
    %v1280 = vunpack.c.l.b16 %v387
    %v1281 = vunpack.c.h.b16 %v387
    %v1282 = vunpack.c.l.b16 %v388
    %v1283 = vunpack.c.h.b16 %v388
    %v1284 = vunpack.c.l.b16 %v389
    %v1285 = vunpack.c.h.b16 %v389
    %v1286 = vunpack.c.l.b16 %v390
    %v1287 = vunpack.c.h.b16 %v390
    %v1288 = vunpack.c.l.b16 %v391
    %v1289 = vunpack.c.h.b16 %v391
    %v1290 = vunpack.c.l.b16 %v392
    %v1291 = vunpack.c.h.b16 %v392
    %v1292 = vunpack.c.l.b16 %v393
    %v1293 = vunpack.c.h.b16 %v393
    %v1294 = vpack.c.b16 %v724, %v718
    %v1295 = vpack.c.b16 %v725, %v719
    %v1296 = vpack.c.b16 %v726, %v720
    %v1297 = vpack.c.b16 %v727, %v721
    %v1298 = vpack.c.b16 %v728, %v722
    %v1299 = vpack.c.b16 %v729, %v723
    %v1300 = vpack.c.b16 %v736, %v730
    %v1301 = vpack.c.b16 %v737, %v731
    %v1302 = vpack.c.b16 %v738, %v732
    %v1303 = vpack.c.b16 %v739, %v733
    %v1304 = vpack.c.b16 %v740, %v734
    %v1305 = vpack.c.b16 %v741, %v735
    %v1306 = vpack.c.b16 %v748, %v742
    %v1307 = vpack.c.b16 %v749, %v743
    %v1308 = vpack.c.b16 %v750, %v744
    %v1309 = vpack.c.b16 %v751, %v745
    %v1310 = vpack.c.b16 %v752, %v746
    %v1311 = vpack.c.b16 %v753, %v747
    %v1312 = vpack.c.b16 %v760, %v754
    %v1313 = vpack.c.b16 %v761, %v755
    %v1314 = vpack.c.b16 %v762, %v756
    %v1315 = vpack.c.b16 %v763, %v757
    %v1316 = vpack.c.b16 %v764, %v758
    %v1317 = vpack.c.b16 %v765, %v759
    %v1318 = vpack.c.b16 %v772, %v766
    %v1319 = vpack.c.b16 %v773, %v767
    %v1320 = vpack.c.b16 %v774, %v768
    %v1321 = vpack.c.b16 %v775, %v769
    %v1322 = vpack.c.b16 %v776, %v770
    %v1323 = vpack.c.b16 %v777, %v771
    %v1324 = vpack.c.b16 %v784, %v778
    %v1325 = vpack.c.b16 %v785, %v779
    %v1326 = vpack.c.b16 %v786, %v780
    %v1327 = vpack.c.b16 %v787, %v781
    %v1328 = vpack.c.b16 %v788, %v782
    %v1329 = vpack.c.b16 %v789, %v783
    %v1330 = vpack.c.b16 %v796, %v790
    %v1331 = vpack.c.b16 %v797, %v791
    %v1332 = vpack.c.b16 %v798, %v792
    %v1333 = vpack.c.b16 %v799, %v793
    %v1334 = vpack.c.b16 %v800, %v794
    %v1335 = vpack.c.b16 %v801, %v795
    %v1336 = vpack.c.b16 %v808, %v802
    %v1337 = vpack.c.b16 %v809, %v803
    %v1338 = vpack.c.b16 %v810, %v804
    %v1339 = vpack.c.b16 %v811, %v805
    %v1340 = vpack.c.b16 %v812, %v806
    %v1341 = vpack.c.b16 %v813, %v807
    %v1342 = vpack.c.b16 %v820, %v814
    %v1343 = vpack.c.b16 %v821, %v815
    %v1344 = vpack.c.b16 %v822, %v816
    %v1345 = vpack.c.b16 %v823, %v817
    %v1346 = vpack.c.b16 %v824, %v818
    %v1347 = vpack.c.b16 %v825, %v819
    %v1348 = vpack.c.b16 %v832, %v826
    %v1349 = vpack.c.b16 %v833, %v827
    %v1350 = vpack.c.b16 %v834, %v828
    %v1351 = vpack.c.b16 %v835, %v829
    %v1352 = vpack.c.b16 %v836, %v830
    %v1353 = vpack.c.b16 %v837, %v831
    %v1354 = vpack.c.b16 %v844, %v838
    %v1355 = vpack.c.b16 %v845, %v839
    %v1356 = vpack.c.b16 %v846, %v840
    %v1357 = vpack.c.b16 %v847, %v841
    %v1358 = vpack.c.b16 %v848, %v842
    %v1359 = vpack.c.b16 %v849, %v843
    %v1360 = vpack.c.b16 %v856, %v850
    %v1361 = vpack.c.b16 %v857, %v851
    %v1362 = vpack.c.b16 %v858, %v852
    %v1363 = vpack.c.b16 %v859, %v853
    %v1364 = vpack.c.b16 %v860, %v854
    %v1365 = vpack.c.b16 %v861, %v855
    %v1366 = vpack.c.b16 %v868, %v862
    %v1367 = vpack.c.b16 %v869, %v863
    %v1368 = vpack.c.b16 %v870, %v864
    %v1369 = vpack.c.b16 %v871, %v865
    %v1370 = vpack.c.b16 %v872, %v866
    %v1371 = vpack.c.b16 %v873, %v867
    %v1372 = vpack.c.b16 %v880, %v874
    %v1373 = vpack.c.b16 %v881, %v875
    %v1374 = vpack.c.b16 %v882, %v876
    %v1375 = vpack.c.b16 %v883, %v877
    %v1376 = vpack.c.b16 %v884, %v878
    %v1377 = vpack.c.b16 %v885, %v879
    %v1378 = vpack.c.b16 %v892, %v886
    %v1379 = vpack.c.b16 %v893, %v887
    %v1380 = vpack.c.b16 %v894, %v888
    %v1381 = vpack.c.b16 %v895, %v889
    %v1382 = vpack.c.b16 %v896, %v890
    %v1383 = vpack.c.b16 %v897, %v891
    %v1384 = vpack.c.b16 %v904, %v898
    %v1385 = vpack.c.b16 %v905, %v899
    %v1386 = vpack.c.b16 %v906, %v900
    %v1387 = vpack.c.b16 %v907, %v901
    %v1388 = vpack.c.b16 %v908, %v902
    %v1389 = vpack.c.b16 %v909, %v903
    %v1390 = vpack.c.b16 %v916, %v910
    %v1391 = vpack.c.b16 %v917, %v911
    %v1392 = vpack.c.b16 %v918, %v912
    %v1393 = vpack.c.b16 %v919, %v913
    %v1394 = vpack.c.b16 %v920, %v914
    %v1395 = vpack.c.b16 %v921, %v915
    %v1396 = vpack.c.b16 %v928, %v922
    %v1397 = vpack.c.b16 %v929, %v923
    %v1398 = vpack.c.b16 %v930, %v924
    %v1399 = vpack.c.b16 %v931, %v925
    %v1400 = vpack.c.b16 %v932, %v926
    %v1401 = vpack.c.b16 %v933, %v927
    %v1402 = vpack.c.b16 %v940, %v934
    %v1403 = vpack.c.b16 %v941, %v935
    %v1404 = vpack.c.b16 %v942, %v936
    %v1405 = vpack.c.b16 %v943, %v937
    %v1406 = vpack.c.b16 %v944, %v938
    %v1407 = vpack.c.b16 %v945, %v939
    %v1408 = vpack.c.b16 %v952, %v946
    %v1409 = vpack.c.b16 %v953, %v947
    %v1410 = vpack.c.b16 %v954, %v948
    %v1411 = vpack.c.b16 %v955, %v949
    %v1412 = vpack.c.b16 %v956, %v950
    %v1413 = vpack.c.b16 %v957, %v951
    %v1414 = vpack.c.b16 %v964, %v958
    %v1415 = vpack.c.b16 %v965, %v959
    %v1416 = vpack.c.b16 %v966, %v960
    %v1417 = vpack.c.b16 %v967, %v961
    %v1418 = vpack.c.b16 %v968, %v962
    %v1419 = vpack.c.b16 %v969, %v963
    %v1420 = vpack.c.b16 %v976, %v970
    %v1421 = vpack.c.b16 %v977, %v971
    %v1422 = vpack.c.b16 %v978, %v972
    %v1423 = vpack.c.b16 %v979, %v973
    %v1424 = vpack.c.b16 %v980, %v974
    %v1425 = vpack.c.b16 %v981, %v975
    %v1426 = vpack.c.b16 %v988, %v982
    %v1427 = vpack.c.b16 %v989, %v983
    %v1428 = vpack.c.b16 %v990, %v984
    %v1429 = vpack.c.b16 %v991, %v985
    %v1430 = vpack.c.b16 %v992, %v986
    %v1431 = vpack.c.b16 %v993, %v987
    %v1432 = vpack.c.b16 %v1000, %v994
    %v1433 = vpack.c.b16 %v1001, %v995
    %v1434 = vpack.c.b16 %v1002, %v996
    %v1435 = vpack.c.b16 %v1003, %v997
    %v1436 = vpack.c.b16 %v1004, %v998
    %v1437 = vpack.c.b16 %v1005, %v999
    %v1438 = vpack.c.b16 %v1012, %v1006
    %v1439 = vpack.c.b16 %v1013, %v1007
    %v1440 = vpack.c.b16 %v1014, %v1008
    %v1441 = vpack.c.b16 %v1015, %v1009
    %v1442 = vpack.c.b16 %v1016, %v1010
    %v1443 = vpack.c.b16 %v1017, %v1011
    %v1444 = vpack.c.b16 %v1024, %v1018
    %v1445 = vpack.c.b16 %v1025, %v1019
    %v1446 = vpack.c.b16 %v1026, %v1020
    %v1447 = vpack.c.b16 %v1027, %v1021
    %v1448 = vpack.c.b16 %v1028, %v1022
    %v1449 = vpack.c.b16 %v1029, %v1023
    %v1450 = vpack.c.b16 %v1036, %v1030
    %v1451 = vpack.c.b16 %v1037, %v1031
    %v1452 = vpack.c.b16 %v1038, %v1032
    %v1453 = vpack.c.b16 %v1039, %v1033
    %v1454 = vpack.c.b16 %v1040, %v1034
    %v1455 = vpack.c.b16 %v1041, %v1035
    %v1456 = vpack.c.b16 %v1048, %v1042
    %v1457 = vpack.c.b16 %v1049, %v1043
    %v1458 = vpack.c.b16 %v1050, %v1044
    %v1459 = vpack.c.b16 %v1051, %v1045
    %v1460 = vpack.c.b16 %v1052, %v1046
    %v1461 = vpack.c.b16 %v1053, %v1047
    %v1462 = vpack.c.b16 %v1060, %v1054
    %v1463 = vpack.c.b16 %v1061, %v1055
    %v1464 = vpack.c.b16 %v1062, %v1056
    %v1465 = vpack.c.b16 %v1063, %v1057
    %v1466 = vpack.c.b16 %v1064, %v1058
    %v1467 = vpack.c.b16 %v1065, %v1059
    %v1468 = vpack.c.b16 %v1072, %v1066
    %v1469 = vpack.c.b16 %v1073, %v1067
    %v1470 = vpack.c.b16 %v1074, %v1068
    %v1471 = vpack.c.b16 %v1075, %v1069
    %v1472 = vpack.c.b16 %v1076, %v1070
    %v1473 = vpack.c.b16 %v1077, %v1071
    %v1474 = vpack.c.b16 %v1084, %v1078
    %v1475 = vpack.c.b16 %v1085, %v1079
    %v1476 = vpack.c.b16 %v1086, %v1080
    %v1477 = vpack.c.b16 %v1087, %v1081
    %v1478 = vpack.c.b16 %v1088, %v1082
    %v1479 = vpack.c.b16 %v1089, %v1083
    %v1480 = vpack.c.b16 %v1096, %v1090
    %v1481 = vpack.c.b16 %v1097, %v1091
    %v1482 = vpack.c.b16 %v1098, %v1092
    %v1483 = vpack.c.b16 %v1099, %v1093
    %v1484 = vpack.c.b16 %v1100, %v1094
    %v1485 = vpack.c.b16 %v1101, %v1095
    %v1486 = vpack.c.b16 %v1108, %v1102
    %v1487 = vpack.c.b16 %v1109, %v1103
    %v1488 = vpack.c.b16 %v1110, %v1104
    %v1489 = vpack.c.b16 %v1111, %v1105
    %v1490 = vpack.c.b16 %v1112, %v1106
    %v1491 = vpack.c.b16 %v1113, %v1107
    %v1492 = vpack.c.b16 %v1120, %v1114
    %v1493 = vpack.c.b16 %v1121, %v1115
    %v1494 = vpack.c.b16 %v1122, %v1116
    %v1495 = vpack.c.b16 %v1123, %v1117
    %v1496 = vpack.c.b16 %v1124, %v1118
    %v1497 = vpack.c.b16 %v1125, %v1119
    %v1498 = vpack.c.b16 %v1132, %v1126
    %v1499 = vpack.c.b16 %v1133, %v1127
    %v1500 = vpack.c.b16 %v1134, %v1128
    %v1501 = vpack.c.b16 %v1135, %v1129
    %v1502 = vpack.c.b16 %v1136, %v1130
    %v1503 = vpack.c.b16 %v1137, %v1131
    %v1504 = vpack.c.b16 %v1144, %v1138
    %v1505 = vpack.c.b16 %v1145, %v1139
    %v1506 = vpack.c.b16 %v1146, %v1140
    %v1507 = vpack.c.b16 %v1147, %v1141
    %v1508 = vpack.c.b16 %v1148, %v1142
    %v1509 = vpack.c.b16 %v1149, %v1143
    %v1510 = vpack.c.b16 %v1156, %v1150
    %v1511 = vpack.c.b16 %v1157, %v1151
    %v1512 = vpack.c.b16 %v1158, %v1152
    %v1513 = vpack.c.b16 %v1159, %v1153
    %v1514 = vpack.c.b16 %v1160, %v1154
    %v1515 = vpack.c.b16 %v1161, %v1155
    %v1516 = vpack.c.b16 %v1168, %v1162
    %v1517 = vpack.c.b16 %v1169, %v1163
    %v1518 = vpack.c.b16 %v1170, %v1164
    %v1519 = vpack.c.b16 %v1171, %v1165
    %v1520 = vpack.c.b16 %v1172, %v1166
    %v1521 = vpack.c.b16 %v1173, %v1167
    %v1522 = vpack.c.b16 %v1180, %v1174
    %v1523 = vpack.c.b16 %v1181, %v1175
    %v1524 = vpack.c.b16 %v1182, %v1176
    %v1525 = vpack.c.b16 %v1183, %v1177
    %v1526 = vpack.c.b16 %v1184, %v1178
    %v1527 = vpack.c.b16 %v1185, %v1179
    %v1528 = vpack.c.b16 %v1192, %v1186
    %v1529 = vpack.c.b16 %v1193, %v1187
    %v1530 = vpack.c.b16 %v1194, %v1188
    %v1531 = vpack.c.b16 %v1195, %v1189
    %v1532 = vpack.c.b16 %v1196, %v1190
    %v1533 = vpack.c.b16 %v1197, %v1191
    %v1534 = vpack.c.b16 %v1204, %v1198
    %v1535 = vpack.c.b16 %v1205, %v1199
    %v1536 = vpack.c.b16 %v1206, %v1200
    %v1537 = vpack.c.b16 %v1207, %v1201
    %v1538 = vpack.c.b16 %v1208, %v1202
    %v1539 = vpack.c.b16 %v1209, %v1203
    %v1540 = vpack.c.b16 %v1216, %v1210
    %v1541 = vpack.c.b16 %v1217, %v1211
    %v1542 = vpack.c.b16 %v1218, %v1212
    %v1543 = vpack.c.b16 %v1219, %v1213
    %v1544 = vpack.c.b16 %v1220, %v1214
    %v1545 = vpack.c.b16 %v1221, %v1215
    %v1546 = vpack.c.b16 %v1228, %v1222
    %v1547 = vpack.c.b16 %v1229, %v1223
    %v1548 = vpack.c.b16 %v1230, %v1224
    %v1549 = vpack.c.b16 %v1231, %v1225
    %v1550 = vpack.c.b16 %v1232, %v1226
    %v1551 = vpack.c.b16 %v1233, %v1227
    %v1552 = vpack.c.b16 %v1240, %v1234
    %v1553 = vpack.c.b16 %v1241, %v1235
    %v1554 = vpack.c.b16 %v1242, %v1236
    %v1555 = vpack.c.b16 %v1243, %v1237
    %v1556 = vpack.c.b16 %v1244, %v1238
    %v1557 = vpack.c.b16 %v1245, %v1239
    %v1558 = vpack.c.b16 %v1252, %v1246
    %v1559 = vpack.c.b16 %v1253, %v1247
    %v1560 = vpack.c.b16 %v1254, %v1248
    %v1561 = vpack.c.b16 %v1255, %v1249
    %v1562 = vpack.c.b16 %v1256, %v1250
    %v1563 = vpack.c.b16 %v1257, %v1251
    %v1564 = vpack.c.b16 %v1264, %v1258
    %v1565 = vpack.c.b16 %v1265, %v1259
    %v1566 = vpack.c.b16 %v1266, %v1260
    %v1567 = vpack.c.b16 %v1267, %v1261
    %v1568 = vpack.c.b16 %v1268, %v1262
    %v1569 = vpack.c.b16 %v1269, %v1263
    %v1570 = vpack.c.b16 %v1276, %v1270
    %v1571 = vpack.c.b16 %v1277, %v1271
    %v1572 = vpack.c.b16 %v1278, %v1272
    %v1573 = vpack.c.b16 %v1279, %v1273
    %v1574 = vpack.c.b16 %v1280, %v1274
    %v1575 = vpack.c.b16 %v1281, %v1275
    %v1576 = vpack.c.b16 %v1288, %v1282
    %v1577 = vpack.c.b16 %v1289, %v1283
    %v1578 = vpack.c.b16 %v1290, %v1284
    %v1579 = vpack.c.b16 %v1291, %v1285
    %v1580 = vpack.c.b16 %v1292, %v1286
    %v1581 = vpack.c.b16 %v1293, %v1287
    %1870 = vmatpush.bf16.msra.mxu0 %v1336
    %1871 = vmatpush.bf16.msra.mxu0 %v1330
    %1872 = vmatpush.bf16.msra.mxu0 %v1324
    %1873 = vmatpush.bf16.msra.mxu0 %v1318
    %1874 = vmatpush.bf16.msra.mxu0 %v1312
    %1875 = vmatpush.bf16.msra.mxu0 %v1306
    %1876 = vmatpush.bf16.msra.mxu0 %v1300
    %1877 = vmatpush.bf16.msra.mxu0 %v1294
    %1878 = vmatmul.bf16.gmra.mxu0 %v418
    %v1879 = vpop.f32.mrf.mxu0
    %v1880 = vadd.f32 %v394, %v1879
    %v1881 = vpop.f32.mrf.mxu0
    %v1882 = vadd.f32 %v394, %v1881
    %1883 = vdwg.mxu0
    %1884 = vmatpush.bf16.msra.mxu0 %v1384
    %1885 = vmatpush.bf16.msra.mxu0 %v1378
    %1886 = vmatpush.bf16.msra.mxu0 %v1372
    %1887 = vmatpush.bf16.msra.mxu0 %v1366
    %1888 = vmatpush.bf16.msra.mxu0 %v1360
    %1889 = vmatpush.bf16.msra.mxu0 %v1354
    %1890 = vmatpush.bf16.msra.mxu0 %v1348
    %1891 = vmatpush.bf16.msra.mxu0 %v1342
    %1892 = vmatmul.bf16.gmra.mxu0 %v419
    %v1893 = vpop.f32.mrf.mxu0
    %v1894 = vadd.f32 %v1880, %v1893
    %v1895 = vpop.f32.mrf.mxu0
    %v1896 = vadd.f32 %v1882, %v1895
    %1897 = vdwg.mxu0
    %1898 = vmatpush.bf16.msra.mxu0 %v1432
    %1899 = vmatpush.bf16.msra.mxu0 %v1426
    %1900 = vmatpush.bf16.msra.mxu0 %v1420
    %1901 = vmatpush.bf16.msra.mxu0 %v1414
    %1902 = vmatpush.bf16.msra.mxu0 %v1408
    %1903 = vmatpush.bf16.msra.mxu0 %v1402
    %1904 = vmatpush.bf16.msra.mxu0 %v1396
    %1905 = vmatpush.bf16.msra.mxu0 %v1390
    %1906 = vmatmul.bf16.gmra.mxu0 %v420
    %v1907 = vpop.f32.mrf.mxu0
    %v1908 = vadd.f32 %v1894, %v1907
    %v1909 = vpop.f32.mrf.mxu0
    %v1910 = vadd.f32 %v1896, %v1909
    %1911 = vdwg.mxu0
    %1912 = vmatpush.bf16.msra.mxu0 %v1480
    %1913 = vmatpush.bf16.msra.mxu0 %v1474
    %1914 = vmatpush.bf16.msra.mxu0 %v1468
    %1915 = vmatpush.bf16.msra.mxu0 %v1462
    %1916 = vmatpush.bf16.msra.mxu0 %v1456
    %1917 = vmatpush.bf16.msra.mxu0 %v1450
    %1918 = vmatpush.bf16.msra.mxu0 %v1444
    %1919 = vmatpush.bf16.msra.mxu0 %v1438
    %1920 = vmatmul.bf16.gmra.mxu0 %v421
    %v1921 = vpop.f32.mrf.mxu0
    %v1922 = vadd.f32 %v1908, %v1921
    %v1923 = vpop.f32.mrf.mxu0
    %v1924 = vadd.f32 %v1910, %v1923
    %1925 = vdwg.mxu0
    %1926 = vmatpush.bf16.msra.mxu0 %v1528
    %1927 = vmatpush.bf16.msra.mxu0 %v1522
    %1928 = vmatpush.bf16.msra.mxu0 %v1516
    %1929 = vmatpush.bf16.msra.mxu0 %v1510
    %1930 = vmatpush.bf16.msra.mxu0 %v1504
    %1931 = vmatpush.bf16.msra.mxu0 %v1498
    %1932 = vmatpush.bf16.msra.mxu0 %v1492
    %1933 = vmatpush.bf16.msra.mxu0 %v1486
    %1934 = vmatmul.bf16.gmra.mxu0 %v422
    %v1935 = vpop.f32.mrf.mxu0
    %v1936 = vadd.f32 %v1922, %v1935
    %v1937 = vpop.f32.mrf.mxu0
    %v1938 = vadd.f32 %v1924, %v1937
    %1939 = vdwg.mxu0
    %1940 = vmatpush.bf16.msra.mxu0 %v1576
    %1941 = vmatpush.bf16.msra.mxu0 %v1570
    %1942 = vmatpush.bf16.msra.mxu0 %v1564
    %1943 = vmatpush.bf16.msra.mxu0 %v1558
    %1944 = vmatpush.bf16.msra.mxu0 %v1552
    %1945 = vmatpush.bf16.msra.mxu0 %v1546
    %1946 = vmatpush.bf16.msra.mxu0 %v1540
    %1947 = vmatpush.bf16.msra.mxu0 %v1534
    %1948 = vmatmul.bf16.gmra.mxu0 %v423
    %v1949 = vpop.f32.mrf.mxu0
    %v1950 = vadd.f32 %v1936, %v1949
    %v1951 = vpop.f32.mrf.mxu0
    %v1952 = vadd.f32 %v1938, %v1951
    %1953 = vdwg.mxu0
    %1954 = vmatpush.bf16.msra.mxu0 %v1337
    %1955 = vmatpush.bf16.msra.mxu0 %v1331
    %1956 = vmatpush.bf16.msra.mxu0 %v1325
    %1957 = vmatpush.bf16.msra.mxu0 %v1319
    %1958 = vmatpush.bf16.msra.mxu0 %v1313
    %1959 = vmatpush.bf16.msra.mxu0 %v1307
    %1960 = vmatpush.bf16.msra.mxu0 %v1301
    %1961 = vmatpush.bf16.msra.mxu0 %v1295
    %1962 = vmatmul.bf16.gmra.mxu0 %v418
    %v1963 = vpop.f32.mrf.mxu0
    %v1964 = vadd.f32 %v395, %v1963
    %v1965 = vpop.f32.mrf.mxu0
    %v1966 = vadd.f32 %v395, %v1965
    %1967 = vdwg.mxu0
    %1968 = vmatpush.bf16.msra.mxu0 %v1385
    %1969 = vmatpush.bf16.msra.mxu0 %v1379
    %1970 = vmatpush.bf16.msra.mxu0 %v1373
    %1971 = vmatpush.bf16.msra.mxu0 %v1367
    %1972 = vmatpush.bf16.msra.mxu0 %v1361
    %1973 = vmatpush.bf16.msra.mxu0 %v1355
    %1974 = vmatpush.bf16.msra.mxu0 %v1349
    %1975 = vmatpush.bf16.msra.mxu0 %v1343
    %1976 = vmatmul.bf16.gmra.mxu0 %v419
    %v1977 = vpop.f32.mrf.mxu0
    %v1978 = vadd.f32 %v1964, %v1977
    %v1979 = vpop.f32.mrf.mxu0
    %v1980 = vadd.f32 %v1966, %v1979
    %1981 = vdwg.mxu0
    %1982 = vmatpush.bf16.msra.mxu0 %v1433
    %1983 = vmatpush.bf16.msra.mxu0 %v1427
    %1984 = vmatpush.bf16.msra.mxu0 %v1421
    %1985 = vmatpush.bf16.msra.mxu0 %v1415
    %1986 = vmatpush.bf16.msra.mxu0 %v1409
    %1987 = vmatpush.bf16.msra.mxu0 %v1403
    %1988 = vmatpush.bf16.msra.mxu0 %v1397
    %1989 = vmatpush.bf16.msra.mxu0 %v1391
    %1990 = vmatmul.bf16.gmra.mxu0 %v420
    %v1991 = vpop.f32.mrf.mxu0
    %v1992 = vadd.f32 %v1978, %v1991
    %v1993 = vpop.f32.mrf.mxu0
    %v1994 = vadd.f32 %v1980, %v1993
    %1995 = vdwg.mxu0
    %1996 = vmatpush.bf16.msra.mxu0 %v1481
    %1997 = vmatpush.bf16.msra.mxu0 %v1475
    %1998 = vmatpush.bf16.msra.mxu0 %v1469
    %1999 = vmatpush.bf16.msra.mxu0 %v1463
    %2000 = vmatpush.bf16.msra.mxu0 %v1457
    %2001 = vmatpush.bf16.msra.mxu0 %v1451
    %2002 = vmatpush.bf16.msra.mxu0 %v1445
    %2003 = vmatpush.bf16.msra.mxu0 %v1439
    %2004 = vmatmul.bf16.gmra.mxu0 %v421
    %v2005 = vpop.f32.mrf.mxu0
    %v2006 = vadd.f32 %v1992, %v2005
    %v2007 = vpop.f32.mrf.mxu0
    %v2008 = vadd.f32 %v1994, %v2007
    %2009 = vdwg.mxu0
    %2010 = vmatpush.bf16.msra.mxu0 %v1529
    %2011 = vmatpush.bf16.msra.mxu0 %v1523
    %2012 = vmatpush.bf16.msra.mxu0 %v1517
    %2013 = vmatpush.bf16.msra.mxu0 %v1511
    %2014 = vmatpush.bf16.msra.mxu0 %v1505
    %2015 = vmatpush.bf16.msra.mxu0 %v1499
    %2016 = vmatpush.bf16.msra.mxu0 %v1493
    %2017 = vmatpush.bf16.msra.mxu0 %v1487
    %2018 = vmatmul.bf16.gmra.mxu0 %v422
    %v2019 = vpop.f32.mrf.mxu0
    %v2020 = vadd.f32 %v2006, %v2019
    %v2021 = vpop.f32.mrf.mxu0
    %v2022 = vadd.f32 %v2008, %v2021
    %2023 = vdwg.mxu0
    %2024 = vmatpush.bf16.msra.mxu0 %v1577
    %2025 = vmatpush.bf16.msra.mxu0 %v1571
    %2026 = vmatpush.bf16.msra.mxu0 %v1565
    %2027 = vmatpush.bf16.msra.mxu0 %v1559
    %2028 = vmatpush.bf16.msra.mxu0 %v1553
    %2029 = vmatpush.bf16.msra.mxu0 %v1547
    %2030 = vmatpush.bf16.msra.mxu0 %v1541
    %2031 = vmatpush.bf16.msra.mxu0 %v1535
    %2032 = vmatmul.bf16.gmra.mxu0 %v423
    %v2033 = vpop.f32.mrf.mxu0
    %v2034 = vadd.f32 %v2020, %v2033
    %v2035 = vpop.f32.mrf.mxu0
    %v2036 = vadd.f32 %v2022, %v2035
    %2037 = vdwg.mxu0
    %2038 = vmatpush.bf16.msra.mxu0 %v1338
    %2039 = vmatpush.bf16.msra.mxu0 %v1332
    %2040 = vmatpush.bf16.msra.mxu0 %v1326
    %2041 = vmatpush.bf16.msra.mxu0 %v1320
    %2042 = vmatpush.bf16.msra.mxu0 %v1314
    %2043 = vmatpush.bf16.msra.mxu0 %v1308
    %2044 = vmatpush.bf16.msra.mxu0 %v1302
    %2045 = vmatpush.bf16.msra.mxu0 %v1296
    %2046 = vmatmul.bf16.gmra.mxu0 %v418
    %v2047 = vpop.f32.mrf.mxu0
    %v2048 = vadd.f32 %v396, %v2047
    %v2049 = vpop.f32.mrf.mxu0
    %v2050 = vadd.f32 %v396, %v2049
    %2051 = vdwg.mxu0
    %2052 = vmatpush.bf16.msra.mxu0 %v1386
    %2053 = vmatpush.bf16.msra.mxu0 %v1380
    %2054 = vmatpush.bf16.msra.mxu0 %v1374
    %2055 = vmatpush.bf16.msra.mxu0 %v1368
    %2056 = vmatpush.bf16.msra.mxu0 %v1362
    %2057 = vmatpush.bf16.msra.mxu0 %v1356
    %2058 = vmatpush.bf16.msra.mxu0 %v1350
    %2059 = vmatpush.bf16.msra.mxu0 %v1344
    %2060 = vmatmul.bf16.gmra.mxu0 %v419
    %v2061 = vpop.f32.mrf.mxu0
    %v2062 = vadd.f32 %v2048, %v2061
    %v2063 = vpop.f32.mrf.mxu0
    %v2064 = vadd.f32 %v2050, %v2063
    %2065 = vdwg.mxu0
    %2066 = vmatpush.bf16.msra.mxu0 %v1434
    %2067 = vmatpush.bf16.msra.mxu0 %v1428
    %2068 = vmatpush.bf16.msra.mxu0 %v1422
    %2069 = vmatpush.bf16.msra.mxu0 %v1416
    %2070 = vmatpush.bf16.msra.mxu0 %v1410
    %2071 = vmatpush.bf16.msra.mxu0 %v1404
    %2072 = vmatpush.bf16.msra.mxu0 %v1398
    %2073 = vmatpush.bf16.msra.mxu0 %v1392
    %2074 = vmatmul.bf16.gmra.mxu0 %v420
    %v2075 = vpop.f32.mrf.mxu0
    %v2076 = vadd.f32 %v2062, %v2075
    %v2077 = vpop.f32.mrf.mxu0
    %v2078 = vadd.f32 %v2064, %v2077
    %2079 = vdwg.mxu0
    %2080 = vmatpush.bf16.msra.mxu0 %v1482
    %2081 = vmatpush.bf16.msra.mxu0 %v1476
    %2082 = vmatpush.bf16.msra.mxu0 %v1470
    %2083 = vmatpush.bf16.msra.mxu0 %v1464
    %2084 = vmatpush.bf16.msra.mxu0 %v1458
    %2085 = vmatpush.bf16.msra.mxu0 %v1452
    %2086 = vmatpush.bf16.msra.mxu0 %v1446
    %2087 = vmatpush.bf16.msra.mxu0 %v1440
    %2088 = vmatmul.bf16.gmra.mxu0 %v421
    %v2089 = vpop.f32.mrf.mxu0
    %v2090 = vadd.f32 %v2076, %v2089
    %v2091 = vpop.f32.mrf.mxu0
    %v2092 = vadd.f32 %v2078, %v2091
    %2093 = vdwg.mxu0
    %2094 = vmatpush.bf16.msra.mxu0 %v1530
    %2095 = vmatpush.bf16.msra.mxu0 %v1524
    %2096 = vmatpush.bf16.msra.mxu0 %v1518
    %2097 = vmatpush.bf16.msra.mxu0 %v1512
    %2098 = vmatpush.bf16.msra.mxu0 %v1506
    %2099 = vmatpush.bf16.msra.mxu0 %v1500
    %2100 = vmatpush.bf16.msra.mxu0 %v1494
    %2101 = vmatpush.bf16.msra.mxu0 %v1488
    %2102 = vmatmul.bf16.gmra.mxu0 %v422
    %v2103 = vpop.f32.mrf.mxu0
    %v2104 = vadd.f32 %v2090, %v2103
    %v2105 = vpop.f32.mrf.mxu0
    %v2106 = vadd.f32 %v2092, %v2105
    %2107 = vdwg.mxu0
    %2108 = vmatpush.bf16.msra.mxu0 %v1578
    %2109 = vmatpush.bf16.msra.mxu0 %v1572
    %2110 = vmatpush.bf16.msra.mxu0 %v1566
    %2111 = vmatpush.bf16.msra.mxu0 %v1560
    %2112 = vmatpush.bf16.msra.mxu0 %v1554
    %2113 = vmatpush.bf16.msra.mxu0 %v1548
    %2114 = vmatpush.bf16.msra.mxu0 %v1542
    %2115 = vmatpush.bf16.msra.mxu0 %v1536
    %2116 = vmatmul.bf16.gmra.mxu0 %v423
    %v2117 = vpop.f32.mrf.mxu0
    %v2118 = vadd.f32 %v2104, %v2117
    %v2119 = vpop.f32.mrf.mxu0
    %v2120 = vadd.f32 %v2106, %v2119
    %2121 = vdwg.mxu0
    %2122 = vmatpush.bf16.msra.mxu0 %v1339
    %2123 = vmatpush.bf16.msra.mxu0 %v1333
    %2124 = vmatpush.bf16.msra.mxu0 %v1327
    %2125 = vmatpush.bf16.msra.mxu0 %v1321
    %2126 = vmatpush.bf16.msra.mxu0 %v1315
    %2127 = vmatpush.bf16.msra.mxu0 %v1309
    %2128 = vmatpush.bf16.msra.mxu0 %v1303
    %2129 = vmatpush.bf16.msra.mxu0 %v1297
    %2130 = vmatmul.bf16.gmra.mxu0 %v418
    %v2131 = vpop.f32.mrf.mxu0
    %v2132 = vadd.f32 %v397, %v2131
    %v2133 = vpop.f32.mrf.mxu0
    %v2134 = vadd.f32 %v397, %v2133
    %2135 = vdwg.mxu0
    %2136 = vmatpush.bf16.msra.mxu0 %v1387
    %2137 = vmatpush.bf16.msra.mxu0 %v1381
    %2138 = vmatpush.bf16.msra.mxu0 %v1375
    %2139 = vmatpush.bf16.msra.mxu0 %v1369
    %2140 = vmatpush.bf16.msra.mxu0 %v1363
    %2141 = vmatpush.bf16.msra.mxu0 %v1357
    %2142 = vmatpush.bf16.msra.mxu0 %v1351
    %2143 = vmatpush.bf16.msra.mxu0 %v1345
    %2144 = vmatmul.bf16.gmra.mxu0 %v419
    %v2145 = vpop.f32.mrf.mxu0
    %v2146 = vadd.f32 %v2132, %v2145
    %v2147 = vpop.f32.mrf.mxu0
    %v2148 = vadd.f32 %v2134, %v2147
    %2149 = vdwg.mxu0
    %2150 = vmatpush.bf16.msra.mxu0 %v1435
    %2151 = vmatpush.bf16.msra.mxu0 %v1429
    %2152 = vmatpush.bf16.msra.mxu0 %v1423
    %2153 = vmatpush.bf16.msra.mxu0 %v1417
    %2154 = vmatpush.bf16.msra.mxu0 %v1411
    %2155 = vmatpush.bf16.msra.mxu0 %v1405
    %2156 = vmatpush.bf16.msra.mxu0 %v1399
    %2157 = vmatpush.bf16.msra.mxu0 %v1393
    %2158 = vmatmul.bf16.gmra.mxu0 %v420
    %v2159 = vpop.f32.mrf.mxu0
    %v2160 = vadd.f32 %v2146, %v2159
    %v2161 = vpop.f32.mrf.mxu0
    %v2162 = vadd.f32 %v2148, %v2161
    %2163 = vdwg.mxu0
    %2164 = vmatpush.bf16.msra.mxu0 %v1483
    %2165 = vmatpush.bf16.msra.mxu0 %v1477
    %2166 = vmatpush.bf16.msra.mxu0 %v1471
    %2167 = vmatpush.bf16.msra.mxu0 %v1465
    %2168 = vmatpush.bf16.msra.mxu0 %v1459
    %2169 = vmatpush.bf16.msra.mxu0 %v1453
    %2170 = vmatpush.bf16.msra.mxu0 %v1447
    %2171 = vmatpush.bf16.msra.mxu0 %v1441
    %2172 = vmatmul.bf16.gmra.mxu0 %v421
    %v2173 = vpop.f32.mrf.mxu0
    %v2174 = vadd.f32 %v2160, %v2173
    %v2175 = vpop.f32.mrf.mxu0
    %v2176 = vadd.f32 %v2162, %v2175
    %2177 = vdwg.mxu0
    %2178 = vmatpush.bf16.msra.mxu0 %v1531
    %2179 = vmatpush.bf16.msra.mxu0 %v1525
    %2180 = vmatpush.bf16.msra.mxu0 %v1519
    %2181 = vmatpush.bf16.msra.mxu0 %v1513
    %2182 = vmatpush.bf16.msra.mxu0 %v1507
    %2183 = vmatpush.bf16.msra.mxu0 %v1501
    %2184 = vmatpush.bf16.msra.mxu0 %v1495
    %2185 = vmatpush.bf16.msra.mxu0 %v1489
    %2186 = vmatmul.bf16.gmra.mxu0 %v422
    %v2187 = vpop.f32.mrf.mxu0
    %v2188 = vadd.f32 %v2174, %v2187
    %v2189 = vpop.f32.mrf.mxu0
    %v2190 = vadd.f32 %v2176, %v2189
    %2191 = vdwg.mxu0
    %2192 = vmatpush.bf16.msra.mxu0 %v1579
    %2193 = vmatpush.bf16.msra.mxu0 %v1573
    %2194 = vmatpush.bf16.msra.mxu0 %v1567
    %2195 = vmatpush.bf16.msra.mxu0 %v1561
    %2196 = vmatpush.bf16.msra.mxu0 %v1555
    %2197 = vmatpush.bf16.msra.mxu0 %v1549
    %2198 = vmatpush.bf16.msra.mxu0 %v1543
    %2199 = vmatpush.bf16.msra.mxu0 %v1537
    %2200 = vmatmul.bf16.gmra.mxu0 %v423
    %v2201 = vpop.f32.mrf.mxu0
    %v2202 = vadd.f32 %v2188, %v2201
    %v2203 = vpop.f32.mrf.mxu0
    %v2204 = vadd.f32 %v2190, %v2203
    %2205 = vdwg.mxu0
    %2206 = vmatpush.bf16.msra.mxu0 %v1340
    %2207 = vmatpush.bf16.msra.mxu0 %v1334
    %2208 = vmatpush.bf16.msra.mxu0 %v1328
    %2209 = vmatpush.bf16.msra.mxu0 %v1322
    %2210 = vmatpush.bf16.msra.mxu0 %v1316
    %2211 = vmatpush.bf16.msra.mxu0 %v1310
    %2212 = vmatpush.bf16.msra.mxu0 %v1304
    %2213 = vmatpush.bf16.msra.mxu0 %v1298
    %2214 = vmatmul.bf16.gmra.mxu0 %v418
    %v2215 = vpop.f32.mrf.mxu0
    %v2216 = vadd.f32 %v398, %v2215
    %v2217 = vpop.f32.mrf.mxu0
    %v2218 = vadd.f32 %v398, %v2217
    %2219 = vdwg.mxu0
    %2220 = vmatpush.bf16.msra.mxu0 %v1388
    %2221 = vmatpush.bf16.msra.mxu0 %v1382
    %2222 = vmatpush.bf16.msra.mxu0 %v1376
    %2223 = vmatpush.bf16.msra.mxu0 %v1370
    %2224 = vmatpush.bf16.msra.mxu0 %v1364
    %2225 = vmatpush.bf16.msra.mxu0 %v1358
    %2226 = vmatpush.bf16.msra.mxu0 %v1352
    %2227 = vmatpush.bf16.msra.mxu0 %v1346
    %2228 = vmatmul.bf16.gmra.mxu0 %v419
    %v2229 = vpop.f32.mrf.mxu0
    %v2230 = vadd.f32 %v2216, %v2229
    %v2231 = vpop.f32.mrf.mxu0
    %v2232 = vadd.f32 %v2218, %v2231
    %2233 = vdwg.mxu0
    %2234 = vmatpush.bf16.msra.mxu0 %v1436
    %2235 = vmatpush.bf16.msra.mxu0 %v1430
    %2236 = vmatpush.bf16.msra.mxu0 %v1424
    %2237 = vmatpush.bf16.msra.mxu0 %v1418
    %2238 = vmatpush.bf16.msra.mxu0 %v1412
    %2239 = vmatpush.bf16.msra.mxu0 %v1406
    %2240 = vmatpush.bf16.msra.mxu0 %v1400
    %2241 = vmatpush.bf16.msra.mxu0 %v1394
    %2242 = vmatmul.bf16.gmra.mxu0 %v420
    %v2243 = vpop.f32.mrf.mxu0
    %v2244 = vadd.f32 %v2230, %v2243
    %v2245 = vpop.f32.mrf.mxu0
    %v2246 = vadd.f32 %v2232, %v2245
    %2247 = vdwg.mxu0
    %2248 = vmatpush.bf16.msra.mxu0 %v1484
    %2249 = vmatpush.bf16.msra.mxu0 %v1478
    %2250 = vmatpush.bf16.msra.mxu0 %v1472
    %2251 = vmatpush.bf16.msra.mxu0 %v1466
    %2252 = vmatpush.bf16.msra.mxu0 %v1460
    %2253 = vmatpush.bf16.msra.mxu0 %v1454
    %2254 = vmatpush.bf16.msra.mxu0 %v1448
    %2255 = vmatpush.bf16.msra.mxu0 %v1442
    %2256 = vmatmul.bf16.gmra.mxu0 %v421
    %v2257 = vpop.f32.mrf.mxu0
    %v2258 = vadd.f32 %v2244, %v2257
    %v2259 = vpop.f32.mrf.mxu0
    %v2260 = vadd.f32 %v2246, %v2259
    %2261 = vdwg.mxu0
    %2262 = vmatpush.bf16.msra.mxu0 %v1532
    %2263 = vmatpush.bf16.msra.mxu0 %v1526
    %2264 = vmatpush.bf16.msra.mxu0 %v1520
    %2265 = vmatpush.bf16.msra.mxu0 %v1514
    %2266 = vmatpush.bf16.msra.mxu0 %v1508
    %2267 = vmatpush.bf16.msra.mxu0 %v1502
    %2268 = vmatpush.bf16.msra.mxu0 %v1496
    %2269 = vmatpush.bf16.msra.mxu0 %v1490
    %2270 = vmatmul.bf16.gmra.mxu0 %v422
    %v2271 = vpop.f32.mrf.mxu0
    %v2272 = vadd.f32 %v2258, %v2271
    %v2273 = vpop.f32.mrf.mxu0
    %v2274 = vadd.f32 %v2260, %v2273
    %2275 = vdwg.mxu0
    %2276 = vmatpush.bf16.msra.mxu0 %v1580
    %2277 = vmatpush.bf16.msra.mxu0 %v1574
    %2278 = vmatpush.bf16.msra.mxu0 %v1568
    %2279 = vmatpush.bf16.msra.mxu0 %v1562
    %2280 = vmatpush.bf16.msra.mxu0 %v1556
    %2281 = vmatpush.bf16.msra.mxu0 %v1550
    %2282 = vmatpush.bf16.msra.mxu0 %v1544
    %2283 = vmatpush.bf16.msra.mxu0 %v1538
    %2284 = vmatmul.bf16.gmra.mxu0 %v423
    %v2285 = vpop.f32.mrf.mxu0
    %v2286 = vadd.f32 %v2272, %v2285
    %v2287 = vpop.f32.mrf.mxu0
    %v2288 = vadd.f32 %v2274, %v2287
    %2289 = vdwg.mxu0
    %2290 = vmatpush.bf16.msra.mxu0 %v1341
    %2291 = vmatpush.bf16.msra.mxu0 %v1335
    %2292 = vmatpush.bf16.msra.mxu0 %v1329
    %2293 = vmatpush.bf16.msra.mxu0 %v1323
    %2294 = vmatpush.bf16.msra.mxu0 %v1317
    %2295 = vmatpush.bf16.msra.mxu0 %v1311
    %2296 = vmatpush.bf16.msra.mxu0 %v1305
    %2297 = vmatpush.bf16.msra.mxu0 %v1299
    %2298 = vmatmul.bf16.gmra.mxu0 %v418
    %v2299 = vpop.f32.mrf.mxu0
    %v2300 = vadd.f32 %v399, %v2299
    %v2301 = vpop.f32.mrf.mxu0
    %v2302 = vadd.f32 %v399, %v2301
    %2303 = vdwg.mxu0
    %2304 = vmatpush.bf16.msra.mxu0 %v1389
    %2305 = vmatpush.bf16.msra.mxu0 %v1383
    %2306 = vmatpush.bf16.msra.mxu0 %v1377
    %2307 = vmatpush.bf16.msra.mxu0 %v1371
    %2308 = vmatpush.bf16.msra.mxu0 %v1365
    %2309 = vmatpush.bf16.msra.mxu0 %v1359
    %2310 = vmatpush.bf16.msra.mxu0 %v1353
    %2311 = vmatpush.bf16.msra.mxu0 %v1347
    %2312 = vmatmul.bf16.gmra.mxu0 %v419
    %v2313 = vpop.f32.mrf.mxu0
    %v2314 = vadd.f32 %v2300, %v2313
    %v2315 = vpop.f32.mrf.mxu0
    %v2316 = vadd.f32 %v2302, %v2315
    %2317 = vdwg.mxu0
    %2318 = vmatpush.bf16.msra.mxu0 %v1437
    %2319 = vmatpush.bf16.msra.mxu0 %v1431
    %2320 = vmatpush.bf16.msra.mxu0 %v1425
    %2321 = vmatpush.bf16.msra.mxu0 %v1419
    %2322 = vmatpush.bf16.msra.mxu0 %v1413
    %2323 = vmatpush.bf16.msra.mxu0 %v1407
    %2324 = vmatpush.bf16.msra.mxu0 %v1401
    %2325 = vmatpush.bf16.msra.mxu0 %v1395
    %2326 = vmatmul.bf16.gmra.mxu0 %v420
    %v2327 = vpop.f32.mrf.mxu0
    %v2328 = vadd.f32 %v2314, %v2327
    %v2329 = vpop.f32.mrf.mxu0
    %v2330 = vadd.f32 %v2316, %v2329
    %2331 = vdwg.mxu0
    %2332 = vmatpush.bf16.msra.mxu0 %v1485
    %2333 = vmatpush.bf16.msra.mxu0 %v1479
    %2334 = vmatpush.bf16.msra.mxu0 %v1473
    %2335 = vmatpush.bf16.msra.mxu0 %v1467
    %2336 = vmatpush.bf16.msra.mxu0 %v1461
    %2337 = vmatpush.bf16.msra.mxu0 %v1455
    %2338 = vmatpush.bf16.msra.mxu0 %v1449
    %2339 = vmatpush.bf16.msra.mxu0 %v1443
    %2340 = vmatmul.bf16.gmra.mxu0 %v421
    %v2341 = vpop.f32.mrf.mxu0
    %v2342 = vadd.f32 %v2328, %v2341
    %v2343 = vpop.f32.mrf.mxu0
    %v2344 = vadd.f32 %v2330, %v2343
    %2345 = vdwg.mxu0
    %2346 = vmatpush.bf16.msra.mxu0 %v1533
    %2347 = vmatpush.bf16.msra.mxu0 %v1527
    %2348 = vmatpush.bf16.msra.mxu0 %v1521
    %2349 = vmatpush.bf16.msra.mxu0 %v1515
    %2350 = vmatpush.bf16.msra.mxu0 %v1509
    %2351 = vmatpush.bf16.msra.mxu0 %v1503
    %2352 = vmatpush.bf16.msra.mxu0 %v1497
    %2353 = vmatpush.bf16.msra.mxu0 %v1491
    %2354 = vmatmul.bf16.gmra.mxu0 %v422
    %v2355 = vpop.f32.mrf.mxu0
    %v2356 = vadd.f32 %v2342, %v2355
    %v2357 = vpop.f32.mrf.mxu0
    %v2358 = vadd.f32 %v2344, %v2357
    %2359 = vdwg.mxu0
    %2360 = vmatpush.bf16.msra.mxu0 %v1581
    %2361 = vmatpush.bf16.msra.mxu0 %v1575
    %2362 = vmatpush.bf16.msra.mxu0 %v1569
    %2363 = vmatpush.bf16.msra.mxu0 %v1563
    %2364 = vmatpush.bf16.msra.mxu0 %v1557
    %2365 = vmatpush.bf16.msra.mxu0 %v1551
    %2366 = vmatpush.bf16.msra.mxu0 %v1545
    %2367 = vmatpush.bf16.msra.mxu0 %v1539
    %2368 = vmatmul.bf16.gmra.mxu0 %v423
    %v2369 = vpop.f32.mrf.mxu0
    %v2370 = vadd.f32 %v2356, %v2369
    %v2371 = vpop.f32.mrf.mxu0
    %v2372 = vadd.f32 %v2358, %v2371
    %2373 = vdwg.mxu0
    %v2374 = vadd.f32 %v1950, %v2034
    %v2375 = vadd.f32 %v2374, %v2118
    %v2376 = vadd.f32 %v2375, %v2202
    %v2377 = vadd.f32 %v2376, %v2286
    %v2378 = vadd.f32 %v2377, %v2370
    %2379 = vadd.xlane.f32.xlu0 %v2378
    %v2380 = vpop.xlane.xlu0 %2379
    %v2381 = vadd.f32 %v1952, %v2036
    %v2382 = vadd.f32 %v2381, %v2120
    %v2383 = vadd.f32 %v2382, %v2204
    %v2384 = vadd.f32 %v2383, %v2288
    %v2385 = vadd.f32 %v2384, %v2372
    %2386 = vadd.xlane.f32.xlu0 %v2385
    %v2387 = vpop.xlane.xlu0 %2386
    %v2388 = vrcp.pop 768.0
    %v2389 = vmul.f32 768.0, %v2388
    %v2390 = vsub.f32 1.0, %v2389
    %v2391 = vmul.f32 %v2388, %v2390
    %v2392 = vadd.f32 %v2388, %v2391
    %vm2393 = vweird.f32 %v2388
    %v2394 = vsel %vm2393, %v2388, %v2392
    %v2395 = vmul.f32 %v2380, %v2394
    %v2396 = vmul.f32 %v2387, %v2394
    %v2397 = vsub.f32 %v1950, %v2395
    %v2398 = vsub.f32 %v2034, %v2395
    %v2399 = vsub.f32 %v2118, %v2395
    %v2400 = vsub.f32 %v2202, %v2395
    %v2401 = vsub.f32 %v2286, %v2395
    %v2402 = vsub.f32 %v2370, %v2395
    %v2403 = vsub.f32 %v1952, %v2396
    %v2404 = vsub.f32 %v2036, %v2396
    %v2405 = vsub.f32 %v2120, %v2396
    %v2406 = vsub.f32 %v2204, %v2396
    %v2407 = vsub.f32 %v2288, %v2396
    %v2408 = vsub.f32 %v2372, %v2396
    %v2409 = vmul.f32 %v2397, %v2397
    %v2410 = vmul.f32 %v2398, %v2398
    %v2411 = vmul.f32 %v2399, %v2399
    %v2412 = vmul.f32 %v2400, %v2400
    %v2413 = vmul.f32 %v2401, %v2401
    %v2414 = vmul.f32 %v2402, %v2402
    %v2415 = vmul.f32 %v2403, %v2403
    %v2416 = vmul.f32 %v2404, %v2404
    %v2417 = vmul.f32 %v2405, %v2405
    %v2418 = vmul.f32 %v2406, %v2406
    %v2419 = vmul.f32 %v2407, %v2407
    %v2420 = vmul.f32 %v2408, %v2408
    %v2421 = vadd.f32 %v2409, %v2410
    %v2422 = vadd.f32 %v2421, %v2411
    %v2423 = vadd.f32 %v2422, %v2412
    %v2424 = vadd.f32 %v2423, %v2413
    %v2425 = vadd.f32 %v2424, %v2414
    %2426 = vadd.xlane.f32.xlu0 %v2425
    %v2427 = vpop.xlane.xlu0 %2426
    %v2428 = vadd.f32 %v2415, %v2416
    %v2429 = vadd.f32 %v2428, %v2417
    %v2430 = vadd.f32 %v2429, %v2418
    %v2431 = vadd.f32 %v2430, %v2419
    %v2432 = vadd.f32 %v2431, %v2420
    %2433 = vadd.xlane.f32.xlu0 %v2432
    %v2434 = vpop.xlane.xlu0 %2433
    %v2435 = vmul.f32 %v2427, %v2394
    %v2436 = vmul.f32 %v2434, %v2394
    %v2437 = vadd.f32 %v2435, 1e-06
    %v2438 = vadd.f32 %v2436, 1e-06
    %v2439 = vrsqrt.pop %v2437
    %v2440 = vmul.f32 %v2439, %v2437
    %v2441 = vmul.f32 %v2440, %v2439
    %v2442 = vmul.f32 0.5, %v2441
    %v2443 = vsub.f32 1.5, %v2442
    %v2444 = vmul.f32 %v2439, %v2443
    %vm2445 = vweird.f32 %v2437
    %vm2446 = vweird.f32 %v2439
    %vm2447 = vmor %vm2445, %vm2446
    %v2448 = vsel %vm2447, %v2439, %v2444
    %v2449 = vrsqrt.pop %v2438
    %v2450 = vmul.f32 %v2449, %v2438
    %v2451 = vmul.f32 %v2450, %v2449
    %v2452 = vmul.f32 0.5, %v2451
    %v2453 = vsub.f32 1.5, %v2452
    %v2454 = vmul.f32 %v2449, %v2453
    %vm2455 = vweird.f32 %v2438
    %vm2456 = vweird.f32 %v2449
    %vm2457 = vmor %vm2455, %vm2456
    %v2458 = vsel %vm2457, %v2449, %v2454
    %v2459 = vmul.f32 %v2397, %v2448
    %v2460 = vmul.f32 %v2398, %v2448
    %v2461 = vmul.f32 %v2399, %v2448
    %v2462 = vmul.f32 %v2400, %v2448
    %v2463 = vmul.f32 %v2401, %v2448
    %v2464 = vmul.f32 %v2402, %v2448
    %v2465 = vmul.f32 %v2403, %v2458
    %v2466 = vmul.f32 %v2404, %v2458
    %v2467 = vmul.f32 %v2405, %v2458
    %v2468 = vmul.f32 %v2406, %v2458
    %v2469 = vmul.f32 %v2407, %v2458
    %v2470 = vmul.f32 %v2408, %v2458
    %v2471 = vperm.slane %v93, 0
    %v2472 = vperm.slane %v94, 0
    %v2473 = vperm.slane %v95, 0
    %v2474 = vperm.slane %v96, 0
    %v2475 = vperm.slane %v97, 0
    %v2476 = vperm.slane %v98, 0
    %v2477 = vmul.f32 %v2459, %v2471
    %v2478 = vmul.f32 %v2460, %v2472
    %v2479 = vmul.f32 %v2461, %v2473
    %v2480 = vmul.f32 %v2462, %v2474
    %v2481 = vmul.f32 %v2463, %v2475
    %v2482 = vmul.f32 %v2464, %v2476
    %v2483 = vmul.f32 %v2465, %v2471
    %v2484 = vmul.f32 %v2466, %v2472
    %v2485 = vmul.f32 %v2467, %v2473
    %v2486 = vmul.f32 %v2468, %v2474
    %v2487 = vmul.f32 %v2469, %v2475
    %v2488 = vmul.f32 %v2470, %v2476
    %v2489 = vperm.slane %v93, 1
    %v2490 = vperm.slane %v94, 1
    %v2491 = vperm.slane %v95, 1
    %v2492 = vperm.slane %v96, 1
    %v2493 = vperm.slane %v97, 1
    %v2494 = vperm.slane %v98, 1
    %v2495 = vadd.f32 %v2477, %v2489
    %v2496 = vadd.f32 %v2478, %v2490
    %v2497 = vadd.f32 %v2479, %v2491
    %v2498 = vadd.f32 %v2480, %v2492
    %v2499 = vadd.f32 %v2481, %v2493
    %v2500 = vadd.f32 %v2482, %v2494
    %v2501 = vadd.f32 %v2483, %v2489
    %v2502 = vadd.f32 %v2484, %v2490
    %v2503 = vadd.f32 %v2485, %v2491
    %v2504 = vadd.f32 %v2486, %v2492
    %v2505 = vadd.f32 %v2487, %v2493
    %v2506 = vadd.f32 %v2488, %v2494
    %v2507 = vmul.f32 %v2495, 0.5
    %v2508 = vmul.f32 %v2496, 0.5
    %v2509 = vmul.f32 %v2497, 0.5
    %v2510 = vmul.f32 %v2498, 0.5
    %v2511 = vmul.f32 %v2499, 0.5
    %v2512 = vmul.f32 %v2500, 0.5
    %v2513 = vmul.f32 %v2501, 0.5
    %v2514 = vmul.f32 %v2502, 0.5
    %v2515 = vmul.f32 %v2503, 0.5
    %v2516 = vmul.f32 %v2504, 0.5
    %v2517 = vmul.f32 %v2505, 0.5
    %v2518 = vmul.f32 %v2506, 0.5
    %v2519 = vmul.f32 %v2495, 0.70710677
    %v2520 = vmul.f32 %v2496, 0.70710677
    %v2521 = vmul.f32 %v2497, 0.70710677
    %v2522 = vmul.f32 %v2498, 0.70710677
    %v2523 = vmul.f32 %v2499, 0.70710677
    %v2524 = vmul.f32 %v2500, 0.70710677
    %v2525 = vmul.f32 %v2501, 0.70710677
    %v2526 = vmul.f32 %v2502, 0.70710677
    %v2527 = vmul.f32 %v2503, 0.70710677
    %v2528 = vmul.f32 %v2504, 0.70710677
    %v2529 = vmul.f32 %v2505, 0.70710677
    %v2530 = vmul.f32 %v2506, 0.70710677
    %v2531 = vmul.f32 %v2519, %v2519
    %v2532 = vmin.f32 16.0, %v2531
    %v2533 = vmul.f32 %v2532, 2.1237322e-06
    %v2534 = vadd.f32 %v2533, 0.00028619796
    %v2535 = vmul.f32 %v2532, %v2534
    %v2536 = vadd.f32 %v2535, 0.0036580483
    %v2537 = vmul.f32 %v2532, %v2536
    %v2538 = vadd.f32 %v2537, 0.05243302
    %v2539 = vmul.f32 %v2532, %v2538
    %v2540 = vadd.f32 %v2539, 0.18741608
    %v2541 = vmul.f32 %v2532, %v2540
    %v2542 = vadd.f32 %v2541, 1.1283791
    %v2543 = vmul.f32 %v2519, %v2542
    %v2544 = vmul.f32 %v2532, 3.8918573e-05
    %v2545 = vadd.f32 %v2544, 0.001143296
    %v2546 = vmul.f32 %v2532, %v2545
    %v2547 = vadd.f32 %v2546, 0.014752088
    %v2548 = vmul.f32 %v2532, %v2547
    %v2549 = vadd.f32 %v2548, 0.112945676
    %v2550 = vmul.f32 %v2532, %v2549
    %v2551 = vadd.f32 %v2550, 0.4994258
    %v2552 = vmul.f32 %v2532, %v2551
    %v2553 = vadd.f32 %v2552, 1.0
    %v2554 = vrcp.pop %v2553
    %v2555 = vmul.f32 %v2553, %v2554
    %v2556 = vsub.f32 1.0, %v2555
    %v2557 = vmul.f32 %v2554, %v2556
    %v2558 = vadd.f32 %v2554, %v2557
    %vm2559 = vweird.f32 %v2553
    %vm2560 = vweird.f32 %v2554
    %vm2561 = vmor %vm2559, %vm2560
    %v2562 = vsel %vm2561, %v2554, %v2558
    %v2563 = vand.u32 2147483647, %v2553
    %vm2564 = vcmp.eq.f32.partialorder %v2563, 8.507059e+37
    %v2565 = vand.u32 %v2553, 2147483648
    %v2566 = vor.u32 1.1754944e-38, %v2565
    %v2567 = vsel %vm2564, %v2566, %v2562
    %v2568 = vmul.f32 %v2543, %v2567
    %v2569 = vmin.f32 %v2568, 1.0
    %v2570 = vmax.f32 %v2569, -1.0
    %v2571 = vmul.f32 %v2520, %v2520
    %v2572 = vmin.f32 16.0, %v2571
    %v2573 = vmul.f32 %v2572, 2.1237322e-06
    %v2574 = vadd.f32 %v2573, 0.00028619796
    %v2575 = vmul.f32 %v2572, %v2574
    %v2576 = vadd.f32 %v2575, 0.0036580483
    %v2577 = vmul.f32 %v2572, %v2576
    %v2578 = vadd.f32 %v2577, 0.05243302
    %v2579 = vmul.f32 %v2572, %v2578
    %v2580 = vadd.f32 %v2579, 0.18741608
    %v2581 = vmul.f32 %v2572, %v2580
    %v2582 = vadd.f32 %v2581, 1.1283791
    %v2583 = vmul.f32 %v2520, %v2582
    %v2584 = vmul.f32 %v2572, 3.8918573e-05
    %v2585 = vadd.f32 %v2584, 0.001143296
    %v2586 = vmul.f32 %v2572, %v2585
    %v2587 = vadd.f32 %v2586, 0.014752088
    %v2588 = vmul.f32 %v2572, %v2587
    %v2589 = vadd.f32 %v2588, 0.112945676
    %v2590 = vmul.f32 %v2572, %v2589
    %v2591 = vadd.f32 %v2590, 0.4994258
    %v2592 = vmul.f32 %v2572, %v2591
    %v2593 = vadd.f32 %v2592, 1.0
    %v2594 = vrcp.pop %v2593
    %v2595 = vmul.f32 %v2593, %v2594
    %v2596 = vsub.f32 1.0, %v2595
    %v2597 = vmul.f32 %v2594, %v2596
    %v2598 = vadd.f32 %v2594, %v2597
    %vm2599 = vweird.f32 %v2593
    %vm2600 = vweird.f32 %v2594
    %vm2601 = vmor %vm2599, %vm2600
    %v2602 = vsel %vm2601, %v2594, %v2598
    %v2603 = vand.u32 2147483647, %v2593
    %vm2604 = vcmp.eq.f32.partialorder %v2603, 8.507059e+37
    %v2605 = vand.u32 %v2593, 2147483648
    %v2606 = vor.u32 1.1754944e-38, %v2605
    %v2607 = vsel %vm2604, %v2606, %v2602
    %v2608 = vmul.f32 %v2583, %v2607
    %v2609 = vmin.f32 %v2608, 1.0
    %v2610 = vmax.f32 %v2609, -1.0
    %v2611 = vmul.f32 %v2521, %v2521
    %v2612 = vmin.f32 16.0, %v2611
    %v2613 = vmul.f32 %v2612, 2.1237322e-06
    %v2614 = vadd.f32 %v2613, 0.00028619796
    %v2615 = vmul.f32 %v2612, %v2614
    %v2616 = vadd.f32 %v2615, 0.0036580483
    %v2617 = vmul.f32 %v2612, %v2616
    %v2618 = vadd.f32 %v2617, 0.05243302
    %v2619 = vmul.f32 %v2612, %v2618
    %v2620 = vadd.f32 %v2619, 0.18741608
    %v2621 = vmul.f32 %v2612, %v2620
    %v2622 = vadd.f32 %v2621, 1.1283791
    %v2623 = vmul.f32 %v2521, %v2622
    %v2624 = vmul.f32 %v2612, 3.8918573e-05
    %v2625 = vadd.f32 %v2624, 0.001143296
    %v2626 = vmul.f32 %v2612, %v2625
    %v2627 = vadd.f32 %v2626, 0.014752088
    %v2628 = vmul.f32 %v2612, %v2627
    %v2629 = vadd.f32 %v2628, 0.112945676
    %v2630 = vmul.f32 %v2612, %v2629
    %v2631 = vadd.f32 %v2630, 0.4994258
    %v2632 = vmul.f32 %v2612, %v2631
    %v2633 = vadd.f32 %v2632, 1.0
    %v2634 = vrcp.pop %v2633
    %v2635 = vmul.f32 %v2633, %v2634
    %v2636 = vsub.f32 1.0, %v2635
    %v2637 = vmul.f32 %v2634, %v2636
    %v2638 = vadd.f32 %v2634, %v2637
    %vm2639 = vweird.f32 %v2633
    %vm2640 = vweird.f32 %v2634
    %vm2641 = vmor %vm2639, %vm2640
    %v2642 = vsel %vm2641, %v2634, %v2638
    %v2643 = vand.u32 2147483647, %v2633
    %vm2644 = vcmp.eq.f32.partialorder %v2643, 8.507059e+37
    %v2645 = vand.u32 %v2633, 2147483648
    %v2646 = vor.u32 1.1754944e-38, %v2645
    %v2647 = vsel %vm2644, %v2646, %v2642
    %v2648 = vmul.f32 %v2623, %v2647
    %v2649 = vmin.f32 %v2648, 1.0
    %v2650 = vmax.f32 %v2649, -1.0
    %v2651 = vmul.f32 %v2522, %v2522
    %v2652 = vmin.f32 16.0, %v2651
    %v2653 = vmul.f32 %v2652, 2.1237322e-06
    %v2654 = vadd.f32 %v2653, 0.00028619796
    %v2655 = vmul.f32 %v2652, %v2654
    %v2656 = vadd.f32 %v2655, 0.0036580483
    %v2657 = vmul.f32 %v2652, %v2656
    %v2658 = vadd.f32 %v2657, 0.05243302
    %v2659 = vmul.f32 %v2652, %v2658
    %v2660 = vadd.f32 %v2659, 0.18741608
    %v2661 = vmul.f32 %v2652, %v2660
    %v2662 = vadd.f32 %v2661, 1.1283791
    %v2663 = vmul.f32 %v2522, %v2662
    %v2664 = vmul.f32 %v2652, 3.8918573e-05
    %v2665 = vadd.f32 %v2664, 0.001143296
    %v2666 = vmul.f32 %v2652, %v2665
    %v2667 = vadd.f32 %v2666, 0.014752088
    %v2668 = vmul.f32 %v2652, %v2667
    %v2669 = vadd.f32 %v2668, 0.112945676
    %v2670 = vmul.f32 %v2652, %v2669
    %v2671 = vadd.f32 %v2670, 0.4994258
    %v2672 = vmul.f32 %v2652, %v2671
    %v2673 = vadd.f32 %v2672, 1.0
    %v2674 = vrcp.pop %v2673
    %v2675 = vmul.f32 %v2673, %v2674
    %v2676 = vsub.f32 1.0, %v2675
    %v2677 = vmul.f32 %v2674, %v2676
    %v2678 = vadd.f32 %v2674, %v2677
    %vm2679 = vweird.f32 %v2673
    %vm2680 = vweird.f32 %v2674
    %vm2681 = vmor %vm2679, %vm2680
    %v2682 = vsel %vm2681, %v2674, %v2678
    %v2683 = vand.u32 2147483647, %v2673
    %vm2684 = vcmp.eq.f32.partialorder %v2683, 8.507059e+37
    %v2685 = vand.u32 %v2673, 2147483648
    %v2686 = vor.u32 1.1754944e-38, %v2685
    %v2687 = vsel %vm2684, %v2686, %v2682
    %v2688 = vmul.f32 %v2663, %v2687
    %v2689 = vmin.f32 %v2688, 1.0
    %v2690 = vmax.f32 %v2689, -1.0
    %v2691 = vmul.f32 %v2523, %v2523
    %v2692 = vmin.f32 16.0, %v2691
    %v2693 = vmul.f32 %v2692, 2.1237322e-06
    %v2694 = vadd.f32 %v2693, 0.00028619796
    %v2695 = vmul.f32 %v2692, %v2694
    %v2696 = vadd.f32 %v2695, 0.0036580483
    %v2697 = vmul.f32 %v2692, %v2696
    %v2698 = vadd.f32 %v2697, 0.05243302
    %v2699 = vmul.f32 %v2692, %v2698
    %v2700 = vadd.f32 %v2699, 0.18741608
    %v2701 = vmul.f32 %v2692, %v2700
    %v2702 = vadd.f32 %v2701, 1.1283791
    %v2703 = vmul.f32 %v2523, %v2702
    %v2704 = vmul.f32 %v2692, 3.8918573e-05
    %v2705 = vadd.f32 %v2704, 0.001143296
    %v2706 = vmul.f32 %v2692, %v2705
    %v2707 = vadd.f32 %v2706, 0.014752088
    %v2708 = vmul.f32 %v2692, %v2707
    %v2709 = vadd.f32 %v2708, 0.112945676
    %v2710 = vmul.f32 %v2692, %v2709
    %v2711 = vadd.f32 %v2710, 0.4994258
    %v2712 = vmul.f32 %v2692, %v2711
    %v2713 = vadd.f32 %v2712, 1.0
    %v2714 = vrcp.pop %v2713
    %v2715 = vmul.f32 %v2713, %v2714
    %v2716 = vsub.f32 1.0, %v2715
    %v2717 = vmul.f32 %v2714, %v2716
    %v2718 = vadd.f32 %v2714, %v2717
    %vm2719 = vweird.f32 %v2713
    %vm2720 = vweird.f32 %v2714
    %vm2721 = vmor %vm2719, %vm2720
    %v2722 = vsel %vm2721, %v2714, %v2718
    %v2723 = vand.u32 2147483647, %v2713
    %vm2724 = vcmp.eq.f32.partialorder %v2723, 8.507059e+37
    %v2725 = vand.u32 %v2713, 2147483648
    %v2726 = vor.u32 1.1754944e-38, %v2725
    %v2727 = vsel %vm2724, %v2726, %v2722
    %v2728 = vmul.f32 %v2703, %v2727
    %v2729 = vmin.f32 %v2728, 1.0
    %v2730 = vmax.f32 %v2729, -1.0
    %v2731 = vmul.f32 %v2524, %v2524
    %v2732 = vmin.f32 16.0, %v2731
    %v2733 = vmul.f32 %v2732, 2.1237322e-06
    %v2734 = vadd.f32 %v2733, 0.00028619796
    %v2735 = vmul.f32 %v2732, %v2734
    %v2736 = vadd.f32 %v2735, 0.0036580483
    %v2737 = vmul.f32 %v2732, %v2736
    %v2738 = vadd.f32 %v2737, 0.05243302
    %v2739 = vmul.f32 %v2732, %v2738
    %v2740 = vadd.f32 %v2739, 0.18741608
    %v2741 = vmul.f32 %v2732, %v2740
    %v2742 = vadd.f32 %v2741, 1.1283791
    %v2743 = vmul.f32 %v2524, %v2742
    %v2744 = vmul.f32 %v2732, 3.8918573e-05
    %v2745 = vadd.f32 %v2744, 0.001143296
    %v2746 = vmul.f32 %v2732, %v2745
    %v2747 = vadd.f32 %v2746, 0.014752088
    %v2748 = vmul.f32 %v2732, %v2747
    %v2749 = vadd.f32 %v2748, 0.112945676
    %v2750 = vmul.f32 %v2732, %v2749
    %v2751 = vadd.f32 %v2750, 0.4994258
    %v2752 = vmul.f32 %v2732, %v2751
    %v2753 = vadd.f32 %v2752, 1.0
    %v2754 = vrcp.pop %v2753
    %v2755 = vmul.f32 %v2753, %v2754
    %v2756 = vsub.f32 1.0, %v2755
    %v2757 = vmul.f32 %v2754, %v2756
    %v2758 = vadd.f32 %v2754, %v2757
    %vm2759 = vweird.f32 %v2753
    %vm2760 = vweird.f32 %v2754
    %vm2761 = vmor %vm2759, %vm2760
    %v2762 = vsel %vm2761, %v2754, %v2758
    %v2763 = vand.u32 2147483647, %v2753
    %vm2764 = vcmp.eq.f32.partialorder %v2763, 8.507059e+37
    %v2765 = vand.u32 %v2753, 2147483648
    %v2766 = vor.u32 1.1754944e-38, %v2765
    %v2767 = vsel %vm2764, %v2766, %v2762
    %v2768 = vmul.f32 %v2743, %v2767
    %v2769 = vmin.f32 %v2768, 1.0
    %v2770 = vmax.f32 %v2769, -1.0
    %v2771 = vmul.f32 %v2525, %v2525
    %v2772 = vmin.f32 16.0, %v2771
    %v2773 = vmul.f32 %v2772, 2.1237322e-06
    %v2774 = vadd.f32 %v2773, 0.00028619796
    %v2775 = vmul.f32 %v2772, %v2774
    %v2776 = vadd.f32 %v2775, 0.0036580483
    %v2777 = vmul.f32 %v2772, %v2776
    %v2778 = vadd.f32 %v2777, 0.05243302
    %v2779 = vmul.f32 %v2772, %v2778
    %v2780 = vadd.f32 %v2779, 0.18741608
    %v2781 = vmul.f32 %v2772, %v2780
    %v2782 = vadd.f32 %v2781, 1.1283791
    %v2783 = vmul.f32 %v2525, %v2782
    %v2784 = vmul.f32 %v2772, 3.8918573e-05
    %v2785 = vadd.f32 %v2784, 0.001143296
    %v2786 = vmul.f32 %v2772, %v2785
    %v2787 = vadd.f32 %v2786, 0.014752088
    %v2788 = vmul.f32 %v2772, %v2787
    %v2789 = vadd.f32 %v2788, 0.112945676
    %v2790 = vmul.f32 %v2772, %v2789
    %v2791 = vadd.f32 %v2790, 0.4994258
    %v2792 = vmul.f32 %v2772, %v2791
    %v2793 = vadd.f32 %v2792, 1.0
    %v2794 = vrcp.pop %v2793
    %v2795 = vmul.f32 %v2793, %v2794
    %v2796 = vsub.f32 1.0, %v2795
    %v2797 = vmul.f32 %v2794, %v2796
    %v2798 = vadd.f32 %v2794, %v2797
    %vm2799 = vweird.f32 %v2793
    %vm2800 = vweird.f32 %v2794
    %vm2801 = vmor %vm2799, %vm2800
    %v2802 = vsel %vm2801, %v2794, %v2798
    %v2803 = vand.u32 2147483647, %v2793
    %vm2804 = vcmp.eq.f32.partialorder %v2803, 8.507059e+37
    %v2805 = vand.u32 %v2793, 2147483648
    %v2806 = vor.u32 1.1754944e-38, %v2805
    %v2807 = vsel %vm2804, %v2806, %v2802
    %v2808 = vmul.f32 %v2783, %v2807
    %v2809 = vmin.f32 %v2808, 1.0
    %v2810 = vmax.f32 %v2809, -1.0
    %v2811 = vmul.f32 %v2526, %v2526
    %v2812 = vmin.f32 16.0, %v2811
    %v2813 = vmul.f32 %v2812, 2.1237322e-06
    %v2814 = vadd.f32 %v2813, 0.00028619796
    %v2815 = vmul.f32 %v2812, %v2814
    %v2816 = vadd.f32 %v2815, 0.0036580483
    %v2817 = vmul.f32 %v2812, %v2816
    %v2818 = vadd.f32 %v2817, 0.05243302
    %v2819 = vmul.f32 %v2812, %v2818
    %v2820 = vadd.f32 %v2819, 0.18741608
    %v2821 = vmul.f32 %v2812, %v2820
    %v2822 = vadd.f32 %v2821, 1.1283791
    %v2823 = vmul.f32 %v2526, %v2822
    %v2824 = vmul.f32 %v2812, 3.8918573e-05
    %v2825 = vadd.f32 %v2824, 0.001143296
    %v2826 = vmul.f32 %v2812, %v2825
    %v2827 = vadd.f32 %v2826, 0.014752088
    %v2828 = vmul.f32 %v2812, %v2827
    %v2829 = vadd.f32 %v2828, 0.112945676
    %v2830 = vmul.f32 %v2812, %v2829
    %v2831 = vadd.f32 %v2830, 0.4994258
    %v2832 = vmul.f32 %v2812, %v2831
    %v2833 = vadd.f32 %v2832, 1.0
    %v2834 = vrcp.pop %v2833
    %v2835 = vmul.f32 %v2833, %v2834
    %v2836 = vsub.f32 1.0, %v2835
    %v2837 = vmul.f32 %v2834, %v2836
    %v2838 = vadd.f32 %v2834, %v2837
    %vm2839 = vweird.f32 %v2833
    %vm2840 = vweird.f32 %v2834
    %vm2841 = vmor %vm2839, %vm2840
    %v2842 = vsel %vm2841, %v2834, %v2838
    %v2843 = vand.u32 2147483647, %v2833
    %vm2844 = vcmp.eq.f32.partialorder %v2843, 8.507059e+37
    %v2845 = vand.u32 %v2833, 2147483648
    %v2846 = vor.u32 1.1754944e-38, %v2845
    %v2847 = vsel %vm2844, %v2846, %v2842
    %v2848 = vmul.f32 %v2823, %v2847
    %v2849 = vmin.f32 %v2848, 1.0
    %v2850 = vmax.f32 %v2849, -1.0
    %v2851 = vmul.f32 %v2527, %v2527
    %v2852 = vmin.f32 16.0, %v2851
    %v2853 = vmul.f32 %v2852, 2.1237322e-06
    %v2854 = vadd.f32 %v2853, 0.00028619796
    %v2855 = vmul.f32 %v2852, %v2854
    %v2856 = vadd.f32 %v2855, 0.0036580483
    %v2857 = vmul.f32 %v2852, %v2856
    %v2858 = vadd.f32 %v2857, 0.05243302
    %v2859 = vmul.f32 %v2852, %v2858
    %v2860 = vadd.f32 %v2859, 0.18741608
    %v2861 = vmul.f32 %v2852, %v2860
    %v2862 = vadd.f32 %v2861, 1.1283791
    %v2863 = vmul.f32 %v2527, %v2862
    %v2864 = vmul.f32 %v2852, 3.8918573e-05
    %v2865 = vadd.f32 %v2864, 0.001143296
    %v2866 = vmul.f32 %v2852, %v2865
    %v2867 = vadd.f32 %v2866, 0.014752088
    %v2868 = vmul.f32 %v2852, %v2867
    %v2869 = vadd.f32 %v2868, 0.112945676
    %v2870 = vmul.f32 %v2852, %v2869
    %v2871 = vadd.f32 %v2870, 0.4994258
    %v2872 = vmul.f32 %v2852, %v2871
    %v2873 = vadd.f32 %v2872, 1.0
    %v2874 = vrcp.pop %v2873
    %v2875 = vmul.f32 %v2873, %v2874
    %v2876 = vsub.f32 1.0, %v2875
    %v2877 = vmul.f32 %v2874, %v2876
    %v2878 = vadd.f32 %v2874, %v2877
    %vm2879 = vweird.f32 %v2873
    %vm2880 = vweird.f32 %v2874
    %vm2881 = vmor %vm2879, %vm2880
    %v2882 = vsel %vm2881, %v2874, %v2878
    %v2883 = vand.u32 2147483647, %v2873
    %vm2884 = vcmp.eq.f32.partialorder %v2883, 8.507059e+37
    %v2885 = vand.u32 %v2873, 2147483648
    %v2886 = vor.u32 1.1754944e-38, %v2885
    %v2887 = vsel %vm2884, %v2886, %v2882
    %v2888 = vmul.f32 %v2863, %v2887
    %v2889 = vmin.f32 %v2888, 1.0
    %v2890 = vmax.f32 %v2889, -1.0
    %v2891 = vmul.f32 %v2528, %v2528
    %v2892 = vmin.f32 16.0, %v2891
    %v2893 = vmul.f32 %v2892, 2.1237322e-06
    %v2894 = vadd.f32 %v2893, 0.00028619796
    %v2895 = vmul.f32 %v2892, %v2894
    %v2896 = vadd.f32 %v2895, 0.0036580483
    %v2897 = vmul.f32 %v2892, %v2896
    %v2898 = vadd.f32 %v2897, 0.05243302
    %v2899 = vmul.f32 %v2892, %v2898
    %v2900 = vadd.f32 %v2899, 0.18741608
    %v2901 = vmul.f32 %v2892, %v2900
    %v2902 = vadd.f32 %v2901, 1.1283791
    %v2903 = vmul.f32 %v2528, %v2902
    %v2904 = vmul.f32 %v2892, 3.8918573e-05
    %v2905 = vadd.f32 %v2904, 0.001143296
    %v2906 = vmul.f32 %v2892, %v2905
    %v2907 = vadd.f32 %v2906, 0.014752088
    %v2908 = vmul.f32 %v2892, %v2907
    %v2909 = vadd.f32 %v2908, 0.112945676
    %v2910 = vmul.f32 %v2892, %v2909
    %v2911 = vadd.f32 %v2910, 0.4994258
    %v2912 = vmul.f32 %v2892, %v2911
    %v2913 = vadd.f32 %v2912, 1.0
    %v2914 = vrcp.pop %v2913
    %v2915 = vmul.f32 %v2913, %v2914
    %v2916 = vsub.f32 1.0, %v2915
    %v2917 = vmul.f32 %v2914, %v2916
    %v2918 = vadd.f32 %v2914, %v2917
    %vm2919 = vweird.f32 %v2913
    %vm2920 = vweird.f32 %v2914
    %vm2921 = vmor %vm2919, %vm2920
    %v2922 = vsel %vm2921, %v2914, %v2918
    %v2923 = vand.u32 2147483647, %v2913
    %vm2924 = vcmp.eq.f32.partialorder %v2923, 8.507059e+37
    %v2925 = vand.u32 %v2913, 2147483648
    %v2926 = vor.u32 1.1754944e-38, %v2925
    %v2927 = vsel %vm2924, %v2926, %v2922
    %v2928 = vmul.f32 %v2903, %v2927
    %v2929 = vmin.f32 %v2928, 1.0
    %v2930 = vmax.f32 %v2929, -1.0
    %v2931 = vmul.f32 %v2529, %v2529
    %v2932 = vmin.f32 16.0, %v2931
    %v2933 = vmul.f32 %v2932, 2.1237322e-06
    %v2934 = vadd.f32 %v2933, 0.00028619796
    %v2935 = vmul.f32 %v2932, %v2934
    %v2936 = vadd.f32 %v2935, 0.0036580483
    %v2937 = vmul.f32 %v2932, %v2936
    %v2938 = vadd.f32 %v2937, 0.05243302
    %v2939 = vmul.f32 %v2932, %v2938
    %v2940 = vadd.f32 %v2939, 0.18741608
    %v2941 = vmul.f32 %v2932, %v2940
    %v2942 = vadd.f32 %v2941, 1.1283791
    %v2943 = vmul.f32 %v2529, %v2942
    %v2944 = vmul.f32 %v2932, 3.8918573e-05
    %v2945 = vadd.f32 %v2944, 0.001143296
    %v2946 = vmul.f32 %v2932, %v2945
    %v2947 = vadd.f32 %v2946, 0.014752088
    %v2948 = vmul.f32 %v2932, %v2947
    %v2949 = vadd.f32 %v2948, 0.112945676
    %v2950 = vmul.f32 %v2932, %v2949
    %v2951 = vadd.f32 %v2950, 0.4994258
    %v2952 = vmul.f32 %v2932, %v2951
    %v2953 = vadd.f32 %v2952, 1.0
    %v2954 = vrcp.pop %v2953
    %v2955 = vmul.f32 %v2953, %v2954
    %v2956 = vsub.f32 1.0, %v2955
    %v2957 = vmul.f32 %v2954, %v2956
    %v2958 = vadd.f32 %v2954, %v2957
    %vm2959 = vweird.f32 %v2953
    %vm2960 = vweird.f32 %v2954
    %vm2961 = vmor %vm2959, %vm2960
    %v2962 = vsel %vm2961, %v2954, %v2958
    %v2963 = vand.u32 2147483647, %v2953
    %vm2964 = vcmp.eq.f32.partialorder %v2963, 8.507059e+37
    %v2965 = vand.u32 %v2953, 2147483648
    %v2966 = vor.u32 1.1754944e-38, %v2965
    %v2967 = vsel %vm2964, %v2966, %v2962
    %v2968 = vmul.f32 %v2943, %v2967
    %v2969 = vmin.f32 %v2968, 1.0
    %v2970 = vmax.f32 %v2969, -1.0
    %v2971 = vmul.f32 %v2530, %v2530
    %v2972 = vmin.f32 16.0, %v2971
    %v2973 = vmul.f32 %v2972, 2.1237322e-06
    %v2974 = vadd.f32 %v2973, 0.00028619796
    %v2975 = vmul.f32 %v2972, %v2974
    %v2976 = vadd.f32 %v2975, 0.0036580483
    %v2977 = vmul.f32 %v2972, %v2976
    %v2978 = vadd.f32 %v2977, 0.05243302
    %v2979 = vmul.f32 %v2972, %v2978
    %v2980 = vadd.f32 %v2979, 0.18741608
    %v2981 = vmul.f32 %v2972, %v2980
    %v2982 = vadd.f32 %v2981, 1.1283791
    %v2983 = vmul.f32 %v2530, %v2982
    %v2984 = vmul.f32 %v2972, 3.8918573e-05
    %v2985 = vadd.f32 %v2984, 0.001143296
    %v2986 = vmul.f32 %v2972, %v2985
    %v2987 = vadd.f32 %v2986, 0.014752088
    %v2988 = vmul.f32 %v2972, %v2987
    %v2989 = vadd.f32 %v2988, 0.112945676
    %v2990 = vmul.f32 %v2972, %v2989
    %v2991 = vadd.f32 %v2990, 0.4994258
    %v2992 = vmul.f32 %v2972, %v2991
    %v2993 = vadd.f32 %v2992, 1.0
    %v2994 = vrcp.pop %v2993
    %v2995 = vmul.f32 %v2993, %v2994
    %v2996 = vsub.f32 1.0, %v2995
    %v2997 = vmul.f32 %v2994, %v2996
    %v2998 = vadd.f32 %v2994, %v2997
    %vm2999 = vweird.f32 %v2993
    %vm3000 = vweird.f32 %v2994
    %vm3001 = vmor %vm2999, %vm3000
    %v3002 = vsel %vm3001, %v2994, %v2998
    %v3003 = vand.u32 2147483647, %v2993
    %vm3004 = vcmp.eq.f32.partialorder %v3003, 8.507059e+37
    %v3005 = vand.u32 %v2993, 2147483648
    %v3006 = vor.u32 1.1754944e-38, %v3005
    %v3007 = vsel %vm3004, %v3006, %v3002
    %v3008 = vmul.f32 %v2983, %v3007
    %v3009 = vmin.f32 %v3008, 1.0
    %v3010 = vmax.f32 %v3009, -1.0
    %v3011 = vadd.f32 %v2570, 1.0
    %v3012 = vadd.f32 %v2610, 1.0
    %v3013 = vadd.f32 %v2650, 1.0
    %v3014 = vadd.f32 %v2690, 1.0
    %v3015 = vadd.f32 %v2730, 1.0
    %v3016 = vadd.f32 %v2770, 1.0
    %v3017 = vadd.f32 %v2810, 1.0
    %v3018 = vadd.f32 %v2850, 1.0
    %v3019 = vadd.f32 %v2890, 1.0
    %v3020 = vadd.f32 %v2930, 1.0
    %v3021 = vadd.f32 %v2970, 1.0
    %v3022 = vadd.f32 %v3010, 1.0
    %v3023 = vmul.f32 %v2507, %v3011
    %v3024 = vmul.f32 %v2508, %v3012
    %v3025 = vmul.f32 %v2509, %v3013
    %v3026 = vmul.f32 %v2510, %v3014
    %v3027 = vmul.f32 %v2511, %v3015
    %v3028 = vmul.f32 %v2512, %v3016
    %v3029 = vmul.f32 %v2513, %v3017
    %v3030 = vmul.f32 %v2514, %v3018
    %v3031 = vmul.f32 %v2515, %v3019
    %v3032 = vmul.f32 %v2516, %v3020
    %v3033 = vmul.f32 %v2517, %v3021
    %v3034 = vmul.f32 %v2518, %v3022
    %v3035 = vpack.c.bf16 %v3029, %v3023
    %v3036 = vpack.c.bf16 %v3030, %v3024
    %v3037 = vpack.c.bf16 %v3031, %v3025
    %v3038 = vpack.c.bf16 %v3032, %v3026
    %v3039 = vpack.c.bf16 %v3033, %v3027
    %v3040 = vpack.c.bf16 %v3034, %v3028
    %v3041 = vld [vmem:[%s6] sm:$0xf]
    %v3042 = vld [vmem:[%s6 + $0x4] sm:$0xf]
    %v3043 = vld [vmem:[%s6 + $0x8] sm:$0xf]
    %v3044 = vld [vmem:[%s6 + $0xc] sm:$0xf]
    %v3045 = vld [vmem:[%s6 + $0x10] sm:$0xf]
    %v3046 = vld [vmem:[%s6 + $0x14] sm:$0xf]
    %v3047 = vld [vmem:[%s6 + $0x18] sm:$0xf]
    %v3048 = vld [vmem:[%s6 + $0x1c] sm:$0xf]
    %v3049 = vld [vmem:[%s6 + $0x20] sm:$0xf]
    %v3050 = vld [vmem:[%s6 + $0x24] sm:$0xf]
    %v3051 = vld [vmem:[%s6 + $0x28] sm:$0xf]
    %v3052 = vld [vmem:[%s6 + $0x2c] sm:$0xf]
    %v3053 = vld [vmem:[%s6 + $0x30] sm:$0xf]
    %v3054 = vld [vmem:[%s6 + $0x34] sm:$0xf]
    %v3055 = vld [vmem:[%s6 + $0x38] sm:$0xf]
    %v3056 = vld [vmem:[%s6 + $0x3c] sm:$0xf]
    %v3057 = vld [vmem:[%s6 + $0x40] sm:$0xf]
    %v3058 = vld [vmem:[%s6 + $0x44] sm:$0xf]
    %v3059 = vld [vmem:[%s6 + $0x48] sm:$0xf]
    %v3060 = vld [vmem:[%s6 + $0x4c] sm:$0xf]
    %v3061 = vld [vmem:[%s6 + $0x50] sm:$0xf]
    %v3062 = vld [vmem:[%s6 + $0x54] sm:$0xf]
    %v3063 = vld [vmem:[%s6 + $0x58] sm:$0xf]
    %v3064 = vld [vmem:[%s6 + $0x5c] sm:$0xf]
    %v3065 = vld [vmem:[%s6 + $0x60] sm:$0xf]
    %v3066 = vld [vmem:[%s6 + $0x64] sm:$0xf]
    %v3067 = vld [vmem:[%s6 + $0x68] sm:$0xf]
    %v3068 = vld [vmem:[%s6 + $0x6c] sm:$0xf]
    %v3069 = vld [vmem:[%s6 + $0x70] sm:$0xf]
    %v3070 = vld [vmem:[%s6 + $0x74] sm:$0xf]
    %v3071 = vld [vmem:[%s6 + $0x78] sm:$0xf]
    %v3072 = vld [vmem:[%s6 + $0x7c] sm:$0xf]
    %v3073 = vld [vmem:[%s6 + $0x80] sm:$0xf]
    %v3074 = vld [vmem:[%s6 + $0x84] sm:$0xf]
    %v3075 = vld [vmem:[%s6 + $0x88] sm:$0xf]
    %v3076 = vld [vmem:[%s6 + $0x8c] sm:$0xf]
    %v3077 = vld [vmem:[%s6 + $0x90] sm:$0xf]
    %v3078 = vld [vmem:[%s6 + $0x94] sm:$0xf]
    %v3079 = vld [vmem:[%s6 + $0x98] sm:$0xf]
    %v3080 = vld [vmem:[%s6 + $0x9c] sm:$0xf]
    %v3081 = vld [vmem:[%s6 + $0xa0] sm:$0xf]
    %v3082 = vld [vmem:[%s6 + $0xa4] sm:$0xf]
    %v3083 = vld [vmem:[%s6 + $0xa8] sm:$0xf]
    %v3084 = vld [vmem:[%s6 + $0xac] sm:$0xf]
    %v3085 = vld [vmem:[%s6 + $0xb0] sm:$0xf]
    %v3086 = vld [vmem:[%s6 + $0xb4] sm:$0xf]
    %v3087 = vld [vmem:[%s6 + $0xb8] sm:$0xf]
    %v3088 = vld [vmem:[%s6 + $0xbc] sm:$0xf]
    %v3089 = vld [vmem:[%s6 + $0xc0] sm:$0xf]
    %v3090 = vld [vmem:[%s6 + $0xc4] sm:$0xf]
    %v3091 = vld [vmem:[%s6 + $0xc8] sm:$0xf]
    %v3092 = vld [vmem:[%s6 + $0xcc] sm:$0xf]
    %v3093 = vld [vmem:[%s6 + $0xd0] sm:$0xf]
    %v3094 = vld [vmem:[%s6 + $0xd4] sm:$0xf]
    %v3095 = vld [vmem:[%s6 + $0xd8] sm:$0xf]
    %v3096 = vld [vmem:[%s6 + $0xdc] sm:$0xf]
    %v3097 = vld [vmem:[%s6 + $0xe0] sm:$0xf]
    %v3098 = vld [vmem:[%s6 + $0xe4] sm:$0xf]
    %v3099 = vld [vmem:[%s6 + $0xe8] sm:$0xf]
    %v3100 = vld [vmem:[%s6 + $0xec] sm:$0xf]
    %v3101 = vld [vmem:[%s6 + $0xf0] sm:$0xf]
    %v3102 = vld [vmem:[%s6 + $0xf4] sm:$0xf]
    %v3103 = vld [vmem:[%s6 + $0xf8] sm:$0xf]
    %v3104 = vld [vmem:[%s6 + $0xfc] sm:$0xf]
    %v3105 = vld [vmem:[%s6 + $0x100] sm:$0xf]
    %v3106 = vld [vmem:[%s6 + $0x104] sm:$0xf]
    %v3107 = vld [vmem:[%s6 + $0x108] sm:$0xf]
    %v3108 = vld [vmem:[%s6 + $0x10c] sm:$0xf]
    %v3109 = vld [vmem:[%s6 + $0x110] sm:$0xf]
    %v3110 = vld [vmem:[%s6 + $0x114] sm:$0xf]
    %v3111 = vld [vmem:[%s6 + $0x118] sm:$0xf]
    %v3112 = vld [vmem:[%s6 + $0x11c] sm:$0xf]
    %v3113 = vld [vmem:[%s6 + $0x120] sm:$0xf]
    %v3114 = vld [vmem:[%s6 + $0x124] sm:$0xf]
    %v3115 = vld [vmem:[%s6 + $0x128] sm:$0xf]
    %v3116 = vld [vmem:[%s6 + $0x12c] sm:$0xf]
    %v3117 = vld [vmem:[%s6 + $0x130] sm:$0xf]
    %v3118 = vld [vmem:[%s6 + $0x134] sm:$0xf]
    %v3119 = vld [vmem:[%s6 + $0x138] sm:$0xf]
    %v3120 = vld [vmem:[%s6 + $0x13c] sm:$0xf]
    %v3121 = vld [vmem:[%s6 + $0x140] sm:$0xf]
    %v3122 = vld [vmem:[%s6 + $0x144] sm:$0xf]
    %v3123 = vld [vmem:[%s6 + $0x148] sm:$0xf]
    %v3124 = vld [vmem:[%s6 + $0x14c] sm:$0xf]
    %v3125 = vld [vmem:[%s6 + $0x150] sm:$0xf]
    %v3126 = vld [vmem:[%s6 + $0x154] sm:$0xf]
    %v3127 = vld [vmem:[%s6 + $0x158] sm:$0xf]
    %v3128 = vld [vmem:[%s6 + $0x15c] sm:$0xf]
    %v3129 = vld [vmem:[%s6 + $0x160] sm:$0xf]
    %v3130 = vld [vmem:[%s6 + $0x164] sm:$0xf]
    %v3131 = vld [vmem:[%s6 + $0x168] sm:$0xf]
    %v3132 = vld [vmem:[%s6 + $0x16c] sm:$0xf]
    %v3133 = vld [vmem:[%s6 + $0x170] sm:$0xf]
    %v3134 = vld [vmem:[%s6 + $0x174] sm:$0xf]
    %v3135 = vld [vmem:[%s6 + $0x178] sm:$0xf]
    %v3136 = vld [vmem:[%s6 + $0x17c] sm:$0xf]
    %v3137 = vperm.slane %v99, 0
    %v3234 = vunpack.c.l.b16 %v3041
    %v3235 = vunpack.c.l.b16 %v3042
    %v3236 = vunpack.c.l.b16 %v3043
    %v3237 = vunpack.c.l.b16 %v3044
    %v3238 = vunpack.c.l.b16 %v3045
    %v3239 = vunpack.c.l.b16 %v3046
    %v3240 = vunpack.c.l.b16 %v3047
    %v3241 = vunpack.c.l.b16 %v3048
    %v3242 = vunpack.c.l.b16 %v3049
    %v3243 = vunpack.c.l.b16 %v3050
    %v3244 = vunpack.c.l.b16 %v3051
    %v3245 = vunpack.c.l.b16 %v3052
    %v3246 = vunpack.c.l.b16 %v3053
    %v3247 = vunpack.c.l.b16 %v3054
    %v3248 = vunpack.c.l.b16 %v3055
    %v3249 = vunpack.c.l.b16 %v3056
    %v3250 = vunpack.c.l.b16 %v3057
    %v3251 = vunpack.c.l.b16 %v3058
    %v3252 = vunpack.c.l.b16 %v3059
    %v3253 = vunpack.c.l.b16 %v3060
    %v3254 = vunpack.c.l.b16 %v3061
    %v3255 = vunpack.c.l.b16 %v3062
    %v3256 = vunpack.c.l.b16 %v3063
    %v3257 = vunpack.c.l.b16 %v3064
    %v3258 = vunpack.c.l.b16 %v3065
    %v3259 = vunpack.c.l.b16 %v3066
    %v3260 = vunpack.c.l.b16 %v3067
    %v3261 = vunpack.c.l.b16 %v3068
    %v3262 = vunpack.c.l.b16 %v3069
    %v3263 = vunpack.c.l.b16 %v3070
    %v3264 = vunpack.c.l.b16 %v3071
    %v3265 = vunpack.c.l.b16 %v3072
    %v3266 = vunpack.c.l.b16 %v3073
    %v3267 = vunpack.c.l.b16 %v3074
    %v3268 = vunpack.c.l.b16 %v3075
    %v3269 = vunpack.c.l.b16 %v3076
    %v3270 = vunpack.c.l.b16 %v3077
    %v3271 = vunpack.c.l.b16 %v3078
    %v3272 = vunpack.c.l.b16 %v3079
    %v3273 = vunpack.c.l.b16 %v3080
    %v3274 = vunpack.c.l.b16 %v3081
    %v3275 = vunpack.c.l.b16 %v3082
    %v3276 = vunpack.c.l.b16 %v3083
    %v3277 = vunpack.c.l.b16 %v3084
    %v3278 = vunpack.c.l.b16 %v3085
    %v3279 = vunpack.c.l.b16 %v3086
    %v3280 = vunpack.c.l.b16 %v3087
    %v3281 = vunpack.c.l.b16 %v3088
    %v3282 = vunpack.c.l.b16 %v3089
    %v3283 = vunpack.c.l.b16 %v3090
    %v3284 = vunpack.c.l.b16 %v3091
    %v3285 = vunpack.c.l.b16 %v3092
    %v3286 = vunpack.c.l.b16 %v3093
    %v3287 = vunpack.c.l.b16 %v3094
    %v3288 = vunpack.c.l.b16 %v3095
    %v3289 = vunpack.c.l.b16 %v3096
    %v3290 = vunpack.c.l.b16 %v3097
    %v3291 = vunpack.c.l.b16 %v3098
    %v3292 = vunpack.c.l.b16 %v3099
    %v3293 = vunpack.c.l.b16 %v3100
    %v3294 = vunpack.c.l.b16 %v3101
    %v3295 = vunpack.c.l.b16 %v3102
    %v3296 = vunpack.c.l.b16 %v3103
    %v3297 = vunpack.c.l.b16 %v3104
    %v3298 = vunpack.c.l.b16 %v3105
    %v3299 = vunpack.c.l.b16 %v3106
    %v3300 = vunpack.c.l.b16 %v3107
    %v3301 = vunpack.c.l.b16 %v3108
    %v3302 = vunpack.c.l.b16 %v3109
    %v3303 = vunpack.c.l.b16 %v3110
    %v3304 = vunpack.c.l.b16 %v3111
    %v3305 = vunpack.c.l.b16 %v3112
    %v3306 = vunpack.c.l.b16 %v3113
    %v3307 = vunpack.c.l.b16 %v3114
    %v3308 = vunpack.c.l.b16 %v3115
    %v3309 = vunpack.c.l.b16 %v3116
    %v3310 = vunpack.c.l.b16 %v3117
    %v3311 = vunpack.c.l.b16 %v3118
    %v3312 = vunpack.c.l.b16 %v3119
    %v3313 = vunpack.c.l.b16 %v3120
    %v3314 = vunpack.c.l.b16 %v3121
    %v3315 = vunpack.c.l.b16 %v3122
    %v3316 = vunpack.c.l.b16 %v3123
    %v3317 = vunpack.c.l.b16 %v3124
    %v3318 = vunpack.c.l.b16 %v3125
    %v3319 = vunpack.c.l.b16 %v3126
    %v3320 = vunpack.c.l.b16 %v3127
    %v3321 = vunpack.c.l.b16 %v3128
    %v3322 = vunpack.c.l.b16 %v3129
    %v3323 = vunpack.c.l.b16 %v3130
    %v3324 = vunpack.c.l.b16 %v3131
    %v3325 = vunpack.c.l.b16 %v3132
    %v3326 = vunpack.c.l.b16 %v3133
    %v3327 = vunpack.c.l.b16 %v3134
    %v3328 = vunpack.c.l.b16 %v3135
    %v3329 = vunpack.c.l.b16 %v3136
    %v3330 = vpack.c.b16 %v3235, %v3234
    %v3331 = vpack.c.b16 %v3237, %v3236
    %v3332 = vpack.c.b16 %v3239, %v3238
    %v3333 = vpack.c.b16 %v3241, %v3240
    %v3334 = vpack.c.b16 %v3243, %v3242
    %v3335 = vpack.c.b16 %v3245, %v3244
    %v3336 = vpack.c.b16 %v3247, %v3246
    %v3337 = vpack.c.b16 %v3249, %v3248
    %v3338 = vpack.c.b16 %v3251, %v3250
    %v3339 = vpack.c.b16 %v3253, %v3252
    %v3340 = vpack.c.b16 %v3255, %v3254
    %v3341 = vpack.c.b16 %v3257, %v3256
    %v3342 = vpack.c.b16 %v3259, %v3258
    %v3343 = vpack.c.b16 %v3261, %v3260
    %v3344 = vpack.c.b16 %v3263, %v3262
    %v3345 = vpack.c.b16 %v3265, %v3264
    %v3346 = vpack.c.b16 %v3267, %v3266
    %v3347 = vpack.c.b16 %v3269, %v3268
    %v3348 = vpack.c.b16 %v3271, %v3270
    %v3349 = vpack.c.b16 %v3273, %v3272
    %v3350 = vpack.c.b16 %v3275, %v3274
    %v3351 = vpack.c.b16 %v3277, %v3276
    %v3352 = vpack.c.b16 %v3279, %v3278
    %v3353 = vpack.c.b16 %v3281, %v3280
    %v3354 = vpack.c.b16 %v3283, %v3282
    %v3355 = vpack.c.b16 %v3285, %v3284
    %v3356 = vpack.c.b16 %v3287, %v3286
    %v3357 = vpack.c.b16 %v3289, %v3288
    %v3358 = vpack.c.b16 %v3291, %v3290
    %v3359 = vpack.c.b16 %v3293, %v3292
    %v3360 = vpack.c.b16 %v3295, %v3294
    %v3361 = vpack.c.b16 %v3297, %v3296
    %v3362 = vpack.c.b16 %v3299, %v3298
    %v3363 = vpack.c.b16 %v3301, %v3300
    %v3364 = vpack.c.b16 %v3303, %v3302
    %v3365 = vpack.c.b16 %v3305, %v3304
    %v3366 = vpack.c.b16 %v3307, %v3306
    %v3367 = vpack.c.b16 %v3309, %v3308
    %v3368 = vpack.c.b16 %v3311, %v3310
    %v3369 = vpack.c.b16 %v3313, %v3312
    %v3370 = vpack.c.b16 %v3315, %v3314
    %v3371 = vpack.c.b16 %v3317, %v3316
    %v3372 = vpack.c.b16 %v3319, %v3318
    %v3373 = vpack.c.b16 %v3321, %v3320
    %v3374 = vpack.c.b16 %v3323, %v3322
    %v3375 = vpack.c.b16 %v3325, %v3324
    %v3376 = vpack.c.b16 %v3327, %v3326
    %v3377 = vpack.c.b16 %v3329, %v3328
    %3426 = vmatpush.bf16.msra.mxu0 %v3337
    %3427 = vmatpush.bf16.msra.mxu0 %v3336
    %3428 = vmatpush.bf16.msra.mxu0 %v3335
    %3429 = vmatpush.bf16.msra.mxu0 %v3334
    %3430 = vmatpush.bf16.msra.mxu0 %v3333
    %3431 = vmatpush.bf16.msra.mxu0 %v3332
    %3432 = vmatpush.bf16.msra.mxu0 %v3331
    %3433 = vmatpush.bf16.msra.mxu0 %v3330
    %3434 = vmatmul.bf16.gmra.mxu0 %v3035
    %v3435 = vpop.f32.mrf.mxu0
    %v3436 = vadd.f32 %v3137, %v3435
    %v3437 = vpop.f32.mrf.mxu0
    %v3438 = vadd.f32 %v3137, %v3437
    %3439 = vdwg.mxu0
    %3440 = vmatpush.bf16.msra.mxu0 %v3345
    %3441 = vmatpush.bf16.msra.mxu0 %v3344
    %3442 = vmatpush.bf16.msra.mxu0 %v3343
    %3443 = vmatpush.bf16.msra.mxu0 %v3342
    %3444 = vmatpush.bf16.msra.mxu0 %v3341
    %3445 = vmatpush.bf16.msra.mxu0 %v3340
    %3446 = vmatpush.bf16.msra.mxu0 %v3339
    %3447 = vmatpush.bf16.msra.mxu0 %v3338
    %3448 = vmatmul.bf16.gmra.mxu0 %v3036
    %v3449 = vpop.f32.mrf.mxu0
    %v3450 = vadd.f32 %v3436, %v3449
    %v3451 = vpop.f32.mrf.mxu0
    %v3452 = vadd.f32 %v3438, %v3451
    %3453 = vdwg.mxu0
    %3454 = vmatpush.bf16.msra.mxu0 %v3353
    %3455 = vmatpush.bf16.msra.mxu0 %v3352
    %3456 = vmatpush.bf16.msra.mxu0 %v3351
    %3457 = vmatpush.bf16.msra.mxu0 %v3350
    %3458 = vmatpush.bf16.msra.mxu0 %v3349
    %3459 = vmatpush.bf16.msra.mxu0 %v3348
    %3460 = vmatpush.bf16.msra.mxu0 %v3347
    %3461 = vmatpush.bf16.msra.mxu0 %v3346
    %3462 = vmatmul.bf16.gmra.mxu0 %v3037
    %v3463 = vpop.f32.mrf.mxu0
    %v3464 = vadd.f32 %v3450, %v3463
    %v3465 = vpop.f32.mrf.mxu0
    %v3466 = vadd.f32 %v3452, %v3465
    %3467 = vdwg.mxu0
    %3468 = vmatpush.bf16.msra.mxu0 %v3361
    %3469 = vmatpush.bf16.msra.mxu0 %v3360
    %3470 = vmatpush.bf16.msra.mxu0 %v3359
    %3471 = vmatpush.bf16.msra.mxu0 %v3358
    %3472 = vmatpush.bf16.msra.mxu0 %v3357
    %3473 = vmatpush.bf16.msra.mxu0 %v3356
    %3474 = vmatpush.bf16.msra.mxu0 %v3355
    %3475 = vmatpush.bf16.msra.mxu0 %v3354
    %3476 = vmatmul.bf16.gmra.mxu0 %v3038
    %v3477 = vpop.f32.mrf.mxu0
    %v3478 = vadd.f32 %v3464, %v3477
    %v3479 = vpop.f32.mrf.mxu0
    %v3480 = vadd.f32 %v3466, %v3479
    %3481 = vdwg.mxu0
    %3482 = vmatpush.bf16.msra.mxu0 %v3369
    %3483 = vmatpush.bf16.msra.mxu0 %v3368
    %3484 = vmatpush.bf16.msra.mxu0 %v3367
    %3485 = vmatpush.bf16.msra.mxu0 %v3366
    %3486 = vmatpush.bf16.msra.mxu0 %v3365
    %3487 = vmatpush.bf16.msra.mxu0 %v3364
    %3488 = vmatpush.bf16.msra.mxu0 %v3363
    %3489 = vmatpush.bf16.msra.mxu0 %v3362
    %3490 = vmatmul.bf16.gmra.mxu0 %v3039
    %v3491 = vpop.f32.mrf.mxu0
    %v3492 = vadd.f32 %v3478, %v3491
    %v3493 = vpop.f32.mrf.mxu0
    %v3494 = vadd.f32 %v3480, %v3493
    %3495 = vdwg.mxu0
    %3496 = vmatpush.bf16.msra.mxu0 %v3377
    %3497 = vmatpush.bf16.msra.mxu0 %v3376
    %3498 = vmatpush.bf16.msra.mxu0 %v3375
    %3499 = vmatpush.bf16.msra.mxu0 %v3374
    %3500 = vmatpush.bf16.msra.mxu0 %v3373
    %3501 = vmatpush.bf16.msra.mxu0 %v3372
    %3502 = vmatpush.bf16.msra.mxu0 %v3371
    %3503 = vmatpush.bf16.msra.mxu0 %v3370
    %3504 = vmatmul.bf16.gmra.mxu0 %v3040
    %v3505 = vpop.f32.mrf.mxu0
    %v3506 = vadd.f32 %v3492, %v3505
    %v3507 = vpop.f32.mrf.mxu0
    %v3508 = vadd.f32 %v3494, %v3507
    %3509 = vdwg.mxu0
    %v3510 = vld [vmem:[%s1] sm:$0xff]
    %v3511 = vld [vmem:[%s1 + $0x8] sm:$0xff]
    %v3512 = vld [vmem:[%s1 + $0x10] sm:$0xff]
    %v3513 = vld [vmem:[%s1 + $0x18] sm:$0xff]
    %v3514 = vld [vmem:[%s1 + $0x20] sm:$0xff]
    %v3515 = vld [vmem:[%s1 + $0x28] sm:$0xff]
    %v3516 = vld [vmem:[#allocation4] sm:$0xff]
    %v3517 = vld [vmem:[#allocation4 + $0x8] sm:$0xff]
    %v3518 = vld [vmem:[#allocation4 + $0x10] sm:$0xff]
    %v3519 = vld [vmem:[#allocation4 + $0x18] sm:$0xff]
    %v3520 = vld [vmem:[#allocation4 + $0x20] sm:$0xff]
    %v3521 = vld [vmem:[#allocation4 + $0x28] sm:$0xff]
    %v3522 = vld [vmem:[#allocation4 + $0x30] sm:$0xff]
    %v3523 = vld [vmem:[#allocation4 + $0x38] sm:$0xff]
    %v3524 = vld [vmem:[#allocation4 + $0x40] sm:$0xff]
    %v3525 = vld [vmem:[#allocation4 + $0x48] sm:$0xff]
    %v3526 = vld [vmem:[#allocation4 + $0x50] sm:$0xff]
    %v3527 = vld [vmem:[#allocation4 + $0x58] sm:$0xff]
    %v3528 = vld [vmem:[#allocation4 + $0x60] sm:$0xff]
    %v3529 = vld [vmem:[#allocation4 + $0x68] sm:$0xff]
    %v3530 = vld [vmem:[#allocation4 + $0x70] sm:$0xff]
    %v3531 = vld [vmem:[#allocation4 + $0x78] sm:$0xff]
    %v3532 = vld [vmem:[#allocation4 + $0x80] sm:$0xff]
    %v3533 = vld [vmem:[#allocation4 + $0x88] sm:$0xff]
    %v3534 = vld [vmem:[#allocation4 + $0x90] sm:$0xff]
    %v3535 = vld [vmem:[#allocation4 + $0x98] sm:$0xff]
    %v3536 = vld [vmem:[#allocation4 + $0xa0] sm:$0xff]
    %v3537 = vld [vmem:[#allocation4 + $0xa8] sm:$0xff]
    %v3538 = vld [vmem:[#allocation4 + $0xb0] sm:$0xff]
    %v3539 = vld [vmem:[#allocation4 + $0xb8] sm:$0xff]
    %v3540 = vld [vmem:[#allocation4 + $0xc0] sm:$0xff]
    %v3541 = vld [vmem:[#allocation4 + $0xc8] sm:$0xff]
    %v3542 = vld [vmem:[#allocation4 + $0xd0] sm:$0xff]
    %v3543 = vld [vmem:[#allocation4 + $0xd8] sm:$0xff]
    %v3544 = vld [vmem:[#allocation4 + $0xe0] sm:$0xff]
    %v3545 = vld [vmem:[#allocation4 + $0xe8] sm:$0xff]
    %v3546 = vld [vmem:[#allocation4 + $0xf0] sm:$0xff]
    %v3547 = vld [vmem:[#allocation4 + $0xf8] sm:$0xff]
    %v3548 = vld [vmem:[#allocation4 + $0x100] sm:$0xff]
    %v3549 = vld [vmem:[#allocation4 + $0x108] sm:$0xff]
    %v3550 = vld [vmem:[#allocation4 + $0x110] sm:$0xff]
    %v3551 = vld [vmem:[#allocation4 + $0x118] sm:$0xff]
    %v3552 = vld [vmem:[#allocation4 + $0x120] sm:$0xff]
    %v3553 = vld [vmem:[#allocation4 + $0x128] sm:$0xff]
    %v3554 = vld [vmem:[#allocation4 + $0x130] sm:$0xff]
    %v3555 = vld [vmem:[#allocation4 + $0x138] sm:$0xff]
    %v3556 = vld [vmem:[#allocation4 + $0x140] sm:$0xff]
    %v3557 = vld [vmem:[#allocation4 + $0x148] sm:$0xff]
    %v3558 = vld [vmem:[#allocation4 + $0x150] sm:$0xff]
    %v3559 = vld [vmem:[#allocation4 + $0x158] sm:$0xff]
    %v3560 = vld [vmem:[#allocation4 + $0x160] sm:$0xff]
    %v3561 = vld [vmem:[#allocation4 + $0x168] sm:$0xff]
    %v3562 = vld [vmem:[#allocation4 + $0x170] sm:$0xff]
    %v3563 = vld [vmem:[#allocation4 + $0x178] sm:$0xff]
    %v3564 = vld [vmem:[#allocation4 + $0x180] sm:$0xff]
    %v3565 = vld [vmem:[#allocation4 + $0x188] sm:$0xff]
    %v3566 = vld [vmem:[#allocation4 + $0x190] sm:$0xff]
    %v3567 = vld [vmem:[#allocation4 + $0x198] sm:$0xff]
    %v3568 = vld [vmem:[#allocation4 + $0x1a0] sm:$0xff]
    %v3569 = vld [vmem:[#allocation4 + $0x1a8] sm:$0xff]
    %v3570 = vld [vmem:[#allocation4 + $0x1b0] sm:$0xff]
    %v3571 = vld [vmem:[#allocation4 + $0x1b8] sm:$0xff]
    %v3572 = vld [vmem:[#allocation4 + $0x1c0] sm:$0xff]
    %v3573 = vld [vmem:[#allocation4 + $0x1c8] sm:$0xff]
    %v3574 = vld [vmem:[#allocation4 + $0x1d0] sm:$0xff]
    %v3575 = vld [vmem:[#allocation4 + $0x1d8] sm:$0xff]
    %v3576 = vld [vmem:[#allocation4 + $0x1e0] sm:$0xff]
    %v3577 = vld [vmem:[#allocation4 + $0x1e8] sm:$0xff]
    %v3578 = vld [vmem:[#allocation4 + $0x1f0] sm:$0xff]
    %v3579 = vld [vmem:[#allocation4 + $0x1f8] sm:$0xff]
    %v3580 = vld [vmem:[#allocation4 + $0x200] sm:$0xff]
    %v3581 = vld [vmem:[#allocation4 + $0x208] sm:$0xff]
    %v3582 = vld [vmem:[#allocation4 + $0x210] sm:$0xff]
    %v3583 = vld [vmem:[#allocation4 + $0x218] sm:$0xff]
    %v3584 = vld [vmem:[#allocation4 + $0x220] sm:$0xff]
    %v3585 = vld [vmem:[#allocation4 + $0x228] sm:$0xff]
    %v3586 = vld [vmem:[#allocation4 + $0x230] sm:$0xff]
    %v3587 = vld [vmem:[#allocation4 + $0x238] sm:$0xff]
    %v3588 = vld [vmem:[#allocation4 + $0x240] sm:$0xff]
    %v3589 = vld [vmem:[#allocation4 + $0x248] sm:$0xff]
    %v3590 = vld [vmem:[#allocation4 + $0x250] sm:$0xff]
    %v3591 = vld [vmem:[#allocation4 + $0x258] sm:$0xff]
    %v3592 = vld [vmem:[#allocation4 + $0x260] sm:$0xff]
    %v3593 = vld [vmem:[#allocation4 + $0x268] sm:$0xff]
    %v3594 = vld [vmem:[#allocation4 + $0x270] sm:$0xff]
    %v3595 = vld [vmem:[#allocation4 + $0x278] sm:$0xff]
    %v3596 = vld [vmem:[#allocation4 + $0x280] sm:$0xff]
    %v3597 = vld [vmem:[#allocation4 + $0x288] sm:$0xff]
    %v3598 = vld [vmem:[#allocation4 + $0x290] sm:$0xff]
    %v3599 = vld [vmem:[#allocation4 + $0x298] sm:$0xff]
    %v3600 = vld [vmem:[#allocation4 + $0x2a0] sm:$0xff]
    %v3601 = vld [vmem:[#allocation4 + $0x2a8] sm:$0xff]
    %v3602 = vld [vmem:[#allocation4 + $0x2b0] sm:$0xff]
    %v3603 = vld [vmem:[#allocation4 + $0x2b8] sm:$0xff]
    %v3604 = vld [vmem:[#allocation4 + $0x2c0] sm:$0xff]
    %v3605 = vld [vmem:[#allocation4 + $0x2c8] sm:$0xff]
    %v3606 = vld [vmem:[#allocation4 + $0x2d0] sm:$0xff]
    %v3607 = vld [vmem:[#allocation4 + $0x2d8] sm:$0xff]
    %v3608 = vld [vmem:[#allocation4 + $0x2e0] sm:$0xff]
    %v3609 = vld [vmem:[#allocation4 + $0x2e8] sm:$0xff]
    %v3610 = vld [vmem:[#allocation4 + $0x2f0] sm:$0xff]
    %v3611 = vld [vmem:[#allocation4 + $0x2f8] sm:$0xff]
    %v3612 = vld [vmem:[#allocation4 + $0x300] sm:$0xff]
    %v3613 = vld [vmem:[#allocation4 + $0x308] sm:$0xff]
    %v3614 = vld [vmem:[#allocation4 + $0x310] sm:$0xff]
    %v3615 = vld [vmem:[#allocation4 + $0x318] sm:$0xff]
    %v3616 = vld [vmem:[#allocation4 + $0x320] sm:$0xff]
    %v3617 = vld [vmem:[#allocation4 + $0x328] sm:$0xff]
    %v3618 = vld [vmem:[#allocation4 + $0x330] sm:$0xff]
    %v3619 = vld [vmem:[#allocation4 + $0x338] sm:$0xff]
    %v3620 = vld [vmem:[#allocation4 + $0x340] sm:$0xff]
    %v3621 = vld [vmem:[#allocation4 + $0x348] sm:$0xff]
    %v3622 = vld [vmem:[#allocation4 + $0x350] sm:$0xff]
    %v3623 = vld [vmem:[#allocation4 + $0x358] sm:$0xff]
    %v3624 = vld [vmem:[#allocation4 + $0x360] sm:$0xff]
    %v3625 = vld [vmem:[#allocation4 + $0x368] sm:$0xff]
    %v3626 = vld [vmem:[#allocation4 + $0x370] sm:$0xff]
    %v3627 = vld [vmem:[#allocation4 + $0x378] sm:$0xff]
    %v3628 = vld [vmem:[#allocation4 + $0x380] sm:$0xff]
    %v3629 = vld [vmem:[#allocation4 + $0x388] sm:$0xff]
    %v3630 = vld [vmem:[#allocation4 + $0x390] sm:$0xff]
    %v3631 = vld [vmem:[#allocation4 + $0x398] sm:$0xff]
    %v3632 = vld [vmem:[#allocation4 + $0x3a0] sm:$0xff]
    %v3633 = vld [vmem:[#allocation4 + $0x3a8] sm:$0xff]
    %v3634 = vld [vmem:[#allocation4 + $0x3b0] sm:$0xff]
    %v3635 = vld [vmem:[#allocation4 + $0x3b8] sm:$0xff]
    %v3636 = vld [vmem:[#allocation4 + $0x3c0] sm:$0xff]
    %v3637 = vld [vmem:[#allocation4 + $0x3c8] sm:$0xff]
    %v3638 = vld [vmem:[#allocation4 + $0x3d0] sm:$0xff]
    %v3639 = vld [vmem:[#allocation4 + $0x3d8] sm:$0xff]
    %v3640 = vld [vmem:[#allocation4 + $0x3e0] sm:$0xff]
    %v3641 = vld [vmem:[#allocation4 + $0x3e8] sm:$0xff]
    %v3642 = vld [vmem:[#allocation4 + $0x3f0] sm:$0xff]
    %v3643 = vld [vmem:[#allocation4 + $0x3f8] sm:$0xff]
    %v3644 = vld [vmem:[#allocation4 + $0x400] sm:$0xff]
    %v3645 = vld [vmem:[#allocation4 + $0x408] sm:$0xff]
    %v3646 = vld [vmem:[#allocation4 + $0x410] sm:$0xff]
    %v3647 = vld [vmem:[#allocation4 + $0x418] sm:$0xff]
    %v3648 = vld [vmem:[#allocation4 + $0x420] sm:$0xff]
    %v3649 = vld [vmem:[#allocation4 + $0x428] sm:$0xff]
    %v3650 = vld [vmem:[#allocation4 + $0x430] sm:$0xff]
    %v3651 = vld [vmem:[#allocation4 + $0x438] sm:$0xff]
    %v3652 = vld [vmem:[#allocation4 + $0x440] sm:$0xff]
    %v3653 = vld [vmem:[#allocation4 + $0x448] sm:$0xff]
    %v3654 = vld [vmem:[#allocation4 + $0x450] sm:$0xff]
    %v3655 = vld [vmem:[#allocation4 + $0x458] sm:$0xff]
    %v3656 = vld [vmem:[#allocation4 + $0x460] sm:$0xff]
    %v3657 = vld [vmem:[#allocation4 + $0x468] sm:$0xff]
    %v3658 = vld [vmem:[#allocation4 + $0x470] sm:$0xff]
    %v3659 = vld [vmem:[#allocation4 + $0x478] sm:$0xff]
    %v3660 = vld [vmem:[#allocation4 + $0x480] sm:$0xff]
    %v3661 = vld [vmem:[#allocation4 + $0x488] sm:$0xff]
    %v3662 = vld [vmem:[#allocation4 + $0x490] sm:$0xff]
    %v3663 = vld [vmem:[#allocation4 + $0x498] sm:$0xff]
    %v3664 = vld [vmem:[#allocation4 + $0x4a0] sm:$0xff]
    %v3665 = vld [vmem:[#allocation4 + $0x4a8] sm:$0xff]
    %v3666 = vld [vmem:[#allocation4 + $0x4b0] sm:$0xff]
    %v3667 = vld [vmem:[#allocation4 + $0x4b8] sm:$0xff]
    %v3668 = vld [vmem:[#allocation4 + $0x4c0] sm:$0xff]
    %v3669 = vld [vmem:[#allocation4 + $0x4c8] sm:$0xff]
    %v3670 = vld [vmem:[#allocation4 + $0x4d0] sm:$0xff]
    %v3671 = vld [vmem:[#allocation4 + $0x4d8] sm:$0xff]
    %v3672 = vld [vmem:[#allocation4 + $0x4e0] sm:$0xff]
    %v3673 = vld [vmem:[#allocation4 + $0x4e8] sm:$0xff]
    %v3674 = vld [vmem:[#allocation4 + $0x4f0] sm:$0xff]
    %v3675 = vld [vmem:[#allocation4 + $0x4f8] sm:$0xff]
    %v3676 = vld [vmem:[#allocation4 + $0x500] sm:$0xff]
    %v3677 = vld [vmem:[#allocation4 + $0x508] sm:$0xff]
    %v3678 = vld [vmem:[#allocation4 + $0x510] sm:$0xff]
    %v3679 = vld [vmem:[#allocation4 + $0x518] sm:$0xff]
    %v3680 = vld [vmem:[#allocation4 + $0x520] sm:$0xff]
    %v3681 = vld [vmem:[#allocation4 + $0x528] sm:$0xff]
    %v3682 = vld [vmem:[#allocation4 + $0x530] sm:$0xff]
    %v3683 = vld [vmem:[#allocation4 + $0x538] sm:$0xff]
    %v3684 = vld [vmem:[#allocation4 + $0x540] sm:$0xff]
    %v3685 = vld [vmem:[#allocation4 + $0x548] sm:$0xff]
    %v3686 = vld [vmem:[#allocation4 + $0x550] sm:$0xff]
    %v3687 = vld [vmem:[#allocation4 + $0x558] sm:$0xff]
    %v3688 = vld [vmem:[#allocation4 + $0x560] sm:$0xff]
    %v3689 = vld [vmem:[#allocation4 + $0x568] sm:$0xff]
    %v3690 = vld [vmem:[#allocation4 + $0x570] sm:$0xff]
    %v3691 = vld [vmem:[#allocation4 + $0x578] sm:$0xff]
    %v3692 = vld [vmem:[#allocation4 + $0x580] sm:$0xff]
    %v3693 = vld [vmem:[#allocation4 + $0x588] sm:$0xff]
    %v3694 = vld [vmem:[#allocation4 + $0x590] sm:$0xff]
    %v3695 = vld [vmem:[#allocation4 + $0x598] sm:$0xff]
    %v3696 = vld [vmem:[#allocation4 + $0x5a0] sm:$0xff]
    %v3697 = vld [vmem:[#allocation4 + $0x5a8] sm:$0xff]
    %v3698 = vld [vmem:[#allocation4 + $0x5b0] sm:$0xff]
    %v3699 = vld [vmem:[#allocation4 + $0x5b8] sm:$0xff]
    %v3700 = vld [vmem:[#allocation4 + $0x5c0] sm:$0xff]
    %v3701 = vld [vmem:[#allocation4 + $0x5c8] sm:$0xff]
    %v3702 = vld [vmem:[#allocation4 + $0x5d0] sm:$0xff]
    %v3703 = vld [vmem:[#allocation4 + $0x5d8] sm:$0xff]
    %v3704 = vld [vmem:[#allocation4 + $0x5e0] sm:$0xff]
    %v3705 = vld [vmem:[#allocation4 + $0x5e8] sm:$0xff]
    %v3706 = vld [vmem:[#allocation4 + $0x5f0] sm:$0xff]
    %v3707 = vld [vmem:[#allocation4 + $0x5f8] sm:$0xff]
    %v3708 = vld [vmem:[#allocation4 + $0x600] sm:$0xff]
    %v3709 = vld [vmem:[#allocation4 + $0x608] sm:$0xff]
    %v3710 = vld [vmem:[#allocation4 + $0x610] sm:$0xff]
    %v3711 = vld [vmem:[#allocation4 + $0x618] sm:$0xff]
    %v3712 = vld [vmem:[#allocation4 + $0x620] sm:$0xff]
    %v3713 = vld [vmem:[#allocation4 + $0x628] sm:$0xff]
    %v3714 = vld [vmem:[#allocation4 + $0x630] sm:$0xff]
    %v3715 = vld [vmem:[#allocation4 + $0x638] sm:$0xff]
    %v3716 = vld [vmem:[#allocation4 + $0x640] sm:$0xff]
    %v3717 = vld [vmem:[#allocation4 + $0x648] sm:$0xff]
    %v3718 = vld [vmem:[#allocation4 + $0x650] sm:$0xff]
    %v3719 = vld [vmem:[#allocation4 + $0x658] sm:$0xff]
    %v3720 = vld [vmem:[#allocation4 + $0x660] sm:$0xff]
    %v3721 = vld [vmem:[#allocation4 + $0x668] sm:$0xff]
    %v3722 = vld [vmem:[#allocation4 + $0x670] sm:$0xff]
    %v3723 = vld [vmem:[#allocation4 + $0x678] sm:$0xff]
    %v3724 = vld [vmem:[#allocation4 + $0x680] sm:$0xff]
    %v3725 = vld [vmem:[#allocation4 + $0x688] sm:$0xff]
    %v3726 = vld [vmem:[#allocation4 + $0x690] sm:$0xff]
    %v3727 = vld [vmem:[#allocation4 + $0x698] sm:$0xff]
    %v3728 = vld [vmem:[#allocation4 + $0x6a0] sm:$0xff]
    %v3729 = vld [vmem:[#allocation4 + $0x6a8] sm:$0xff]
    %v3730 = vld [vmem:[#allocation4 + $0x6b0] sm:$0xff]
    %v3731 = vld [vmem:[#allocation4 + $0x6b8] sm:$0xff]
    %v3732 = vld [vmem:[#allocation4 + $0x6c0] sm:$0xff]
    %v3733 = vld [vmem:[#allocation4 + $0x6c8] sm:$0xff]
    %v3734 = vld [vmem:[#allocation4 + $0x6d0] sm:$0xff]
    %v3735 = vld [vmem:[#allocation4 + $0x6d8] sm:$0xff]
    %v3736 = vld [vmem:[#allocation4 + $0x6e0] sm:$0xff]
    %v3737 = vld [vmem:[#allocation4 + $0x6e8] sm:$0xff]
    %v3738 = vld [vmem:[#allocation4 + $0x6f0] sm:$0xff]
    %v3739 = vld [vmem:[#allocation4 + $0x6f8] sm:$0xff]
    %v3740 = vld [vmem:[#allocation4 + $0x700] sm:$0xff]
    %v3741 = vld [vmem:[#allocation4 + $0x708] sm:$0xff]
    %v3742 = vld [vmem:[#allocation4 + $0x710] sm:$0xff]
    %v3743 = vld [vmem:[#allocation4 + $0x718] sm:$0xff]
    %v3744 = vld [vmem:[#allocation4 + $0x720] sm:$0xff]
    %v3745 = vld [vmem:[#allocation4 + $0x728] sm:$0xff]
    %v3746 = vld [vmem:[#allocation4 + $0x730] sm:$0xff]
    %v3747 = vld [vmem:[#allocation4 + $0x738] sm:$0xff]
    %v3748 = vld [vmem:[#allocation4 + $0x740] sm:$0xff]
    %v3749 = vld [vmem:[#allocation4 + $0x748] sm:$0xff]
    %v3750 = vld [vmem:[#allocation4 + $0x750] sm:$0xff]
    %v3751 = vld [vmem:[#allocation4 + $0x758] sm:$0xff]
    %v3752 = vld [vmem:[#allocation4 + $0x760] sm:$0xff]
    %v3753 = vld [vmem:[#allocation4 + $0x768] sm:$0xff]
    %v3754 = vld [vmem:[#allocation4 + $0x770] sm:$0xff]
    %v3755 = vld [vmem:[#allocation4 + $0x778] sm:$0xff]
    %v3756 = vld [vmem:[#allocation4 + $0x780] sm:$0xff]
    %v3757 = vld [vmem:[#allocation4 + $0x788] sm:$0xff]
    %v3758 = vld [vmem:[#allocation4 + $0x790] sm:$0xff]
    %v3759 = vld [vmem:[#allocation4 + $0x798] sm:$0xff]
    %v3760 = vld [vmem:[#allocation4 + $0x7a0] sm:$0xff]
    %v3761 = vld [vmem:[#allocation4 + $0x7a8] sm:$0xff]
    %v3762 = vld [vmem:[#allocation4 + $0x7b0] sm:$0xff]
    %v3763 = vld [vmem:[#allocation4 + $0x7b8] sm:$0xff]
    %v3764 = vld [vmem:[#allocation4 + $0x7c0] sm:$0xff]
    %v3765 = vld [vmem:[#allocation4 + $0x7c8] sm:$0xff]
    %v3766 = vld [vmem:[#allocation4 + $0x7d0] sm:$0xff]
    %v3767 = vld [vmem:[#allocation4 + $0x7d8] sm:$0xff]
    %v3768 = vld [vmem:[#allocation4 + $0x7e0] sm:$0xff]
    %v3769 = vld [vmem:[#allocation4 + $0x7e8] sm:$0xff]
    %v3770 = vld [vmem:[#allocation4 + $0x7f0] sm:$0xff]
    %v3771 = vld [vmem:[#allocation4 + $0x7f8] sm:$0xff]
    %v3772 = vld [vmem:[#allocation4 + $0x800] sm:$0xff]
    %v3773 = vld [vmem:[#allocation4 + $0x808] sm:$0xff]
    %v3774 = vld [vmem:[#allocation4 + $0x810] sm:$0xff]
    %v3775 = vld [vmem:[#allocation4 + $0x818] sm:$0xff]
    %v3776 = vld [vmem:[#allocation4 + $0x820] sm:$0xff]
    %v3777 = vld [vmem:[#allocation4 + $0x828] sm:$0xff]
    %v3778 = vld [vmem:[#allocation4 + $0x830] sm:$0xff]
    %v3779 = vld [vmem:[#allocation4 + $0x838] sm:$0xff]
    %v3780 = vld [vmem:[#allocation4 + $0x840] sm:$0xff]
    %v3781 = vld [vmem:[#allocation4 + $0x848] sm:$0xff]
    %v3782 = vld [vmem:[#allocation4 + $0x850] sm:$0xff]
    %v3783 = vld [vmem:[#allocation4 + $0x858] sm:$0xff]
    %v3784 = vld [vmem:[#allocation4 + $0x860] sm:$0xff]
    %v3785 = vld [vmem:[#allocation4 + $0x868] sm:$0xff]
    %v3786 = vld [vmem:[#allocation4 + $0x870] sm:$0xff]
    %v3787 = vld [vmem:[#allocation4 + $0x878] sm:$0xff]
    %v3788 = vld [vmem:[#allocation4 + $0x880] sm:$0xff]
    %v3789 = vld [vmem:[#allocation4 + $0x888] sm:$0xff]
    %v3790 = vld [vmem:[#allocation4 + $0x890] sm:$0xff]
    %v3791 = vld [vmem:[#allocation4 + $0x898] sm:$0xff]
    %v3792 = vld [vmem:[#allocation4 + $0x8a0] sm:$0xff]
    %v3793 = vld [vmem:[#allocation4 + $0x8a8] sm:$0xff]
    %v3794 = vld [vmem:[#allocation4 + $0x8b0] sm:$0xff]
    %v3795 = vld [vmem:[#allocation4 + $0x8b8] sm:$0xff]
    %v3796 = vld [vmem:[#allocation4 + $0x8c0] sm:$0xff]
    %v3797 = vld [vmem:[#allocation4 + $0x8c8] sm:$0xff]
    %v3798 = vld [vmem:[#allocation4 + $0x8d0] sm:$0xff]
    %v3799 = vld [vmem:[#allocation4 + $0x8d8] sm:$0xff]
    %v3800 = vld [vmem:[#allocation4 + $0x8e0] sm:$0xff]
    %v3801 = vld [vmem:[#allocation4 + $0x8e8] sm:$0xff]
    %v3802 = vld [vmem:[#allocation4 + $0x8f0] sm:$0xff]
    %v3803 = vld [vmem:[#allocation4 + $0x8f8] sm:$0xff]
    %v3810 = vunpack.c.l.b16 %v3510
    %v3811 = vunpack.c.h.b16 %v3510
    %v3812 = vunpack.c.l.b16 %v3511
    %v3813 = vunpack.c.h.b16 %v3511
    %v3814 = vunpack.c.l.b16 %v3512
    %v3815 = vunpack.c.h.b16 %v3512
    %v3816 = vunpack.c.l.b16 %v3513
    %v3817 = vunpack.c.h.b16 %v3513
    %v3818 = vunpack.c.l.b16 %v3514
    %v3819 = vunpack.c.h.b16 %v3514
    %v3820 = vunpack.c.l.b16 %v3515
    %v3821 = vunpack.c.h.b16 %v3515
    %v3822 = vpack.c.b16 %v3816, %v3810
    %v3823 = vpack.c.b16 %v3817, %v3811
    %v3824 = vpack.c.b16 %v3818, %v3812
    %v3825 = vpack.c.b16 %v3819, %v3813
    %v3826 = vpack.c.b16 %v3820, %v3814
    %v3827 = vpack.c.b16 %v3821, %v3815
    %v4122 = vunpack.c.l.b16 %v3516
    %v4123 = vunpack.c.h.b16 %v3516
    %v4124 = vunpack.c.l.b16 %v3517
    %v4125 = vunpack.c.h.b16 %v3517
    %v4126 = vunpack.c.l.b16 %v3518
    %v4127 = vunpack.c.h.b16 %v3518
    %v4128 = vunpack.c.l.b16 %v3519
    %v4129 = vunpack.c.h.b16 %v3519
    %v4130 = vunpack.c.l.b16 %v3520
    %v4131 = vunpack.c.h.b16 %v3520
    %v4132 = vunpack.c.l.b16 %v3521
    %v4133 = vunpack.c.h.b16 %v3521
    %v4134 = vunpack.c.l.b16 %v3522
    %v4135 = vunpack.c.h.b16 %v3522
    %v4136 = vunpack.c.l.b16 %v3523
    %v4137 = vunpack.c.h.b16 %v3523
    %v4138 = vunpack.c.l.b16 %v3524
    %v4139 = vunpack.c.h.b16 %v3524
    %v4140 = vunpack.c.l.b16 %v3525
    %v4141 = vunpack.c.h.b16 %v3525
    %v4142 = vunpack.c.l.b16 %v3526
    %v4143 = vunpack.c.h.b16 %v3526
    %v4144 = vunpack.c.l.b16 %v3527
    %v4145 = vunpack.c.h.b16 %v3527
    %v4146 = vunpack.c.l.b16 %v3528
    %v4147 = vunpack.c.h.b16 %v3528
    %v4148 = vunpack.c.l.b16 %v3529
    %v4149 = vunpack.c.h.b16 %v3529
    %v4150 = vunpack.c.l.b16 %v3530
    %v4151 = vunpack.c.h.b16 %v3530
    %v4152 = vunpack.c.l.b16 %v3531
    %v4153 = vunpack.c.h.b16 %v3531
    %v4154 = vunpack.c.l.b16 %v3532
    %v4155 = vunpack.c.h.b16 %v3532
    %v4156 = vunpack.c.l.b16 %v3533
    %v4157 = vunpack.c.h.b16 %v3533
    %v4158 = vunpack.c.l.b16 %v3534
    %v4159 = vunpack.c.h.b16 %v3534
    %v4160 = vunpack.c.l.b16 %v3535
    %v4161 = vunpack.c.h.b16 %v3535
    %v4162 = vunpack.c.l.b16 %v3536
    %v4163 = vunpack.c.h.b16 %v3536
    %v4164 = vunpack.c.l.b16 %v3537
    %v4165 = vunpack.c.h.b16 %v3537
    %v4166 = vunpack.c.l.b16 %v3538
    %v4167 = vunpack.c.h.b16 %v3538
    %v4168 = vunpack.c.l.b16 %v3539
    %v4169 = vunpack.c.h.b16 %v3539
    %v4170 = vunpack.c.l.b16 %v3540
    %v4171 = vunpack.c.h.b16 %v3540
    %v4172 = vunpack.c.l.b16 %v3541
    %v4173 = vunpack.c.h.b16 %v3541
    %v4174 = vunpack.c.l.b16 %v3542
    %v4175 = vunpack.c.h.b16 %v3542
    %v4176 = vunpack.c.l.b16 %v3543
    %v4177 = vunpack.c.h.b16 %v3543
    %v4178 = vunpack.c.l.b16 %v3544
    %v4179 = vunpack.c.h.b16 %v3544
    %v4180 = vunpack.c.l.b16 %v3545
    %v4181 = vunpack.c.h.b16 %v3545
    %v4182 = vunpack.c.l.b16 %v3546
    %v4183 = vunpack.c.h.b16 %v3546
    %v4184 = vunpack.c.l.b16 %v3547
    %v4185 = vunpack.c.h.b16 %v3547
    %v4186 = vunpack.c.l.b16 %v3548
    %v4187 = vunpack.c.h.b16 %v3548
    %v4188 = vunpack.c.l.b16 %v3549
    %v4189 = vunpack.c.h.b16 %v3549
    %v4190 = vunpack.c.l.b16 %v3550
    %v4191 = vunpack.c.h.b16 %v3550
    %v4192 = vunpack.c.l.b16 %v3551
    %v4193 = vunpack.c.h.b16 %v3551
    %v4194 = vunpack.c.l.b16 %v3552
    %v4195 = vunpack.c.h.b16 %v3552
    %v4196 = vunpack.c.l.b16 %v3553
    %v4197 = vunpack.c.h.b16 %v3553
    %v4198 = vunpack.c.l.b16 %v3554
    %v4199 = vunpack.c.h.b16 %v3554
    %v4200 = vunpack.c.l.b16 %v3555
    %v4201 = vunpack.c.h.b16 %v3555
    %v4202 = vunpack.c.l.b16 %v3556
    %v4203 = vunpack.c.h.b16 %v3556
    %v4204 = vunpack.c.l.b16 %v3557
    %v4205 = vunpack.c.h.b16 %v3557
    %v4206 = vunpack.c.l.b16 %v3558
    %v4207 = vunpack.c.h.b16 %v3558
    %v4208 = vunpack.c.l.b16 %v3559
    %v4209 = vunpack.c.h.b16 %v3559
    %v4210 = vunpack.c.l.b16 %v3560
    %v4211 = vunpack.c.h.b16 %v3560
    %v4212 = vunpack.c.l.b16 %v3561
    %v4213 = vunpack.c.h.b16 %v3561
    %v4214 = vunpack.c.l.b16 %v3562
    %v4215 = vunpack.c.h.b16 %v3562
    %v4216 = vunpack.c.l.b16 %v3563
    %v4217 = vunpack.c.h.b16 %v3563
    %v4218 = vunpack.c.l.b16 %v3564
    %v4219 = vunpack.c.h.b16 %v3564
    %v4220 = vunpack.c.l.b16 %v3565
    %v4221 = vunpack.c.h.b16 %v3565
    %v4222 = vunpack.c.l.b16 %v3566
    %v4223 = vunpack.c.h.b16 %v3566
    %v4224 = vunpack.c.l.b16 %v3567
    %v4225 = vunpack.c.h.b16 %v3567
    %v4226 = vunpack.c.l.b16 %v3568
    %v4227 = vunpack.c.h.b16 %v3568
    %v4228 = vunpack.c.l.b16 %v3569
    %v4229 = vunpack.c.h.b16 %v3569
    %v4230 = vunpack.c.l.b16 %v3570
    %v4231 = vunpack.c.h.b16 %v3570
    %v4232 = vunpack.c.l.b16 %v3571
    %v4233 = vunpack.c.h.b16 %v3571
    %v4234 = vunpack.c.l.b16 %v3572
    %v4235 = vunpack.c.h.b16 %v3572
    %v4236 = vunpack.c.l.b16 %v3573
    %v4237 = vunpack.c.h.b16 %v3573
    %v4238 = vunpack.c.l.b16 %v3574
    %v4239 = vunpack.c.h.b16 %v3574
    %v4240 = vunpack.c.l.b16 %v3575
    %v4241 = vunpack.c.h.b16 %v3575
    %v4242 = vunpack.c.l.b16 %v3576
    %v4243 = vunpack.c.h.b16 %v3576
    %v4244 = vunpack.c.l.b16 %v3577
    %v4245 = vunpack.c.h.b16 %v3577
    %v4246 = vunpack.c.l.b16 %v3578
    %v4247 = vunpack.c.h.b16 %v3578
    %v4248 = vunpack.c.l.b16 %v3579
    %v4249 = vunpack.c.h.b16 %v3579
    %v4250 = vunpack.c.l.b16 %v3580
    %v4251 = vunpack.c.h.b16 %v3580
    %v4252 = vunpack.c.l.b16 %v3581
    %v4253 = vunpack.c.h.b16 %v3581
    %v4254 = vunpack.c.l.b16 %v3582
    %v4255 = vunpack.c.h.b16 %v3582
    %v4256 = vunpack.c.l.b16 %v3583
    %v4257 = vunpack.c.h.b16 %v3583
    %v4258 = vunpack.c.l.b16 %v3584
    %v4259 = vunpack.c.h.b16 %v3584
    %v4260 = vunpack.c.l.b16 %v3585
    %v4261 = vunpack.c.h.b16 %v3585
    %v4262 = vunpack.c.l.b16 %v3586
    %v4263 = vunpack.c.h.b16 %v3586
    %v4264 = vunpack.c.l.b16 %v3587
    %v4265 = vunpack.c.h.b16 %v3587
    %v4266 = vunpack.c.l.b16 %v3588
    %v4267 = vunpack.c.h.b16 %v3588
    %v4268 = vunpack.c.l.b16 %v3589
    %v4269 = vunpack.c.h.b16 %v3589
    %v4270 = vunpack.c.l.b16 %v3590
    %v4271 = vunpack.c.h.b16 %v3590
    %v4272 = vunpack.c.l.b16 %v3591
    %v4273 = vunpack.c.h.b16 %v3591
    %v4274 = vunpack.c.l.b16 %v3592
    %v4275 = vunpack.c.h.b16 %v3592
    %v4276 = vunpack.c.l.b16 %v3593
    %v4277 = vunpack.c.h.b16 %v3593
    %v4278 = vunpack.c.l.b16 %v3594
    %v4279 = vunpack.c.h.b16 %v3594
    %v4280 = vunpack.c.l.b16 %v3595
    %v4281 = vunpack.c.h.b16 %v3595
    %v4282 = vunpack.c.l.b16 %v3596
    %v4283 = vunpack.c.h.b16 %v3596
    %v4284 = vunpack.c.l.b16 %v3597
    %v4285 = vunpack.c.h.b16 %v3597
    %v4286 = vunpack.c.l.b16 %v3598
    %v4287 = vunpack.c.h.b16 %v3598
    %v4288 = vunpack.c.l.b16 %v3599
    %v4289 = vunpack.c.h.b16 %v3599
    %v4290 = vunpack.c.l.b16 %v3600
    %v4291 = vunpack.c.h.b16 %v3600
    %v4292 = vunpack.c.l.b16 %v3601
    %v4293 = vunpack.c.h.b16 %v3601
    %v4294 = vunpack.c.l.b16 %v3602
    %v4295 = vunpack.c.h.b16 %v3602
    %v4296 = vunpack.c.l.b16 %v3603
    %v4297 = vunpack.c.h.b16 %v3603
    %v4298 = vunpack.c.l.b16 %v3604
    %v4299 = vunpack.c.h.b16 %v3604
    %v4300 = vunpack.c.l.b16 %v3605
    %v4301 = vunpack.c.h.b16 %v3605
    %v4302 = vunpack.c.l.b16 %v3606
    %v4303 = vunpack.c.h.b16 %v3606
    %v4304 = vunpack.c.l.b16 %v3607
    %v4305 = vunpack.c.h.b16 %v3607
    %v4306 = vunpack.c.l.b16 %v3608
    %v4307 = vunpack.c.h.b16 %v3608
    %v4308 = vunpack.c.l.b16 %v3609
    %v4309 = vunpack.c.h.b16 %v3609
    %v4310 = vunpack.c.l.b16 %v3610
    %v4311 = vunpack.c.h.b16 %v3610
    %v4312 = vunpack.c.l.b16 %v3611
    %v4313 = vunpack.c.h.b16 %v3611
    %v4314 = vunpack.c.l.b16 %v3612
    %v4315 = vunpack.c.h.b16 %v3612
    %v4316 = vunpack.c.l.b16 %v3613
    %v4317 = vunpack.c.h.b16 %v3613
    %v4318 = vunpack.c.l.b16 %v3614
    %v4319 = vunpack.c.h.b16 %v3614
    %v4320 = vunpack.c.l.b16 %v3615
    %v4321 = vunpack.c.h.b16 %v3615
    %v4322 = vunpack.c.l.b16 %v3616
    %v4323 = vunpack.c.h.b16 %v3616
    %v4324 = vunpack.c.l.b16 %v3617
    %v4325 = vunpack.c.h.b16 %v3617
    %v4326 = vunpack.c.l.b16 %v3618
    %v4327 = vunpack.c.h.b16 %v3618
    %v4328 = vunpack.c.l.b16 %v3619
    %v4329 = vunpack.c.h.b16 %v3619
    %v4330 = vunpack.c.l.b16 %v3620
    %v4331 = vunpack.c.h.b16 %v3620
    %v4332 = vunpack.c.l.b16 %v3621
    %v4333 = vunpack.c.h.b16 %v3621
    %v4334 = vunpack.c.l.b16 %v3622
    %v4335 = vunpack.c.h.b16 %v3622
    %v4336 = vunpack.c.l.b16 %v3623
    %v4337 = vunpack.c.h.b16 %v3623
    %v4338 = vunpack.c.l.b16 %v3624
    %v4339 = vunpack.c.h.b16 %v3624
    %v4340 = vunpack.c.l.b16 %v3625
    %v4341 = vunpack.c.h.b16 %v3625
    %v4342 = vunpack.c.l.b16 %v3626
    %v4343 = vunpack.c.h.b16 %v3626
    %v4344 = vunpack.c.l.b16 %v3627
    %v4345 = vunpack.c.h.b16 %v3627
    %v4346 = vunpack.c.l.b16 %v3628
    %v4347 = vunpack.c.h.b16 %v3628
    %v4348 = vunpack.c.l.b16 %v3629
    %v4349 = vunpack.c.h.b16 %v3629
    %v4350 = vunpack.c.l.b16 %v3630
    %v4351 = vunpack.c.h.b16 %v3630
    %v4352 = vunpack.c.l.b16 %v3631
    %v4353 = vunpack.c.h.b16 %v3631
    %v4354 = vunpack.c.l.b16 %v3632
    %v4355 = vunpack.c.h.b16 %v3632
    %v4356 = vunpack.c.l.b16 %v3633
    %v4357 = vunpack.c.h.b16 %v3633
    %v4358 = vunpack.c.l.b16 %v3634
    %v4359 = vunpack.c.h.b16 %v3634
    %v4360 = vunpack.c.l.b16 %v3635
    %v4361 = vunpack.c.h.b16 %v3635
    %v4362 = vunpack.c.l.b16 %v3636
    %v4363 = vunpack.c.h.b16 %v3636
    %v4364 = vunpack.c.l.b16 %v3637
    %v4365 = vunpack.c.h.b16 %v3637
    %v4366 = vunpack.c.l.b16 %v3638
    %v4367 = vunpack.c.h.b16 %v3638
    %v4368 = vunpack.c.l.b16 %v3639
    %v4369 = vunpack.c.h.b16 %v3639
    %v4370 = vunpack.c.l.b16 %v3640
    %v4371 = vunpack.c.h.b16 %v3640
    %v4372 = vunpack.c.l.b16 %v3641
    %v4373 = vunpack.c.h.b16 %v3641
    %v4374 = vunpack.c.l.b16 %v3642
    %v4375 = vunpack.c.h.b16 %v3642
    %v4376 = vunpack.c.l.b16 %v3643
    %v4377 = vunpack.c.h.b16 %v3643
    %v4378 = vunpack.c.l.b16 %v3644
    %v4379 = vunpack.c.h.b16 %v3644
    %v4380 = vunpack.c.l.b16 %v3645
    %v4381 = vunpack.c.h.b16 %v3645
    %v4382 = vunpack.c.l.b16 %v3646
    %v4383 = vunpack.c.h.b16 %v3646
    %v4384 = vunpack.c.l.b16 %v3647
    %v4385 = vunpack.c.h.b16 %v3647
    %v4386 = vunpack.c.l.b16 %v3648
    %v4387 = vunpack.c.h.b16 %v3648
    %v4388 = vunpack.c.l.b16 %v3649
    %v4389 = vunpack.c.h.b16 %v3649
    %v4390 = vunpack.c.l.b16 %v3650
    %v4391 = vunpack.c.h.b16 %v3650
    %v4392 = vunpack.c.l.b16 %v3651
    %v4393 = vunpack.c.h.b16 %v3651
    %v4394 = vunpack.c.l.b16 %v3652
    %v4395 = vunpack.c.h.b16 %v3652
    %v4396 = vunpack.c.l.b16 %v3653
    %v4397 = vunpack.c.h.b16 %v3653
    %v4398 = vunpack.c.l.b16 %v3654
    %v4399 = vunpack.c.h.b16 %v3654
    %v4400 = vunpack.c.l.b16 %v3655
    %v4401 = vunpack.c.h.b16 %v3655
    %v4402 = vunpack.c.l.b16 %v3656
    %v4403 = vunpack.c.h.b16 %v3656
    %v4404 = vunpack.c.l.b16 %v3657
    %v4405 = vunpack.c.h.b16 %v3657
    %v4406 = vunpack.c.l.b16 %v3658
    %v4407 = vunpack.c.h.b16 %v3658
    %v4408 = vunpack.c.l.b16 %v3659
    %v4409 = vunpack.c.h.b16 %v3659
    %v4410 = vunpack.c.l.b16 %v3660
    %v4411 = vunpack.c.h.b16 %v3660
    %v4412 = vunpack.c.l.b16 %v3661
    %v4413 = vunpack.c.h.b16 %v3661
    %v4414 = vunpack.c.l.b16 %v3662
    %v4415 = vunpack.c.h.b16 %v3662
    %v4416 = vunpack.c.l.b16 %v3663
    %v4417 = vunpack.c.h.b16 %v3663
    %v4418 = vunpack.c.l.b16 %v3664
    %v4419 = vunpack.c.h.b16 %v3664
    %v4420 = vunpack.c.l.b16 %v3665
    %v4421 = vunpack.c.h.b16 %v3665
    %v4422 = vunpack.c.l.b16 %v3666
    %v4423 = vunpack.c.h.b16 %v3666
    %v4424 = vunpack.c.l.b16 %v3667
    %v4425 = vunpack.c.h.b16 %v3667
    %v4426 = vunpack.c.l.b16 %v3668
    %v4427 = vunpack.c.h.b16 %v3668
    %v4428 = vunpack.c.l.b16 %v3669
    %v4429 = vunpack.c.h.b16 %v3669
    %v4430 = vunpack.c.l.b16 %v3670
    %v4431 = vunpack.c.h.b16 %v3670
    %v4432 = vunpack.c.l.b16 %v3671
    %v4433 = vunpack.c.h.b16 %v3671
    %v4434 = vunpack.c.l.b16 %v3672
    %v4435 = vunpack.c.h.b16 %v3672
    %v4436 = vunpack.c.l.b16 %v3673
    %v4437 = vunpack.c.h.b16 %v3673
    %v4438 = vunpack.c.l.b16 %v3674
    %v4439 = vunpack.c.h.b16 %v3674
    %v4440 = vunpack.c.l.b16 %v3675
    %v4441 = vunpack.c.h.b16 %v3675
    %v4442 = vunpack.c.l.b16 %v3676
    %v4443 = vunpack.c.h.b16 %v3676
    %v4444 = vunpack.c.l.b16 %v3677
    %v4445 = vunpack.c.h.b16 %v3677
    %v4446 = vunpack.c.l.b16 %v3678
    %v4447 = vunpack.c.h.b16 %v3678
    %v4448 = vunpack.c.l.b16 %v3679
    %v4449 = vunpack.c.h.b16 %v3679
    %v4450 = vunpack.c.l.b16 %v3680
    %v4451 = vunpack.c.h.b16 %v3680
    %v4452 = vunpack.c.l.b16 %v3681
    %v4453 = vunpack.c.h.b16 %v3681
    %v4454 = vunpack.c.l.b16 %v3682
    %v4455 = vunpack.c.h.b16 %v3682
    %v4456 = vunpack.c.l.b16 %v3683
    %v4457 = vunpack.c.h.b16 %v3683
    %v4458 = vunpack.c.l.b16 %v3684
    %v4459 = vunpack.c.h.b16 %v3684
    %v4460 = vunpack.c.l.b16 %v3685
    %v4461 = vunpack.c.h.b16 %v3685
    %v4462 = vunpack.c.l.b16 %v3686
    %v4463 = vunpack.c.h.b16 %v3686
    %v4464 = vunpack.c.l.b16 %v3687
    %v4465 = vunpack.c.h.b16 %v3687
    %v4466 = vunpack.c.l.b16 %v3688
    %v4467 = vunpack.c.h.b16 %v3688
    %v4468 = vunpack.c.l.b16 %v3689
    %v4469 = vunpack.c.h.b16 %v3689
    %v4470 = vunpack.c.l.b16 %v3690
    %v4471 = vunpack.c.h.b16 %v3690
    %v4472 = vunpack.c.l.b16 %v3691
    %v4473 = vunpack.c.h.b16 %v3691
    %v4474 = vunpack.c.l.b16 %v3692
    %v4475 = vunpack.c.h.b16 %v3692
    %v4476 = vunpack.c.l.b16 %v3693
    %v4477 = vunpack.c.h.b16 %v3693
    %v4478 = vunpack.c.l.b16 %v3694
    %v4479 = vunpack.c.h.b16 %v3694
    %v4480 = vunpack.c.l.b16 %v3695
    %v4481 = vunpack.c.h.b16 %v3695
    %v4482 = vunpack.c.l.b16 %v3696
    %v4483 = vunpack.c.h.b16 %v3696
    %v4484 = vunpack.c.l.b16 %v3697
    %v4485 = vunpack.c.h.b16 %v3697
    %v4486 = vunpack.c.l.b16 %v3698
    %v4487 = vunpack.c.h.b16 %v3698
    %v4488 = vunpack.c.l.b16 %v3699
    %v4489 = vunpack.c.h.b16 %v3699
    %v4490 = vunpack.c.l.b16 %v3700
    %v4491 = vunpack.c.h.b16 %v3700
    %v4492 = vunpack.c.l.b16 %v3701
    %v4493 = vunpack.c.h.b16 %v3701
    %v4494 = vunpack.c.l.b16 %v3702
    %v4495 = vunpack.c.h.b16 %v3702
    %v4496 = vunpack.c.l.b16 %v3703
    %v4497 = vunpack.c.h.b16 %v3703
    %v4498 = vunpack.c.l.b16 %v3704
    %v4499 = vunpack.c.h.b16 %v3704
    %v4500 = vunpack.c.l.b16 %v3705
    %v4501 = vunpack.c.h.b16 %v3705
    %v4502 = vunpack.c.l.b16 %v3706
    %v4503 = vunpack.c.h.b16 %v3706
    %v4504 = vunpack.c.l.b16 %v3707
    %v4505 = vunpack.c.h.b16 %v3707
    %v4506 = vunpack.c.l.b16 %v3708
    %v4507 = vunpack.c.h.b16 %v3708
    %v4508 = vunpack.c.l.b16 %v3709
    %v4509 = vunpack.c.h.b16 %v3709
    %v4510 = vunpack.c.l.b16 %v3710
    %v4511 = vunpack.c.h.b16 %v3710
    %v4512 = vunpack.c.l.b16 %v3711
    %v4513 = vunpack.c.h.b16 %v3711
    %v4514 = vunpack.c.l.b16 %v3712
    %v4515 = vunpack.c.h.b16 %v3712
    %v4516 = vunpack.c.l.b16 %v3713
    %v4517 = vunpack.c.h.b16 %v3713
    %v4518 = vunpack.c.l.b16 %v3714
    %v4519 = vunpack.c.h.b16 %v3714
    %v4520 = vunpack.c.l.b16 %v3715
    %v4521 = vunpack.c.h.b16 %v3715
    %v4522 = vunpack.c.l.b16 %v3716
    %v4523 = vunpack.c.h.b16 %v3716
    %v4524 = vunpack.c.l.b16 %v3717
    %v4525 = vunpack.c.h.b16 %v3717
    %v4526 = vunpack.c.l.b16 %v3718
    %v4527 = vunpack.c.h.b16 %v3718
    %v4528 = vunpack.c.l.b16 %v3719
    %v4529 = vunpack.c.h.b16 %v3719
    %v4530 = vunpack.c.l.b16 %v3720
    %v4531 = vunpack.c.h.b16 %v3720
    %v4532 = vunpack.c.l.b16 %v3721
    %v4533 = vunpack.c.h.b16 %v3721
    %v4534 = vunpack.c.l.b16 %v3722
    %v4535 = vunpack.c.h.b16 %v3722
    %v4536 = vunpack.c.l.b16 %v3723
    %v4537 = vunpack.c.h.b16 %v3723
    %v4538 = vunpack.c.l.b16 %v3724
    %v4539 = vunpack.c.h.b16 %v3724
    %v4540 = vunpack.c.l.b16 %v3725
    %v4541 = vunpack.c.h.b16 %v3725
    %v4542 = vunpack.c.l.b16 %v3726
    %v4543 = vunpack.c.h.b16 %v3726
    %v4544 = vunpack.c.l.b16 %v3727
    %v4545 = vunpack.c.h.b16 %v3727
    %v4546 = vunpack.c.l.b16 %v3728
    %v4547 = vunpack.c.h.b16 %v3728
    %v4548 = vunpack.c.l.b16 %v3729
    %v4549 = vunpack.c.h.b16 %v3729
    %v4550 = vunpack.c.l.b16 %v3730
    %v4551 = vunpack.c.h.b16 %v3730
    %v4552 = vunpack.c.l.b16 %v3731
    %v4553 = vunpack.c.h.b16 %v3731
    %v4554 = vunpack.c.l.b16 %v3732
    %v4555 = vunpack.c.h.b16 %v3732
    %v4556 = vunpack.c.l.b16 %v3733
    %v4557 = vunpack.c.h.b16 %v3733
    %v4558 = vunpack.c.l.b16 %v3734
    %v4559 = vunpack.c.h.b16 %v3734
    %v4560 = vunpack.c.l.b16 %v3735
    %v4561 = vunpack.c.h.b16 %v3735
    %v4562 = vunpack.c.l.b16 %v3736
    %v4563 = vunpack.c.h.b16 %v3736
    %v4564 = vunpack.c.l.b16 %v3737
    %v4565 = vunpack.c.h.b16 %v3737
    %v4566 = vunpack.c.l.b16 %v3738
    %v4567 = vunpack.c.h.b16 %v3738
    %v4568 = vunpack.c.l.b16 %v3739
    %v4569 = vunpack.c.h.b16 %v3739
    %v4570 = vunpack.c.l.b16 %v3740
    %v4571 = vunpack.c.h.b16 %v3740
    %v4572 = vunpack.c.l.b16 %v3741
    %v4573 = vunpack.c.h.b16 %v3741
    %v4574 = vunpack.c.l.b16 %v3742
    %v4575 = vunpack.c.h.b16 %v3742
    %v4576 = vunpack.c.l.b16 %v3743
    %v4577 = vunpack.c.h.b16 %v3743
    %v4578 = vunpack.c.l.b16 %v3744
    %v4579 = vunpack.c.h.b16 %v3744
    %v4580 = vunpack.c.l.b16 %v3745
    %v4581 = vunpack.c.h.b16 %v3745
    %v4582 = vunpack.c.l.b16 %v3746
    %v4583 = vunpack.c.h.b16 %v3746
    %v4584 = vunpack.c.l.b16 %v3747
    %v4585 = vunpack.c.h.b16 %v3747
    %v4586 = vunpack.c.l.b16 %v3748
    %v4587 = vunpack.c.h.b16 %v3748
    %v4588 = vunpack.c.l.b16 %v3749
    %v4589 = vunpack.c.h.b16 %v3749
    %v4590 = vunpack.c.l.b16 %v3750
    %v4591 = vunpack.c.h.b16 %v3750
    %v4592 = vunpack.c.l.b16 %v3751
    %v4593 = vunpack.c.h.b16 %v3751
    %v4594 = vunpack.c.l.b16 %v3752
    %v4595 = vunpack.c.h.b16 %v3752
    %v4596 = vunpack.c.l.b16 %v3753
    %v4597 = vunpack.c.h.b16 %v3753
    %v4598 = vunpack.c.l.b16 %v3754
    %v4599 = vunpack.c.h.b16 %v3754
    %v4600 = vunpack.c.l.b16 %v3755
    %v4601 = vunpack.c.h.b16 %v3755
    %v4602 = vunpack.c.l.b16 %v3756
    %v4603 = vunpack.c.h.b16 %v3756
    %v4604 = vunpack.c.l.b16 %v3757
    %v4605 = vunpack.c.h.b16 %v3757
    %v4606 = vunpack.c.l.b16 %v3758
    %v4607 = vunpack.c.h.b16 %v3758
    %v4608 = vunpack.c.l.b16 %v3759
    %v4609 = vunpack.c.h.b16 %v3759
    %v4610 = vunpack.c.l.b16 %v3760
    %v4611 = vunpack.c.h.b16 %v3760
    %v4612 = vunpack.c.l.b16 %v3761
    %v4613 = vunpack.c.h.b16 %v3761
    %v4614 = vunpack.c.l.b16 %v3762
    %v4615 = vunpack.c.h.b16 %v3762
    %v4616 = vunpack.c.l.b16 %v3763
    %v4617 = vunpack.c.h.b16 %v3763
    %v4618 = vunpack.c.l.b16 %v3764
    %v4619 = vunpack.c.h.b16 %v3764
    %v4620 = vunpack.c.l.b16 %v3765
    %v4621 = vunpack.c.h.b16 %v3765
    %v4622 = vunpack.c.l.b16 %v3766
    %v4623 = vunpack.c.h.b16 %v3766
    %v4624 = vunpack.c.l.b16 %v3767
    %v4625 = vunpack.c.h.b16 %v3767
    %v4626 = vunpack.c.l.b16 %v3768
    %v4627 = vunpack.c.h.b16 %v3768
    %v4628 = vunpack.c.l.b16 %v3769
    %v4629 = vunpack.c.h.b16 %v3769
    %v4630 = vunpack.c.l.b16 %v3770
    %v4631 = vunpack.c.h.b16 %v3770
    %v4632 = vunpack.c.l.b16 %v3771
    %v4633 = vunpack.c.h.b16 %v3771
    %v4634 = vunpack.c.l.b16 %v3772
    %v4635 = vunpack.c.h.b16 %v3772
    %v4636 = vunpack.c.l.b16 %v3773
    %v4637 = vunpack.c.h.b16 %v3773
    %v4638 = vunpack.c.l.b16 %v3774
    %v4639 = vunpack.c.h.b16 %v3774
    %v4640 = vunpack.c.l.b16 %v3775
    %v4641 = vunpack.c.h.b16 %v3775
    %v4642 = vunpack.c.l.b16 %v3776
    %v4643 = vunpack.c.h.b16 %v3776
    %v4644 = vunpack.c.l.b16 %v3777
    %v4645 = vunpack.c.h.b16 %v3777
    %v4646 = vunpack.c.l.b16 %v3778
    %v4647 = vunpack.c.h.b16 %v3778
    %v4648 = vunpack.c.l.b16 %v3779
    %v4649 = vunpack.c.h.b16 %v3779
    %v4650 = vunpack.c.l.b16 %v3780
    %v4651 = vunpack.c.h.b16 %v3780
    %v4652 = vunpack.c.l.b16 %v3781
    %v4653 = vunpack.c.h.b16 %v3781
    %v4654 = vunpack.c.l.b16 %v3782
    %v4655 = vunpack.c.h.b16 %v3782
    %v4656 = vunpack.c.l.b16 %v3783
    %v4657 = vunpack.c.h.b16 %v3783
    %v4658 = vunpack.c.l.b16 %v3784
    %v4659 = vunpack.c.h.b16 %v3784
    %v4660 = vunpack.c.l.b16 %v3785
    %v4661 = vunpack.c.h.b16 %v3785
    %v4662 = vunpack.c.l.b16 %v3786
    %v4663 = vunpack.c.h.b16 %v3786
    %v4664 = vunpack.c.l.b16 %v3787
    %v4665 = vunpack.c.h.b16 %v3787
    %v4666 = vunpack.c.l.b16 %v3788
    %v4667 = vunpack.c.h.b16 %v3788
    %v4668 = vunpack.c.l.b16 %v3789
    %v4669 = vunpack.c.h.b16 %v3789
    %v4670 = vunpack.c.l.b16 %v3790
    %v4671 = vunpack.c.h.b16 %v3790
    %v4672 = vunpack.c.l.b16 %v3791
    %v4673 = vunpack.c.h.b16 %v3791
    %v4674 = vunpack.c.l.b16 %v3792
    %v4675 = vunpack.c.h.b16 %v3792
    %v4676 = vunpack.c.l.b16 %v3793
    %v4677 = vunpack.c.h.b16 %v3793
    %v4678 = vunpack.c.l.b16 %v3794
    %v4679 = vunpack.c.h.b16 %v3794
    %v4680 = vunpack.c.l.b16 %v3795
    %v4681 = vunpack.c.h.b16 %v3795
    %v4682 = vunpack.c.l.b16 %v3796
    %v4683 = vunpack.c.h.b16 %v3796
    %v4684 = vunpack.c.l.b16 %v3797
    %v4685 = vunpack.c.h.b16 %v3797
    %v4686 = vunpack.c.l.b16 %v3798
    %v4687 = vunpack.c.h.b16 %v3798
    %v4688 = vunpack.c.l.b16 %v3799
    %v4689 = vunpack.c.h.b16 %v3799
    %v4690 = vunpack.c.l.b16 %v3800
    %v4691 = vunpack.c.h.b16 %v3800
    %v4692 = vunpack.c.l.b16 %v3801
    %v4693 = vunpack.c.h.b16 %v3801
    %v4694 = vunpack.c.l.b16 %v3802
    %v4695 = vunpack.c.h.b16 %v3802
    %v4696 = vunpack.c.l.b16 %v3803
    %v4697 = vunpack.c.h.b16 %v3803
    %v4698 = vpack.c.b16 %v4128, %v4122
    %v4699 = vpack.c.b16 %v4129, %v4123
    %v4700 = vpack.c.b16 %v4130, %v4124
    %v4701 = vpack.c.b16 %v4131, %v4125
    %v4702 = vpack.c.b16 %v4132, %v4126
    %v4703 = vpack.c.b16 %v4133, %v4127
    %v4704 = vpack.c.b16 %v4140, %v4134
    %v4705 = vpack.c.b16 %v4141, %v4135
    %v4706 = vpack.c.b16 %v4142, %v4136
    %v4707 = vpack.c.b16 %v4143, %v4137
    %v4708 = vpack.c.b16 %v4144, %v4138
    %v4709 = vpack.c.b16 %v4145, %v4139
    %v4710 = vpack.c.b16 %v4152, %v4146
    %v4711 = vpack.c.b16 %v4153, %v4147
    %v4712 = vpack.c.b16 %v4154, %v4148
    %v4713 = vpack.c.b16 %v4155, %v4149
    %v4714 = vpack.c.b16 %v4156, %v4150
    %v4715 = vpack.c.b16 %v4157, %v4151
    %v4716 = vpack.c.b16 %v4164, %v4158
    %v4717 = vpack.c.b16 %v4165, %v4159
    %v4718 = vpack.c.b16 %v4166, %v4160
    %v4719 = vpack.c.b16 %v4167, %v4161
    %v4720 = vpack.c.b16 %v4168, %v4162
    %v4721 = vpack.c.b16 %v4169, %v4163
    %v4722 = vpack.c.b16 %v4176, %v4170
    %v4723 = vpack.c.b16 %v4177, %v4171
    %v4724 = vpack.c.b16 %v4178, %v4172
    %v4725 = vpack.c.b16 %v4179, %v4173
    %v4726 = vpack.c.b16 %v4180, %v4174
    %v4727 = vpack.c.b16 %v4181, %v4175
    %v4728 = vpack.c.b16 %v4188, %v4182
    %v4729 = vpack.c.b16 %v4189, %v4183
    %v4730 = vpack.c.b16 %v4190, %v4184
    %v4731 = vpack.c.b16 %v4191, %v4185
    %v4732 = vpack.c.b16 %v4192, %v4186
    %v4733 = vpack.c.b16 %v4193, %v4187
    %v4734 = vpack.c.b16 %v4200, %v4194
    %v4735 = vpack.c.b16 %v4201, %v4195
    %v4736 = vpack.c.b16 %v4202, %v4196
    %v4737 = vpack.c.b16 %v4203, %v4197
    %v4738 = vpack.c.b16 %v4204, %v4198
    %v4739 = vpack.c.b16 %v4205, %v4199
    %v4740 = vpack.c.b16 %v4212, %v4206
    %v4741 = vpack.c.b16 %v4213, %v4207
    %v4742 = vpack.c.b16 %v4214, %v4208
    %v4743 = vpack.c.b16 %v4215, %v4209
    %v4744 = vpack.c.b16 %v4216, %v4210
    %v4745 = vpack.c.b16 %v4217, %v4211
    %v4746 = vpack.c.b16 %v4224, %v4218
    %v4747 = vpack.c.b16 %v4225, %v4219
    %v4748 = vpack.c.b16 %v4226, %v4220
    %v4749 = vpack.c.b16 %v4227, %v4221
    %v4750 = vpack.c.b16 %v4228, %v4222
    %v4751 = vpack.c.b16 %v4229, %v4223
    %v4752 = vpack.c.b16 %v4236, %v4230
    %v4753 = vpack.c.b16 %v4237, %v4231
    %v4754 = vpack.c.b16 %v4238, %v4232
    %v4755 = vpack.c.b16 %v4239, %v4233
    %v4756 = vpack.c.b16 %v4240, %v4234
    %v4757 = vpack.c.b16 %v4241, %v4235
    %v4758 = vpack.c.b16 %v4248, %v4242
    %v4759 = vpack.c.b16 %v4249, %v4243
    %v4760 = vpack.c.b16 %v4250, %v4244
    %v4761 = vpack.c.b16 %v4251, %v4245
    %v4762 = vpack.c.b16 %v4252, %v4246
    %v4763 = vpack.c.b16 %v4253, %v4247
    %v4764 = vpack.c.b16 %v4260, %v4254
    %v4765 = vpack.c.b16 %v4261, %v4255
    %v4766 = vpack.c.b16 %v4262, %v4256
    %v4767 = vpack.c.b16 %v4263, %v4257
    %v4768 = vpack.c.b16 %v4264, %v4258
    %v4769 = vpack.c.b16 %v4265, %v4259
    %v4770 = vpack.c.b16 %v4272, %v4266
    %v4771 = vpack.c.b16 %v4273, %v4267
    %v4772 = vpack.c.b16 %v4274, %v4268
    %v4773 = vpack.c.b16 %v4275, %v4269
    %v4774 = vpack.c.b16 %v4276, %v4270
    %v4775 = vpack.c.b16 %v4277, %v4271
    %v4776 = vpack.c.b16 %v4284, %v4278
    %v4777 = vpack.c.b16 %v4285, %v4279
    %v4778 = vpack.c.b16 %v4286, %v4280
    %v4779 = vpack.c.b16 %v4287, %v4281
    %v4780 = vpack.c.b16 %v4288, %v4282
    %v4781 = vpack.c.b16 %v4289, %v4283
    %v4782 = vpack.c.b16 %v4296, %v4290
    %v4783 = vpack.c.b16 %v4297, %v4291
    %v4784 = vpack.c.b16 %v4298, %v4292
    %v4785 = vpack.c.b16 %v4299, %v4293
    %v4786 = vpack.c.b16 %v4300, %v4294
    %v4787 = vpack.c.b16 %v4301, %v4295
    %v4788 = vpack.c.b16 %v4308, %v4302
    %v4789 = vpack.c.b16 %v4309, %v4303
    %v4790 = vpack.c.b16 %v4310, %v4304
    %v4791 = vpack.c.b16 %v4311, %v4305
    %v4792 = vpack.c.b16 %v4312, %v4306
    %v4793 = vpack.c.b16 %v4313, %v4307
    %v4794 = vpack.c.b16 %v4320, %v4314
    %v4795 = vpack.c.b16 %v4321, %v4315
    %v4796 = vpack.c.b16 %v4322, %v4316
    %v4797 = vpack.c.b16 %v4323, %v4317
    %v4798 = vpack.c.b16 %v4324, %v4318
    %v4799 = vpack.c.b16 %v4325, %v4319
    %v4800 = vpack.c.b16 %v4332, %v4326
    %v4801 = vpack.c.b16 %v4333, %v4327
    %v4802 = vpack.c.b16 %v4334, %v4328
    %v4803 = vpack.c.b16 %v4335, %v4329
    %v4804 = vpack.c.b16 %v4336, %v4330
    %v4805 = vpack.c.b16 %v4337, %v4331
    %v4806 = vpack.c.b16 %v4344, %v4338
    %v4807 = vpack.c.b16 %v4345, %v4339
    %v4808 = vpack.c.b16 %v4346, %v4340
    %v4809 = vpack.c.b16 %v4347, %v4341
    %v4810 = vpack.c.b16 %v4348, %v4342
    %v4811 = vpack.c.b16 %v4349, %v4343
    %v4812 = vpack.c.b16 %v4356, %v4350
    %v4813 = vpack.c.b16 %v4357, %v4351
    %v4814 = vpack.c.b16 %v4358, %v4352
    %v4815 = vpack.c.b16 %v4359, %v4353
    %v4816 = vpack.c.b16 %v4360, %v4354
    %v4817 = vpack.c.b16 %v4361, %v4355
    %v4818 = vpack.c.b16 %v4368, %v4362
    %v4819 = vpack.c.b16 %v4369, %v4363
    %v4820 = vpack.c.b16 %v4370, %v4364
    %v4821 = vpack.c.b16 %v4371, %v4365
    %v4822 = vpack.c.b16 %v4372, %v4366
    %v4823 = vpack.c.b16 %v4373, %v4367
    %v4824 = vpack.c.b16 %v4380, %v4374
    %v4825 = vpack.c.b16 %v4381, %v4375
    %v4826 = vpack.c.b16 %v4382, %v4376
    %v4827 = vpack.c.b16 %v4383, %v4377
    %v4828 = vpack.c.b16 %v4384, %v4378
    %v4829 = vpack.c.b16 %v4385, %v4379
    %v4830 = vpack.c.b16 %v4392, %v4386
    %v4831 = vpack.c.b16 %v4393, %v4387
    %v4832 = vpack.c.b16 %v4394, %v4388
    %v4833 = vpack.c.b16 %v4395, %v4389
    %v4834 = vpack.c.b16 %v4396, %v4390
    %v4835 = vpack.c.b16 %v4397, %v4391
    %v4836 = vpack.c.b16 %v4404, %v4398
    %v4837 = vpack.c.b16 %v4405, %v4399
    %v4838 = vpack.c.b16 %v4406, %v4400
    %v4839 = vpack.c.b16 %v4407, %v4401
    %v4840 = vpack.c.b16 %v4408, %v4402
    %v4841 = vpack.c.b16 %v4409, %v4403
    %v4842 = vpack.c.b16 %v4416, %v4410
    %v4843 = vpack.c.b16 %v4417, %v4411
    %v4844 = vpack.c.b16 %v4418, %v4412
    %v4845 = vpack.c.b16 %v4419, %v4413
    %v4846 = vpack.c.b16 %v4420, %v4414
    %v4847 = vpack.c.b16 %v4421, %v4415
    %v4848 = vpack.c.b16 %v4428, %v4422
    %v4849 = vpack.c.b16 %v4429, %v4423
    %v4850 = vpack.c.b16 %v4430, %v4424
    %v4851 = vpack.c.b16 %v4431, %v4425
    %v4852 = vpack.c.b16 %v4432, %v4426
    %v4853 = vpack.c.b16 %v4433, %v4427
    %v4854 = vpack.c.b16 %v4440, %v4434
    %v4855 = vpack.c.b16 %v4441, %v4435
    %v4856 = vpack.c.b16 %v4442, %v4436
    %v4857 = vpack.c.b16 %v4443, %v4437
    %v4858 = vpack.c.b16 %v4444, %v4438
    %v4859 = vpack.c.b16 %v4445, %v4439
    %v4860 = vpack.c.b16 %v4452, %v4446
    %v4861 = vpack.c.b16 %v4453, %v4447
    %v4862 = vpack.c.b16 %v4454, %v4448
    %v4863 = vpack.c.b16 %v4455, %v4449
    %v4864 = vpack.c.b16 %v4456, %v4450
    %v4865 = vpack.c.b16 %v4457, %v4451
    %v4866 = vpack.c.b16 %v4464, %v4458
    %v4867 = vpack.c.b16 %v4465, %v4459
    %v4868 = vpack.c.b16 %v4466, %v4460
    %v4869 = vpack.c.b16 %v4467, %v4461
    %v4870 = vpack.c.b16 %v4468, %v4462
    %v4871 = vpack.c.b16 %v4469, %v4463
    %v4872 = vpack.c.b16 %v4476, %v4470
    %v4873 = vpack.c.b16 %v4477, %v4471
    %v4874 = vpack.c.b16 %v4478, %v4472
    %v4875 = vpack.c.b16 %v4479, %v4473
    %v4876 = vpack.c.b16 %v4480, %v4474
    %v4877 = vpack.c.b16 %v4481, %v4475
    %v4878 = vpack.c.b16 %v4488, %v4482
    %v4879 = vpack.c.b16 %v4489, %v4483
    %v4880 = vpack.c.b16 %v4490, %v4484
    %v4881 = vpack.c.b16 %v4491, %v4485
    %v4882 = vpack.c.b16 %v4492, %v4486
    %v4883 = vpack.c.b16 %v4493, %v4487
    %v4884 = vpack.c.b16 %v4500, %v4494
    %v4885 = vpack.c.b16 %v4501, %v4495
    %v4886 = vpack.c.b16 %v4502, %v4496
    %v4887 = vpack.c.b16 %v4503, %v4497
    %v4888 = vpack.c.b16 %v4504, %v4498
    %v4889 = vpack.c.b16 %v4505, %v4499
    %v4890 = vpack.c.b16 %v4512, %v4506
    %v4891 = vpack.c.b16 %v4513, %v4507
    %v4892 = vpack.c.b16 %v4514, %v4508
    %v4893 = vpack.c.b16 %v4515, %v4509
    %v4894 = vpack.c.b16 %v4516, %v4510
    %v4895 = vpack.c.b16 %v4517, %v4511
    %v4896 = vpack.c.b16 %v4524, %v4518
    %v4897 = vpack.c.b16 %v4525, %v4519
    %v4898 = vpack.c.b16 %v4526, %v4520
    %v4899 = vpack.c.b16 %v4527, %v4521
    %v4900 = vpack.c.b16 %v4528, %v4522
    %v4901 = vpack.c.b16 %v4529, %v4523
    %v4902 = vpack.c.b16 %v4536, %v4530
    %v4903 = vpack.c.b16 %v4537, %v4531
    %v4904 = vpack.c.b16 %v4538, %v4532
    %v4905 = vpack.c.b16 %v4539, %v4533
    %v4906 = vpack.c.b16 %v4540, %v4534
    %v4907 = vpack.c.b16 %v4541, %v4535
    %v4908 = vpack.c.b16 %v4548, %v4542
    %v4909 = vpack.c.b16 %v4549, %v4543
    %v4910 = vpack.c.b16 %v4550, %v4544
    %v4911 = vpack.c.b16 %v4551, %v4545
    %v4912 = vpack.c.b16 %v4552, %v4546
    %v4913 = vpack.c.b16 %v4553, %v4547
    %v4914 = vpack.c.b16 %v4560, %v4554
    %v4915 = vpack.c.b16 %v4561, %v4555
    %v4916 = vpack.c.b16 %v4562, %v4556
    %v4917 = vpack.c.b16 %v4563, %v4557
    %v4918 = vpack.c.b16 %v4564, %v4558
    %v4919 = vpack.c.b16 %v4565, %v4559
    %v4920 = vpack.c.b16 %v4572, %v4566
    %v4921 = vpack.c.b16 %v4573, %v4567
    %v4922 = vpack.c.b16 %v4574, %v4568
    %v4923 = vpack.c.b16 %v4575, %v4569
    %v4924 = vpack.c.b16 %v4576, %v4570
    %v4925 = vpack.c.b16 %v4577, %v4571
    %v4926 = vpack.c.b16 %v4584, %v4578
    %v4927 = vpack.c.b16 %v4585, %v4579
    %v4928 = vpack.c.b16 %v4586, %v4580
    %v4929 = vpack.c.b16 %v4587, %v4581
    %v4930 = vpack.c.b16 %v4588, %v4582
    %v4931 = vpack.c.b16 %v4589, %v4583
    %v4932 = vpack.c.b16 %v4596, %v4590
    %v4933 = vpack.c.b16 %v4597, %v4591
    %v4934 = vpack.c.b16 %v4598, %v4592
    %v4935 = vpack.c.b16 %v4599, %v4593
    %v4936 = vpack.c.b16 %v4600, %v4594
    %v4937 = vpack.c.b16 %v4601, %v4595
    %v4938 = vpack.c.b16 %v4608, %v4602
    %v4939 = vpack.c.b16 %v4609, %v4603
    %v4940 = vpack.c.b16 %v4610, %v4604
    %v4941 = vpack.c.b16 %v4611, %v4605
    %v4942 = vpack.c.b16 %v4612, %v4606
    %v4943 = vpack.c.b16 %v4613, %v4607
    %v4944 = vpack.c.b16 %v4620, %v4614
    %v4945 = vpack.c.b16 %v4621, %v4615
    %v4946 = vpack.c.b16 %v4622, %v4616
    %v4947 = vpack.c.b16 %v4623, %v4617
    %v4948 = vpack.c.b16 %v4624, %v4618
    %v4949 = vpack.c.b16 %v4625, %v4619
    %v4950 = vpack.c.b16 %v4632, %v4626
    %v4951 = vpack.c.b16 %v4633, %v4627
    %v4952 = vpack.c.b16 %v4634, %v4628
    %v4953 = vpack.c.b16 %v4635, %v4629
    %v4954 = vpack.c.b16 %v4636, %v4630
    %v4955 = vpack.c.b16 %v4637, %v4631
    %v4956 = vpack.c.b16 %v4644, %v4638
    %v4957 = vpack.c.b16 %v4645, %v4639
    %v4958 = vpack.c.b16 %v4646, %v4640
    %v4959 = vpack.c.b16 %v4647, %v4641
    %v4960 = vpack.c.b16 %v4648, %v4642
    %v4961 = vpack.c.b16 %v4649, %v4643
    %v4962 = vpack.c.b16 %v4656, %v4650
    %v4963 = vpack.c.b16 %v4657, %v4651
    %v4964 = vpack.c.b16 %v4658, %v4652
    %v4965 = vpack.c.b16 %v4659, %v4653
    %v4966 = vpack.c.b16 %v4660, %v4654
    %v4967 = vpack.c.b16 %v4661, %v4655
    %v4968 = vpack.c.b16 %v4668, %v4662
    %v4969 = vpack.c.b16 %v4669, %v4663
    %v4970 = vpack.c.b16 %v4670, %v4664
    %v4971 = vpack.c.b16 %v4671, %v4665
    %v4972 = vpack.c.b16 %v4672, %v4666
    %v4973 = vpack.c.b16 %v4673, %v4667
    %v4974 = vpack.c.b16 %v4680, %v4674
    %v4975 = vpack.c.b16 %v4681, %v4675
    %v4976 = vpack.c.b16 %v4682, %v4676
    %v4977 = vpack.c.b16 %v4683, %v4677
    %v4978 = vpack.c.b16 %v4684, %v4678
    %v4979 = vpack.c.b16 %v4685, %v4679
    %v4980 = vpack.c.b16 %v4692, %v4686
    %v4981 = vpack.c.b16 %v4693, %v4687
    %v4982 = vpack.c.b16 %v4694, %v4688
    %v4983 = vpack.c.b16 %v4695, %v4689
    %v4984 = vpack.c.b16 %v4696, %v4690
    %v4985 = vpack.c.b16 %v4697, %v4691
    %5274 = vmatpush.bf16.msra.mxu0 %v4740
    %5275 = vmatpush.bf16.msra.mxu0 %v4734
    %5276 = vmatpush.bf16.msra.mxu0 %v4728
    %5277 = vmatpush.bf16.msra.mxu0 %v4722
    %5278 = vmatpush.bf16.msra.mxu0 %v4716
    %5279 = vmatpush.bf16.msra.mxu0 %v4710
    %5280 = vmatpush.bf16.msra.mxu0 %v4704
    %5281 = vmatpush.bf16.msra.mxu0 %v4698
    %5282 = vmatmul.bf16.gmra.mxu0 %v3822
    %v5283 = vpop.f32.mrf.mxu0
    %v5284 = vadd.f32 0.0, %v5283
    %v5285 = vpop.f32.mrf.mxu0
    %v5286 = vadd.f32 0.0, %v5285
    %5287 = vdwg.mxu0
    %5288 = vmatpush.bf16.msra.mxu0 %v4788
    %5289 = vmatpush.bf16.msra.mxu0 %v4782
    %5290 = vmatpush.bf16.msra.mxu0 %v4776
    %5291 = vmatpush.bf16.msra.mxu0 %v4770
    %5292 = vmatpush.bf16.msra.mxu0 %v4764
    %5293 = vmatpush.bf16.msra.mxu0 %v4758
    %5294 = vmatpush.bf16.msra.mxu0 %v4752
    %5295 = vmatpush.bf16.msra.mxu0 %v4746
    %5296 = vmatmul.bf16.gmra.mxu0 %v3823
    %v5297 = vpop.f32.mrf.mxu0
    %v5298 = vadd.f32 %v5284, %v5297
    %v5299 = vpop.f32.mrf.mxu0
    %v5300 = vadd.f32 %v5286, %v5299
    %5301 = vdwg.mxu0
    %5302 = vmatpush.bf16.msra.mxu0 %v4836
    %5303 = vmatpush.bf16.msra.mxu0 %v4830
    %5304 = vmatpush.bf16.msra.mxu0 %v4824
    %5305 = vmatpush.bf16.msra.mxu0 %v4818
    %5306 = vmatpush.bf16.msra.mxu0 %v4812
    %5307 = vmatpush.bf16.msra.mxu0 %v4806
    %5308 = vmatpush.bf16.msra.mxu0 %v4800
    %5309 = vmatpush.bf16.msra.mxu0 %v4794
    %5310 = vmatmul.bf16.gmra.mxu0 %v3824
    %v5311 = vpop.f32.mrf.mxu0
    %v5312 = vadd.f32 %v5298, %v5311
    %v5313 = vpop.f32.mrf.mxu0
    %v5314 = vadd.f32 %v5300, %v5313
    %5315 = vdwg.mxu0
    %5316 = vmatpush.bf16.msra.mxu0 %v4884
    %5317 = vmatpush.bf16.msra.mxu0 %v4878
    %5318 = vmatpush.bf16.msra.mxu0 %v4872
    %5319 = vmatpush.bf16.msra.mxu0 %v4866
    %5320 = vmatpush.bf16.msra.mxu0 %v4860
    %5321 = vmatpush.bf16.msra.mxu0 %v4854
    %5322 = vmatpush.bf16.msra.mxu0 %v4848
    %5323 = vmatpush.bf16.msra.mxu0 %v4842
    %5324 = vmatmul.bf16.gmra.mxu0 %v3825
    %v5325 = vpop.f32.mrf.mxu0
    %v5326 = vadd.f32 %v5312, %v5325
    %v5327 = vpop.f32.mrf.mxu0
    %v5328 = vadd.f32 %v5314, %v5327
    %5329 = vdwg.mxu0
    %5330 = vmatpush.bf16.msra.mxu0 %v4932
    %5331 = vmatpush.bf16.msra.mxu0 %v4926
    %5332 = vmatpush.bf16.msra.mxu0 %v4920
    %5333 = vmatpush.bf16.msra.mxu0 %v4914
    %5334 = vmatpush.bf16.msra.mxu0 %v4908
    %5335 = vmatpush.bf16.msra.mxu0 %v4902
    %5336 = vmatpush.bf16.msra.mxu0 %v4896
    %5337 = vmatpush.bf16.msra.mxu0 %v4890
    %5338 = vmatmul.bf16.gmra.mxu0 %v3826
    %v5339 = vpop.f32.mrf.mxu0
    %v5340 = vadd.f32 %v5326, %v5339
    %v5341 = vpop.f32.mrf.mxu0
    %v5342 = vadd.f32 %v5328, %v5341
    %5343 = vdwg.mxu0
    %5344 = vmatpush.bf16.msra.mxu0 %v4980
    %5345 = vmatpush.bf16.msra.mxu0 %v4974
    %5346 = vmatpush.bf16.msra.mxu0 %v4968
    %5347 = vmatpush.bf16.msra.mxu0 %v4962
    %5348 = vmatpush.bf16.msra.mxu0 %v4956
    %5349 = vmatpush.bf16.msra.mxu0 %v4950
    %5350 = vmatpush.bf16.msra.mxu0 %v4944
    %5351 = vmatpush.bf16.msra.mxu0 %v4938
    %5352 = vmatmul.bf16.gmra.mxu0 %v3827
    %v5353 = vpop.f32.mrf.mxu0
    %v5354 = vadd.f32 %v5340, %v5353
    %v5355 = vpop.f32.mrf.mxu0
    %v5356 = vadd.f32 %v5342, %v5355
    %5357 = vdwg.mxu0
    %5358 = vmatpush.bf16.msra.mxu0 %v4741
    %5359 = vmatpush.bf16.msra.mxu0 %v4735
    %5360 = vmatpush.bf16.msra.mxu0 %v4729
    %5361 = vmatpush.bf16.msra.mxu0 %v4723
    %5362 = vmatpush.bf16.msra.mxu0 %v4717
    %5363 = vmatpush.bf16.msra.mxu0 %v4711
    %5364 = vmatpush.bf16.msra.mxu0 %v4705
    %5365 = vmatpush.bf16.msra.mxu0 %v4699
    %5366 = vmatmul.bf16.gmra.mxu0 %v3822
    %v5367 = vpop.f32.mrf.mxu0
    %v5368 = vadd.f32 0.0, %v5367
    %v5369 = vpop.f32.mrf.mxu0
    %v5370 = vadd.f32 0.0, %v5369
    %5371 = vdwg.mxu0
    %5372 = vmatpush.bf16.msra.mxu0 %v4789
    %5373 = vmatpush.bf16.msra.mxu0 %v4783
    %5374 = vmatpush.bf16.msra.mxu0 %v4777
    %5375 = vmatpush.bf16.msra.mxu0 %v4771
    %5376 = vmatpush.bf16.msra.mxu0 %v4765
    %5377 = vmatpush.bf16.msra.mxu0 %v4759
    %5378 = vmatpush.bf16.msra.mxu0 %v4753
    %5379 = vmatpush.bf16.msra.mxu0 %v4747
    %5380 = vmatmul.bf16.gmra.mxu0 %v3823
    %v5381 = vpop.f32.mrf.mxu0
    %v5382 = vadd.f32 %v5368, %v5381
    %v5383 = vpop.f32.mrf.mxu0
    %v5384 = vadd.f32 %v5370, %v5383
    %5385 = vdwg.mxu0
    %5386 = vmatpush.bf16.msra.mxu0 %v4837
    %5387 = vmatpush.bf16.msra.mxu0 %v4831
    %5388 = vmatpush.bf16.msra.mxu0 %v4825
    %5389 = vmatpush.bf16.msra.mxu0 %v4819
    %5390 = vmatpush.bf16.msra.mxu0 %v4813
    %5391 = vmatpush.bf16.msra.mxu0 %v4807
    %5392 = vmatpush.bf16.msra.mxu0 %v4801
    %5393 = vmatpush.bf16.msra.mxu0 %v4795
    %5394 = vmatmul.bf16.gmra.mxu0 %v3824
    %v5395 = vpop.f32.mrf.mxu0
    %v5396 = vadd.f32 %v5382, %v5395
    %v5397 = vpop.f32.mrf.mxu0
    %v5398 = vadd.f32 %v5384, %v5397
    %5399 = vdwg.mxu0
    %5400 = vmatpush.bf16.msra.mxu0 %v4885
    %5401 = vmatpush.bf16.msra.mxu0 %v4879
    %5402 = vmatpush.bf16.msra.mxu0 %v4873
    %5403 = vmatpush.bf16.msra.mxu0 %v4867
    %5404 = vmatpush.bf16.msra.mxu0 %v4861
    %5405 = vmatpush.bf16.msra.mxu0 %v4855
    %5406 = vmatpush.bf16.msra.mxu0 %v4849
    %5407 = vmatpush.bf16.msra.mxu0 %v4843
    %5408 = vmatmul.bf16.gmra.mxu0 %v3825
    %v5409 = vpop.f32.mrf.mxu0
    %v5410 = vadd.f32 %v5396, %v5409
    %v5411 = vpop.f32.mrf.mxu0
    %v5412 = vadd.f32 %v5398, %v5411
    %5413 = vdwg.mxu0
    %5414 = vmatpush.bf16.msra.mxu0 %v4933
    %5415 = vmatpush.bf16.msra.mxu0 %v4927
    %5416 = vmatpush.bf16.msra.mxu0 %v4921
    %5417 = vmatpush.bf16.msra.mxu0 %v4915
    %5418 = vmatpush.bf16.msra.mxu0 %v4909
    %5419 = vmatpush.bf16.msra.mxu0 %v4903
    %5420 = vmatpush.bf16.msra.mxu0 %v4897
    %5421 = vmatpush.bf16.msra.mxu0 %v4891
    %5422 = vmatmul.bf16.gmra.mxu0 %v3826
    %v5423 = vpop.f32.mrf.mxu0
    %v5424 = vadd.f32 %v5410, %v5423
    %v5425 = vpop.f32.mrf.mxu0
    %v5426 = vadd.f32 %v5412, %v5425
    %5427 = vdwg.mxu0
    %5428 = vmatpush.bf16.msra.mxu0 %v4981
    %5429 = vmatpush.bf16.msra.mxu0 %v4975
    %5430 = vmatpush.bf16.msra.mxu0 %v4969
    %5431 = vmatpush.bf16.msra.mxu0 %v4963
    %5432 = vmatpush.bf16.msra.mxu0 %v4957
    %5433 = vmatpush.bf16.msra.mxu0 %v4951
    %5434 = vmatpush.bf16.msra.mxu0 %v4945
    %5435 = vmatpush.bf16.msra.mxu0 %v4939
    %5436 = vmatmul.bf16.gmra.mxu0 %v3827
    %v5437 = vpop.f32.mrf.mxu0
    %v5438 = vadd.f32 %v5424, %v5437
    %v5439 = vpop.f32.mrf.mxu0
    %v5440 = vadd.f32 %v5426, %v5439
    %5441 = vdwg.mxu0
    %5442 = vmatpush.bf16.msra.mxu0 %v4742
    %5443 = vmatpush.bf16.msra.mxu0 %v4736
    %5444 = vmatpush.bf16.msra.mxu0 %v4730
    %5445 = vmatpush.bf16.msra.mxu0 %v4724
    %5446 = vmatpush.bf16.msra.mxu0 %v4718
    %5447 = vmatpush.bf16.msra.mxu0 %v4712
    %5448 = vmatpush.bf16.msra.mxu0 %v4706
    %5449 = vmatpush.bf16.msra.mxu0 %v4700
    %5450 = vmatmul.bf16.gmra.mxu0 %v3822
    %v5451 = vpop.f32.mrf.mxu0
    %v5452 = vadd.f32 0.0, %v5451
    %v5453 = vpop.f32.mrf.mxu0
    %v5454 = vadd.f32 0.0, %v5453
    %5455 = vdwg.mxu0
    %5456 = vmatpush.bf16.msra.mxu0 %v4790
    %5457 = vmatpush.bf16.msra.mxu0 %v4784
    %5458 = vmatpush.bf16.msra.mxu0 %v4778
    %5459 = vmatpush.bf16.msra.mxu0 %v4772
    %5460 = vmatpush.bf16.msra.mxu0 %v4766
    %5461 = vmatpush.bf16.msra.mxu0 %v4760
    %5462 = vmatpush.bf16.msra.mxu0 %v4754
    %5463 = vmatpush.bf16.msra.mxu0 %v4748
    %5464 = vmatmul.bf16.gmra.mxu0 %v3823
    %v5465 = vpop.f32.mrf.mxu0
    %v5466 = vadd.f32 %v5452, %v5465
    %v5467 = vpop.f32.mrf.mxu0
    %v5468 = vadd.f32 %v5454, %v5467
    %5469 = vdwg.mxu0
    %5470 = vmatpush.bf16.msra.mxu0 %v4838
    %5471 = vmatpush.bf16.msra.mxu0 %v4832
    %5472 = vmatpush.bf16.msra.mxu0 %v4826
    %5473 = vmatpush.bf16.msra.mxu0 %v4820
    %5474 = vmatpush.bf16.msra.mxu0 %v4814
    %5475 = vmatpush.bf16.msra.mxu0 %v4808
    %5476 = vmatpush.bf16.msra.mxu0 %v4802
    %5477 = vmatpush.bf16.msra.mxu0 %v4796
    %5478 = vmatmul.bf16.gmra.mxu0 %v3824
    %v5479 = vpop.f32.mrf.mxu0
    %v5480 = vadd.f32 %v5466, %v5479
    %v5481 = vpop.f32.mrf.mxu0
    %v5482 = vadd.f32 %v5468, %v5481
    %5483 = vdwg.mxu0
    %5484 = vmatpush.bf16.msra.mxu0 %v4886
    %5485 = vmatpush.bf16.msra.mxu0 %v4880
    %5486 = vmatpush.bf16.msra.mxu0 %v4874
    %5487 = vmatpush.bf16.msra.mxu0 %v4868
    %5488 = vmatpush.bf16.msra.mxu0 %v4862
    %5489 = vmatpush.bf16.msra.mxu0 %v4856
    %5490 = vmatpush.bf16.msra.mxu0 %v4850
    %5491 = vmatpush.bf16.msra.mxu0 %v4844
    %5492 = vmatmul.bf16.gmra.mxu0 %v3825
    %v5493 = vpop.f32.mrf.mxu0
    %v5494 = vadd.f32 %v5480, %v5493
    %v5495 = vpop.f32.mrf.mxu0
    %v5496 = vadd.f32 %v5482, %v5495
    %5497 = vdwg.mxu0
    %5498 = vmatpush.bf16.msra.mxu0 %v4934
    %5499 = vmatpush.bf16.msra.mxu0 %v4928
    %5500 = vmatpush.bf16.msra.mxu0 %v4922
    %5501 = vmatpush.bf16.msra.mxu0 %v4916
    %5502 = vmatpush.bf16.msra.mxu0 %v4910
    %5503 = vmatpush.bf16.msra.mxu0 %v4904
    %5504 = vmatpush.bf16.msra.mxu0 %v4898
    %5505 = vmatpush.bf16.msra.mxu0 %v4892
    %5506 = vmatmul.bf16.gmra.mxu0 %v3826
    %v5507 = vpop.f32.mrf.mxu0
    %v5508 = vadd.f32 %v5494, %v5507
    %v5509 = vpop.f32.mrf.mxu0
    %v5510 = vadd.f32 %v5496, %v5509
    %5511 = vdwg.mxu0
    %5512 = vmatpush.bf16.msra.mxu0 %v4982
    %5513 = vmatpush.bf16.msra.mxu0 %v4976
    %5514 = vmatpush.bf16.msra.mxu0 %v4970
    %5515 = vmatpush.bf16.msra.mxu0 %v4964
    %5516 = vmatpush.bf16.msra.mxu0 %v4958
    %5517 = vmatpush.bf16.msra.mxu0 %v4952
    %5518 = vmatpush.bf16.msra.mxu0 %v4946
    %5519 = vmatpush.bf16.msra.mxu0 %v4940
    %5520 = vmatmul.bf16.gmra.mxu0 %v3827
    %v5521 = vpop.f32.mrf.mxu0
    %v5522 = vadd.f32 %v5508, %v5521
    %v5523 = vpop.f32.mrf.mxu0
    %v5524 = vadd.f32 %v5510, %v5523
    %5525 = vdwg.mxu0
    %5526 = vmatpush.bf16.msra.mxu0 %v4743
    %5527 = vmatpush.bf16.msra.mxu0 %v4737
    %5528 = vmatpush.bf16.msra.mxu0 %v4731
    %5529 = vmatpush.bf16.msra.mxu0 %v4725
    %5530 = vmatpush.bf16.msra.mxu0 %v4719
    %5531 = vmatpush.bf16.msra.mxu0 %v4713
    %5532 = vmatpush.bf16.msra.mxu0 %v4707
    %5533 = vmatpush.bf16.msra.mxu0 %v4701
    %5534 = vmatmul.bf16.gmra.mxu0 %v3822
    %v5535 = vpop.f32.mrf.mxu0
    %v5536 = vadd.f32 0.0, %v5535
    %v5537 = vpop.f32.mrf.mxu0
    %v5538 = vadd.f32 0.0, %v5537
    %5539 = vdwg.mxu0
    %5540 = vmatpush.bf16.msra.mxu0 %v4791
    %5541 = vmatpush.bf16.msra.mxu0 %v4785
    %5542 = vmatpush.bf16.msra.mxu0 %v4779
    %5543 = vmatpush.bf16.msra.mxu0 %v4773
    %5544 = vmatpush.bf16.msra.mxu0 %v4767
    %5545 = vmatpush.bf16.msra.mxu0 %v4761
    %5546 = vmatpush.bf16.msra.mxu0 %v4755
    %5547 = vmatpush.bf16.msra.mxu0 %v4749
    %5548 = vmatmul.bf16.gmra.mxu0 %v3823
    %v5549 = vpop.f32.mrf.mxu0
    %v5550 = vadd.f32 %v5536, %v5549
    %v5551 = vpop.f32.mrf.mxu0
    %v5552 = vadd.f32 %v5538, %v5551
    %5553 = vdwg.mxu0
    %5554 = vmatpush.bf16.msra.mxu0 %v4839
    %5555 = vmatpush.bf16.msra.mxu0 %v4833
    %5556 = vmatpush.bf16.msra.mxu0 %v4827
    %5557 = vmatpush.bf16.msra.mxu0 %v4821
    %5558 = vmatpush.bf16.msra.mxu0 %v4815
    %5559 = vmatpush.bf16.msra.mxu0 %v4809
    %5560 = vmatpush.bf16.msra.mxu0 %v4803
    %5561 = vmatpush.bf16.msra.mxu0 %v4797
    %5562 = vmatmul.bf16.gmra.mxu0 %v3824
    %v5563 = vpop.f32.mrf.mxu0
    %v5564 = vadd.f32 %v5550, %v5563
    %v5565 = vpop.f32.mrf.mxu0
    %v5566 = vadd.f32 %v5552, %v5565
    %5567 = vdwg.mxu0
    %5568 = vmatpush.bf16.msra.mxu0 %v4887
    %5569 = vmatpush.bf16.msra.mxu0 %v4881
    %5570 = vmatpush.bf16.msra.mxu0 %v4875
    %5571 = vmatpush.bf16.msra.mxu0 %v4869
    %5572 = vmatpush.bf16.msra.mxu0 %v4863
    %5573 = vmatpush.bf16.msra.mxu0 %v4857
    %5574 = vmatpush.bf16.msra.mxu0 %v4851
    %5575 = vmatpush.bf16.msra.mxu0 %v4845
    %5576 = vmatmul.bf16.gmra.mxu0 %v3825
    %v5577 = vpop.f32.mrf.mxu0
    %v5578 = vadd.f32 %v5564, %v5577
    %v5579 = vpop.f32.mrf.mxu0
    %v5580 = vadd.f32 %v5566, %v5579
    %5581 = vdwg.mxu0
    %5582 = vmatpush.bf16.msra.mxu0 %v4935
    %5583 = vmatpush.bf16.msra.mxu0 %v4929
    %5584 = vmatpush.bf16.msra.mxu0 %v4923
    %5585 = vmatpush.bf16.msra.mxu0 %v4917
    %5586 = vmatpush.bf16.msra.mxu0 %v4911
    %5587 = vmatpush.bf16.msra.mxu0 %v4905
    %5588 = vmatpush.bf16.msra.mxu0 %v4899
    %5589 = vmatpush.bf16.msra.mxu0 %v4893
    %5590 = vmatmul.bf16.gmra.mxu0 %v3826
    %v5591 = vpop.f32.mrf.mxu0
    %v5592 = vadd.f32 %v5578, %v5591
    %v5593 = vpop.f32.mrf.mxu0
    %v5594 = vadd.f32 %v5580, %v5593
    %5595 = vdwg.mxu0
    %5596 = vmatpush.bf16.msra.mxu0 %v4983
    %5597 = vmatpush.bf16.msra.mxu0 %v4977
    %5598 = vmatpush.bf16.msra.mxu0 %v4971
    %5599 = vmatpush.bf16.msra.mxu0 %v4965
    %5600 = vmatpush.bf16.msra.mxu0 %v4959
    %5601 = vmatpush.bf16.msra.mxu0 %v4953
    %5602 = vmatpush.bf16.msra.mxu0 %v4947
    %5603 = vmatpush.bf16.msra.mxu0 %v4941
    %5604 = vmatmul.bf16.gmra.mxu0 %v3827
    %v5605 = vpop.f32.mrf.mxu0
    %v5606 = vadd.f32 %v5592, %v5605
    %v5607 = vpop.f32.mrf.mxu0
    %v5608 = vadd.f32 %v5594, %v5607
    %5609 = vdwg.mxu0
    %5610 = vmatpush.bf16.msra.mxu0 %v4744
    %5611 = vmatpush.bf16.msra.mxu0 %v4738
    %5612 = vmatpush.bf16.msra.mxu0 %v4732
    %5613 = vmatpush.bf16.msra.mxu0 %v4726
    %5614 = vmatpush.bf16.msra.mxu0 %v4720
    %5615 = vmatpush.bf16.msra.mxu0 %v4714
    %5616 = vmatpush.bf16.msra.mxu0 %v4708
    %5617 = vmatpush.bf16.msra.mxu0 %v4702
    %5618 = vmatmul.bf16.gmra.mxu0 %v3822
    %v5619 = vpop.f32.mrf.mxu0
    %v5620 = vadd.f32 0.0, %v5619
    %v5621 = vpop.f32.mrf.mxu0
    %v5622 = vadd.f32 0.0, %v5621
    %5623 = vdwg.mxu0
    %5624 = vmatpush.bf16.msra.mxu0 %v4792
    %5625 = vmatpush.bf16.msra.mxu0 %v4786
    %5626 = vmatpush.bf16.msra.mxu0 %v4780
    %5627 = vmatpush.bf16.msra.mxu0 %v4774
    %5628 = vmatpush.bf16.msra.mxu0 %v4768
    %5629 = vmatpush.bf16.msra.mxu0 %v4762
    %5630 = vmatpush.bf16.msra.mxu0 %v4756
    %5631 = vmatpush.bf16.msra.mxu0 %v4750
    %5632 = vmatmul.bf16.gmra.mxu0 %v3823
    %v5633 = vpop.f32.mrf.mxu0
    %v5634 = vadd.f32 %v5620, %v5633
    %v5635 = vpop.f32.mrf.mxu0
    %v5636 = vadd.f32 %v5622, %v5635
    %5637 = vdwg.mxu0
    %5638 = vmatpush.bf16.msra.mxu0 %v4840
    %5639 = vmatpush.bf16.msra.mxu0 %v4834
    %5640 = vmatpush.bf16.msra.mxu0 %v4828
    %5641 = vmatpush.bf16.msra.mxu0 %v4822
    %5642 = vmatpush.bf16.msra.mxu0 %v4816
    %5643 = vmatpush.bf16.msra.mxu0 %v4810
    %5644 = vmatpush.bf16.msra.mxu0 %v4804
    %5645 = vmatpush.bf16.msra.mxu0 %v4798
    %5646 = vmatmul.bf16.gmra.mxu0 %v3824
    %v5647 = vpop.f32.mrf.mxu0
    %v5648 = vadd.f32 %v5634, %v5647
    %v5649 = vpop.f32.mrf.mxu0
    %v5650 = vadd.f32 %v5636, %v5649
    %5651 = vdwg.mxu0
    %5652 = vmatpush.bf16.msra.mxu0 %v4888
    %5653 = vmatpush.bf16.msra.mxu0 %v4882
    %5654 = vmatpush.bf16.msra.mxu0 %v4876
    %5655 = vmatpush.bf16.msra.mxu0 %v4870
    %5656 = vmatpush.bf16.msra.mxu0 %v4864
    %5657 = vmatpush.bf16.msra.mxu0 %v4858
    %5658 = vmatpush.bf16.msra.mxu0 %v4852
    %5659 = vmatpush.bf16.msra.mxu0 %v4846
    %5660 = vmatmul.bf16.gmra.mxu0 %v3825
    %v5661 = vpop.f32.mrf.mxu0
    %v5662 = vadd.f32 %v5648, %v5661
    %v5663 = vpop.f32.mrf.mxu0
    %v5664 = vadd.f32 %v5650, %v5663
    %5665 = vdwg.mxu0
    %5666 = vmatpush.bf16.msra.mxu0 %v4936
    %5667 = vmatpush.bf16.msra.mxu0 %v4930
    %5668 = vmatpush.bf16.msra.mxu0 %v4924
    %5669 = vmatpush.bf16.msra.mxu0 %v4918
    %5670 = vmatpush.bf16.msra.mxu0 %v4912
    %5671 = vmatpush.bf16.msra.mxu0 %v4906
    %5672 = vmatpush.bf16.msra.mxu0 %v4900
    %5673 = vmatpush.bf16.msra.mxu0 %v4894
    %5674 = vmatmul.bf16.gmra.mxu0 %v3826
    %v5675 = vpop.f32.mrf.mxu0
    %v5676 = vadd.f32 %v5662, %v5675
    %v5677 = vpop.f32.mrf.mxu0
    %v5678 = vadd.f32 %v5664, %v5677
    %5679 = vdwg.mxu0
    %5680 = vmatpush.bf16.msra.mxu0 %v4984
    %5681 = vmatpush.bf16.msra.mxu0 %v4978
    %5682 = vmatpush.bf16.msra.mxu0 %v4972
    %5683 = vmatpush.bf16.msra.mxu0 %v4966
    %5684 = vmatpush.bf16.msra.mxu0 %v4960
    %5685 = vmatpush.bf16.msra.mxu0 %v4954
    %5686 = vmatpush.bf16.msra.mxu0 %v4948
    %5687 = vmatpush.bf16.msra.mxu0 %v4942
    %5688 = vmatmul.bf16.gmra.mxu0 %v3827
    %v5689 = vpop.f32.mrf.mxu0
    %v5690 = vadd.f32 %v5676, %v5689
    %v5691 = vpop.f32.mrf.mxu0
    %v5692 = vadd.f32 %v5678, %v5691
    %5693 = vdwg.mxu0
    %5694 = vmatpush.bf16.msra.mxu0 %v4745
    %5695 = vmatpush.bf16.msra.mxu0 %v4739
    %5696 = vmatpush.bf16.msra.mxu0 %v4733
    %5697 = vmatpush.bf16.msra.mxu0 %v4727
    %5698 = vmatpush.bf16.msra.mxu0 %v4721
    %5699 = vmatpush.bf16.msra.mxu0 %v4715
    %5700 = vmatpush.bf16.msra.mxu0 %v4709
    %5701 = vmatpush.bf16.msra.mxu0 %v4703
    %5702 = vmatmul.bf16.gmra.mxu0 %v3822
    %v5703 = vpop.f32.mrf.mxu0
    %v5704 = vadd.f32 0.0, %v5703
    %v5705 = vpop.f32.mrf.mxu0
    %v5706 = vadd.f32 0.0, %v5705
    %5707 = vdwg.mxu0
    %5708 = vmatpush.bf16.msra.mxu0 %v4793
    %5709 = vmatpush.bf16.msra.mxu0 %v4787
    %5710 = vmatpush.bf16.msra.mxu0 %v4781
    %5711 = vmatpush.bf16.msra.mxu0 %v4775
    %5712 = vmatpush.bf16.msra.mxu0 %v4769
    %5713 = vmatpush.bf16.msra.mxu0 %v4763
    %5714 = vmatpush.bf16.msra.mxu0 %v4757
    %5715 = vmatpush.bf16.msra.mxu0 %v4751
    %5716 = vmatmul.bf16.gmra.mxu0 %v3823
    %v5717 = vpop.f32.mrf.mxu0
    %v5718 = vadd.f32 %v5704, %v5717
    %v5719 = vpop.f32.mrf.mxu0
    %v5720 = vadd.f32 %v5706, %v5719
    %5721 = vdwg.mxu0
    %5722 = vmatpush.bf16.msra.mxu0 %v4841
    %5723 = vmatpush.bf16.msra.mxu0 %v4835
    %5724 = vmatpush.bf16.msra.mxu0 %v4829
    %5725 = vmatpush.bf16.msra.mxu0 %v4823
    %5726 = vmatpush.bf16.msra.mxu0 %v4817
    %5727 = vmatpush.bf16.msra.mxu0 %v4811
    %5728 = vmatpush.bf16.msra.mxu0 %v4805
    %5729 = vmatpush.bf16.msra.mxu0 %v4799
    %5730 = vmatmul.bf16.gmra.mxu0 %v3824
    %v5731 = vpop.f32.mrf.mxu0
    %v5732 = vadd.f32 %v5718, %v5731
    %v5733 = vpop.f32.mrf.mxu0
    %v5734 = vadd.f32 %v5720, %v5733
    %5735 = vdwg.mxu0
    %5736 = vmatpush.bf16.msra.mxu0 %v4889
    %5737 = vmatpush.bf16.msra.mxu0 %v4883
    %5738 = vmatpush.bf16.msra.mxu0 %v4877
    %5739 = vmatpush.bf16.msra.mxu0 %v4871
    %5740 = vmatpush.bf16.msra.mxu0 %v4865
    %5741 = vmatpush.bf16.msra.mxu0 %v4859
    %5742 = vmatpush.bf16.msra.mxu0 %v4853
    %5743 = vmatpush.bf16.msra.mxu0 %v4847
    %5744 = vmatmul.bf16.gmra.mxu0 %v3825
    %v5745 = vpop.f32.mrf.mxu0
    %v5746 = vadd.f32 %v5732, %v5745
    %v5747 = vpop.f32.mrf.mxu0
    %v5748 = vadd.f32 %v5734, %v5747
    %5749 = vdwg.mxu0
    %5750 = vmatpush.bf16.msra.mxu0 %v4937
    %5751 = vmatpush.bf16.msra.mxu0 %v4931
    %5752 = vmatpush.bf16.msra.mxu0 %v4925
    %5753 = vmatpush.bf16.msra.mxu0 %v4919
    %5754 = vmatpush.bf16.msra.mxu0 %v4913
    %5755 = vmatpush.bf16.msra.mxu0 %v4907
    %5756 = vmatpush.bf16.msra.mxu0 %v4901
    %5757 = vmatpush.bf16.msra.mxu0 %v4895
    %5758 = vmatmul.bf16.gmra.mxu0 %v3826
    %v5759 = vpop.f32.mrf.mxu0
    %v5760 = vadd.f32 %v5746, %v5759
    %v5761 = vpop.f32.mrf.mxu0
    %v5762 = vadd.f32 %v5748, %v5761
    %5763 = vdwg.mxu0
    %5764 = vmatpush.bf16.msra.mxu0 %v4985
    %5765 = vmatpush.bf16.msra.mxu0 %v4979
    %5766 = vmatpush.bf16.msra.mxu0 %v4973
    %5767 = vmatpush.bf16.msra.mxu0 %v4967
    %5768 = vmatpush.bf16.msra.mxu0 %v4961
    %5769 = vmatpush.bf16.msra.mxu0 %v4955
    %5770 = vmatpush.bf16.msra.mxu0 %v4949
    %5771 = vmatpush.bf16.msra.mxu0 %v4943
    %5772 = vmatmul.bf16.gmra.mxu0 %v3827
    %v5773 = vpop.f32.mrf.mxu0
    %v5774 = vadd.f32 %v5760, %v5773
    %v5775 = vpop.f32.mrf.mxu0
    %v5776 = vadd.f32 %v5762, %v5775
    %5777 = vdwg.mxu0
    %v5778 = vadd.f32 %v5354, %v5438
    %v5779 = vadd.f32 %v5778, %v5522
    %v5780 = vadd.f32 %v5779, %v5606
    %v5781 = vadd.f32 %v5780, %v5690
    %v5782 = vadd.f32 %v5781, %v5774
    %5783 = vadd.xlane.f32.xlu0 %v5782
    %v5784 = vpop.xlane.xlu0 %5783
    %v5785 = vadd.f32 %v5356, %v5440
    %v5786 = vadd.f32 %v5785, %v5524
    %v5787 = vadd.f32 %v5786, %v5608
    %v5788 = vadd.f32 %v5787, %v5692
    %v5789 = vadd.f32 %v5788, %v5776
    %5790 = vadd.xlane.f32.xlu0 %v5789
    %v5791 = vpop.xlane.xlu0 %5790
    %v5792 = vmul.f32 %v5784, %v2394
    %v5793 = vmul.f32 %v5791, %v2394
    %v5794 = vsub.f32 %v5354, %v5792
    %v5795 = vsub.f32 %v5438, %v5792
    %v5796 = vsub.f32 %v5522, %v5792
    %v5797 = vsub.f32 %v5606, %v5792
    %v5798 = vsub.f32 %v5690, %v5792
    %v5799 = vsub.f32 %v5774, %v5792
    %v5800 = vsub.f32 %v5356, %v5793
    %v5801 = vsub.f32 %v5440, %v5793
    %v5802 = vsub.f32 %v5524, %v5793
    %v5803 = vsub.f32 %v5608, %v5793
    %v5804 = vsub.f32 %v5692, %v5793
    %v5805 = vsub.f32 %v5776, %v5793
    %v5806 = vmul.f32 %v5794, %v5794
    %v5807 = vmul.f32 %v5795, %v5795
    %v5808 = vmul.f32 %v5796, %v5796
    %v5809 = vmul.f32 %v5797, %v5797
    %v5810 = vmul.f32 %v5798, %v5798
    %v5811 = vmul.f32 %v5799, %v5799
    %v5812 = vmul.f32 %v5800, %v5800
    %v5813 = vmul.f32 %v5801, %v5801
    %v5814 = vmul.f32 %v5802, %v5802
    %v5815 = vmul.f32 %v5803, %v5803
    %v5816 = vmul.f32 %v5804, %v5804
    %v5817 = vmul.f32 %v5805, %v5805
    %v5818 = vadd.f32 %v5806, %v5807
    %v5819 = vadd.f32 %v5818, %v5808
    %v5820 = vadd.f32 %v5819, %v5809
    %v5821 = vadd.f32 %v5820, %v5810
    %v5822 = vadd.f32 %v5821, %v5811
    %5823 = vadd.xlane.f32.xlu0 %v5822
    %v5824 = vpop.xlane.xlu0 %5823
    %v5825 = vadd.f32 %v5812, %v5813
    %v5826 = vadd.f32 %v5825, %v5814
    %v5827 = vadd.f32 %v5826, %v5815
    %v5828 = vadd.f32 %v5827, %v5816
    %v5829 = vadd.f32 %v5828, %v5817
    %5830 = vadd.xlane.f32.xlu0 %v5829
    %v5831 = vpop.xlane.xlu0 %5830
    %v5832 = vmul.f32 %v5824, %v2394
    %v5833 = vmul.f32 %v5831, %v2394
    %v5834 = vadd.f32 %v5832, 1e-06
    %v5835 = vadd.f32 %v5833, 1e-06
    %v5836 = vrsqrt.pop %v5834
    %v5837 = vmul.f32 %v5836, %v5834
    %v5838 = vmul.f32 %v5837, %v5836
    %v5839 = vmul.f32 0.5, %v5838
    %v5840 = vsub.f32 1.5, %v5839
    %v5841 = vmul.f32 %v5836, %v5840
    %vm5842 = vweird.f32 %v5834
    %vm5843 = vweird.f32 %v5836
    %vm5844 = vmor %vm5842, %vm5843
    %v5845 = vsel %vm5844, %v5836, %v5841
    %v5846 = vrsqrt.pop %v5835
    %v5847 = vmul.f32 %v5846, %v5835
    %v5848 = vmul.f32 %v5847, %v5846
    %v5849 = vmul.f32 0.5, %v5848
    %v5850 = vsub.f32 1.5, %v5849
    %v5851 = vmul.f32 %v5846, %v5850
    %vm5852 = vweird.f32 %v5835
    %vm5853 = vweird.f32 %v5846
    %vm5854 = vmor %vm5852, %vm5853
    %v5855 = vsel %vm5854, %v5846, %v5851
    %v5856 = vmul.f32 %v5794, %v5845
    %v5857 = vmul.f32 %v5795, %v5845
    %v5858 = vmul.f32 %v5796, %v5845
    %v5859 = vmul.f32 %v5797, %v5845
    %v5860 = vmul.f32 %v5798, %v5845
    %v5861 = vmul.f32 %v5799, %v5845
    %v5862 = vmul.f32 %v5800, %v5855
    %v5863 = vmul.f32 %v5801, %v5855
    %v5864 = vmul.f32 %v5802, %v5855
    %v5865 = vmul.f32 %v5803, %v5855
    %v5866 = vmul.f32 %v5804, %v5855
    %v5867 = vmul.f32 %v5805, %v5855
    %v5868 = vperm.slane %v93, 2
    %v5869 = vperm.slane %v94, 2
    %v5870 = vperm.slane %v95, 2
    %v5871 = vperm.slane %v96, 2
    %v5872 = vperm.slane %v97, 2
    %v5873 = vperm.slane %v98, 2
    %v5874 = vmul.f32 %v5856, %v5868
    %v5875 = vmul.f32 %v5857, %v5869
    %v5876 = vmul.f32 %v5858, %v5870
    %v5877 = vmul.f32 %v5859, %v5871
    %v5878 = vmul.f32 %v5860, %v5872
    %v5879 = vmul.f32 %v5861, %v5873
    %v5880 = vmul.f32 %v5862, %v5868
    %v5881 = vmul.f32 %v5863, %v5869
    %v5882 = vmul.f32 %v5864, %v5870
    %v5883 = vmul.f32 %v5865, %v5871
    %v5884 = vmul.f32 %v5866, %v5872
    %v5885 = vmul.f32 %v5867, %v5873
    %v5886 = vperm.slane %v93, 3
    %v5887 = vperm.slane %v94, 3
    %v5888 = vperm.slane %v95, 3
    %v5889 = vperm.slane %v96, 3
    %v5890 = vperm.slane %v97, 3
    %v5891 = vperm.slane %v98, 3
    %v5892 = vadd.f32 %v5874, %v5886
    %v5893 = vadd.f32 %v5875, %v5887
    %v5894 = vadd.f32 %v5876, %v5888
    %v5895 = vadd.f32 %v5877, %v5889
    %v5896 = vadd.f32 %v5878, %v5890
    %v5897 = vadd.f32 %v5879, %v5891
    %v5898 = vadd.f32 %v5880, %v5886
    %v5899 = vadd.f32 %v5881, %v5887
    %v5900 = vadd.f32 %v5882, %v5888
    %v5901 = vadd.f32 %v5883, %v5889
    %v5902 = vadd.f32 %v5884, %v5890
    %v5903 = vadd.f32 %v5885, %v5891
    %v5904 = vmul.f32 %v5892, 0.5
    %v5905 = vmul.f32 %v5893, 0.5
    %v5906 = vmul.f32 %v5894, 0.5
    %v5907 = vmul.f32 %v5895, 0.5
    %v5908 = vmul.f32 %v5896, 0.5
    %v5909 = vmul.f32 %v5897, 0.5
    %v5910 = vmul.f32 %v5898, 0.5
    %v5911 = vmul.f32 %v5899, 0.5
    %v5912 = vmul.f32 %v5900, 0.5
    %v5913 = vmul.f32 %v5901, 0.5
    %v5914 = vmul.f32 %v5902, 0.5
    %v5915 = vmul.f32 %v5903, 0.5
    %v5916 = vmul.f32 %v5892, 0.70710677
    %v5917 = vmul.f32 %v5893, 0.70710677
    %v5918 = vmul.f32 %v5894, 0.70710677
    %v5919 = vmul.f32 %v5895, 0.70710677
    %v5920 = vmul.f32 %v5896, 0.70710677
    %v5921 = vmul.f32 %v5897, 0.70710677
    %v5922 = vmul.f32 %v5898, 0.70710677
    %v5923 = vmul.f32 %v5899, 0.70710677
    %v5924 = vmul.f32 %v5900, 0.70710677
    %v5925 = vmul.f32 %v5901, 0.70710677
    %v5926 = vmul.f32 %v5902, 0.70710677
    %v5927 = vmul.f32 %v5903, 0.70710677
    %v5928 = vmul.f32 %v5916, %v5916
    %v5929 = vmin.f32 16.0, %v5928
    %v5930 = vmul.f32 %v5929, 2.1237322e-06
    %v5931 = vadd.f32 %v5930, 0.00028619796
    %v5932 = vmul.f32 %v5929, %v5931
    %v5933 = vadd.f32 %v5932, 0.0036580483
    %v5934 = vmul.f32 %v5929, %v5933
    %v5935 = vadd.f32 %v5934, 0.05243302
    %v5936 = vmul.f32 %v5929, %v5935
    %v5937 = vadd.f32 %v5936, 0.18741608
    %v5938 = vmul.f32 %v5929, %v5937
    %v5939 = vadd.f32 %v5938, 1.1283791
    %v5940 = vmul.f32 %v5916, %v5939
    %v5941 = vmul.f32 %v5929, 3.8918573e-05
    %v5942 = vadd.f32 %v5941, 0.001143296
    %v5943 = vmul.f32 %v5929, %v5942
    %v5944 = vadd.f32 %v5943, 0.014752088
    %v5945 = vmul.f32 %v5929, %v5944
    %v5946 = vadd.f32 %v5945, 0.112945676
    %v5947 = vmul.f32 %v5929, %v5946
    %v5948 = vadd.f32 %v5947, 0.4994258
    %v5949 = vmul.f32 %v5929, %v5948
    %v5950 = vadd.f32 %v5949, 1.0
    %v5951 = vrcp.pop %v5950
    %v5952 = vmul.f32 %v5950, %v5951
    %v5953 = vsub.f32 1.0, %v5952
    %v5954 = vmul.f32 %v5951, %v5953
    %v5955 = vadd.f32 %v5951, %v5954
    %vm5956 = vweird.f32 %v5950
    %vm5957 = vweird.f32 %v5951
    %vm5958 = vmor %vm5956, %vm5957
    %v5959 = vsel %vm5958, %v5951, %v5955
    %v5960 = vand.u32 2147483647, %v5950
    %vm5961 = vcmp.eq.f32.partialorder %v5960, 8.507059e+37
    %v5962 = vand.u32 %v5950, 2147483648
    %v5963 = vor.u32 1.1754944e-38, %v5962
    %v5964 = vsel %vm5961, %v5963, %v5959
    %v5965 = vmul.f32 %v5940, %v5964
    %v5966 = vmin.f32 %v5965, 1.0
    %v5967 = vmax.f32 %v5966, -1.0
    %v5968 = vmul.f32 %v5917, %v5917
    %v5969 = vmin.f32 16.0, %v5968
    %v5970 = vmul.f32 %v5969, 2.1237322e-06
    %v5971 = vadd.f32 %v5970, 0.00028619796
    %v5972 = vmul.f32 %v5969, %v5971
    %v5973 = vadd.f32 %v5972, 0.0036580483
    %v5974 = vmul.f32 %v5969, %v5973
    %v5975 = vadd.f32 %v5974, 0.05243302
    %v5976 = vmul.f32 %v5969, %v5975
    %v5977 = vadd.f32 %v5976, 0.18741608
    %v5978 = vmul.f32 %v5969, %v5977
    %v5979 = vadd.f32 %v5978, 1.1283791
    %v5980 = vmul.f32 %v5917, %v5979
    %v5981 = vmul.f32 %v5969, 3.8918573e-05
    %v5982 = vadd.f32 %v5981, 0.001143296
    %v5983 = vmul.f32 %v5969, %v5982
    %v5984 = vadd.f32 %v5983, 0.014752088
    %v5985 = vmul.f32 %v5969, %v5984
    %v5986 = vadd.f32 %v5985, 0.112945676
    %v5987 = vmul.f32 %v5969, %v5986
    %v5988 = vadd.f32 %v5987, 0.4994258
    %v5989 = vmul.f32 %v5969, %v5988
    %v5990 = vadd.f32 %v5989, 1.0
    %v5991 = vrcp.pop %v5990
    %v5992 = vmul.f32 %v5990, %v5991
    %v5993 = vsub.f32 1.0, %v5992
    %v5994 = vmul.f32 %v5991, %v5993
    %v5995 = vadd.f32 %v5991, %v5994
    %vm5996 = vweird.f32 %v5990
    %vm5997 = vweird.f32 %v5991
    %vm5998 = vmor %vm5996, %vm5997
    %v5999 = vsel %vm5998, %v5991, %v5995
    %v6000 = vand.u32 2147483647, %v5990
    %vm6001 = vcmp.eq.f32.partialorder %v6000, 8.507059e+37
    %v6002 = vand.u32 %v5990, 2147483648
    %v6003 = vor.u32 1.1754944e-38, %v6002
    %v6004 = vsel %vm6001, %v6003, %v5999
    %v6005 = vmul.f32 %v5980, %v6004
    %v6006 = vmin.f32 %v6005, 1.0
    %v6007 = vmax.f32 %v6006, -1.0
    %v6008 = vmul.f32 %v5918, %v5918
    %v6009 = vmin.f32 16.0, %v6008
    %v6010 = vmul.f32 %v6009, 2.1237322e-06
    %v6011 = vadd.f32 %v6010, 0.00028619796
    %v6012 = vmul.f32 %v6009, %v6011
    %v6013 = vadd.f32 %v6012, 0.0036580483
    %v6014 = vmul.f32 %v6009, %v6013
    %v6015 = vadd.f32 %v6014, 0.05243302
    %v6016 = vmul.f32 %v6009, %v6015
    %v6017 = vadd.f32 %v6016, 0.18741608
    %v6018 = vmul.f32 %v6009, %v6017
    %v6019 = vadd.f32 %v6018, 1.1283791
    %v6020 = vmul.f32 %v5918, %v6019
    %v6021 = vmul.f32 %v6009, 3.8918573e-05
    %v6022 = vadd.f32 %v6021, 0.001143296
    %v6023 = vmul.f32 %v6009, %v6022
    %v6024 = vadd.f32 %v6023, 0.014752088
    %v6025 = vmul.f32 %v6009, %v6024
    %v6026 = vadd.f32 %v6025, 0.112945676
    %v6027 = vmul.f32 %v6009, %v6026
    %v6028 = vadd.f32 %v6027, 0.4994258
    %v6029 = vmul.f32 %v6009, %v6028
    %v6030 = vadd.f32 %v6029, 1.0
    %v6031 = vrcp.pop %v6030
    %v6032 = vmul.f32 %v6030, %v6031
    %v6033 = vsub.f32 1.0, %v6032
    %v6034 = vmul.f32 %v6031, %v6033
    %v6035 = vadd.f32 %v6031, %v6034
    %vm6036 = vweird.f32 %v6030
    %vm6037 = vweird.f32 %v6031
    %vm6038 = vmor %vm6036, %vm6037
    %v6039 = vsel %vm6038, %v6031, %v6035
    %v6040 = vand.u32 2147483647, %v6030
    %vm6041 = vcmp.eq.f32.partialorder %v6040, 8.507059e+37
    %v6042 = vand.u32 %v6030, 2147483648
    %v6043 = vor.u32 1.1754944e-38, %v6042
    %v6044 = vsel %vm6041, %v6043, %v6039
    %v6045 = vmul.f32 %v6020, %v6044
    %v6046 = vmin.f32 %v6045, 1.0
    %v6047 = vmax.f32 %v6046, -1.0
    %v6048 = vmul.f32 %v5919, %v5919
    %v6049 = vmin.f32 16.0, %v6048
    %v6050 = vmul.f32 %v6049, 2.1237322e-06
    %v6051 = vadd.f32 %v6050, 0.00028619796
    %v6052 = vmul.f32 %v6049, %v6051
    %v6053 = vadd.f32 %v6052, 0.0036580483
    %v6054 = vmul.f32 %v6049, %v6053
    %v6055 = vadd.f32 %v6054, 0.05243302
    %v6056 = vmul.f32 %v6049, %v6055
    %v6057 = vadd.f32 %v6056, 0.18741608
    %v6058 = vmul.f32 %v6049, %v6057
    %v6059 = vadd.f32 %v6058, 1.1283791
    %v6060 = vmul.f32 %v5919, %v6059
    %v6061 = vmul.f32 %v6049, 3.8918573e-05
    %v6062 = vadd.f32 %v6061, 0.001143296
    %v6063 = vmul.f32 %v6049, %v6062
    %v6064 = vadd.f32 %v6063, 0.014752088
    %v6065 = vmul.f32 %v6049, %v6064
    %v6066 = vadd.f32 %v6065, 0.112945676
    %v6067 = vmul.f32 %v6049, %v6066
    %v6068 = vadd.f32 %v6067, 0.4994258
    %v6069 = vmul.f32 %v6049, %v6068
    %v6070 = vadd.f32 %v6069, 1.0
    %v6071 = vrcp.pop %v6070
    %v6072 = vmul.f32 %v6070, %v6071
    %v6073 = vsub.f32 1.0, %v6072
    %v6074 = vmul.f32 %v6071, %v6073
    %v6075 = vadd.f32 %v6071, %v6074
    %vm6076 = vweird.f32 %v6070
    %vm6077 = vweird.f32 %v6071
    %vm6078 = vmor %vm6076, %vm6077
    %v6079 = vsel %vm6078, %v6071, %v6075
    %v6080 = vand.u32 2147483647, %v6070
    %vm6081 = vcmp.eq.f32.partialorder %v6080, 8.507059e+37
    %v6082 = vand.u32 %v6070, 2147483648
    %v6083 = vor.u32 1.1754944e-38, %v6082
    %v6084 = vsel %vm6081, %v6083, %v6079
    %v6085 = vmul.f32 %v6060, %v6084
    %v6086 = vmin.f32 %v6085, 1.0
    %v6087 = vmax.f32 %v6086, -1.0
    %v6088 = vmul.f32 %v5920, %v5920
    %v6089 = vmin.f32 16.0, %v6088
    %v6090 = vmul.f32 %v6089, 2.1237322e-06
    %v6091 = vadd.f32 %v6090, 0.00028619796
    %v6092 = vmul.f32 %v6089, %v6091
    %v6093 = vadd.f32 %v6092, 0.0036580483
    %v6094 = vmul.f32 %v6089, %v6093
    %v6095 = vadd.f32 %v6094, 0.05243302
    %v6096 = vmul.f32 %v6089, %v6095
    %v6097 = vadd.f32 %v6096, 0.18741608
    %v6098 = vmul.f32 %v6089, %v6097
    %v6099 = vadd.f32 %v6098, 1.1283791
    %v6100 = vmul.f32 %v5920, %v6099
    %v6101 = vmul.f32 %v6089, 3.8918573e-05
    %v6102 = vadd.f32 %v6101, 0.001143296
    %v6103 = vmul.f32 %v6089, %v6102
    %v6104 = vadd.f32 %v6103, 0.014752088
    %v6105 = vmul.f32 %v6089, %v6104
    %v6106 = vadd.f32 %v6105, 0.112945676
    %v6107 = vmul.f32 %v6089, %v6106
    %v6108 = vadd.f32 %v6107, 0.4994258
    %v6109 = vmul.f32 %v6089, %v6108
    %v6110 = vadd.f32 %v6109, 1.0
    %v6111 = vrcp.pop %v6110
    %v6112 = vmul.f32 %v6110, %v6111
    %v6113 = vsub.f32 1.0, %v6112
    %v6114 = vmul.f32 %v6111, %v6113
    %v6115 = vadd.f32 %v6111, %v6114
    %vm6116 = vweird.f32 %v6110
    %vm6117 = vweird.f32 %v6111
    %vm6118 = vmor %vm6116, %vm6117
    %v6119 = vsel %vm6118, %v6111, %v6115
    %v6120 = vand.u32 2147483647, %v6110
    %vm6121 = vcmp.eq.f32.partialorder %v6120, 8.507059e+37
    %v6122 = vand.u32 %v6110, 2147483648
    %v6123 = vor.u32 1.1754944e-38, %v6122
    %v6124 = vsel %vm6121, %v6123, %v6119
    %v6125 = vmul.f32 %v6100, %v6124
    %v6126 = vmin.f32 %v6125, 1.0
    %v6127 = vmax.f32 %v6126, -1.0
    %v6128 = vmul.f32 %v5921, %v5921
    %v6129 = vmin.f32 16.0, %v6128
    %v6130 = vmul.f32 %v6129, 2.1237322e-06
    %v6131 = vadd.f32 %v6130, 0.00028619796
    %v6132 = vmul.f32 %v6129, %v6131
    %v6133 = vadd.f32 %v6132, 0.0036580483
    %v6134 = vmul.f32 %v6129, %v6133
    %v6135 = vadd.f32 %v6134, 0.05243302
    %v6136 = vmul.f32 %v6129, %v6135
    %v6137 = vadd.f32 %v6136, 0.18741608
    %v6138 = vmul.f32 %v6129, %v6137
    %v6139 = vadd.f32 %v6138, 1.1283791
    %v6140 = vmul.f32 %v5921, %v6139
    %v6141 = vmul.f32 %v6129, 3.8918573e-05
    %v6142 = vadd.f32 %v6141, 0.001143296
    %v6143 = vmul.f32 %v6129, %v6142
    %v6144 = vadd.f32 %v6143, 0.014752088
    %v6145 = vmul.f32 %v6129, %v6144
    %v6146 = vadd.f32 %v6145, 0.112945676
    %v6147 = vmul.f32 %v6129, %v6146
    %v6148 = vadd.f32 %v6147, 0.4994258
    %v6149 = vmul.f32 %v6129, %v6148
    %v6150 = vadd.f32 %v6149, 1.0
    %v6151 = vrcp.pop %v6150
    %v6152 = vmul.f32 %v6150, %v6151
    %v6153 = vsub.f32 1.0, %v6152
    %v6154 = vmul.f32 %v6151, %v6153
    %v6155 = vadd.f32 %v6151, %v6154
    %vm6156 = vweird.f32 %v6150
    %vm6157 = vweird.f32 %v6151
    %vm6158 = vmor %vm6156, %vm6157
    %v6159 = vsel %vm6158, %v6151, %v6155
    %v6160 = vand.u32 2147483647, %v6150
    %vm6161 = vcmp.eq.f32.partialorder %v6160, 8.507059e+37
    %v6162 = vand.u32 %v6150, 2147483648
    %v6163 = vor.u32 1.1754944e-38, %v6162
    %v6164 = vsel %vm6161, %v6163, %v6159
    %v6165 = vmul.f32 %v6140, %v6164
    %v6166 = vmin.f32 %v6165, 1.0
    %v6167 = vmax.f32 %v6166, -1.0
    %v6168 = vmul.f32 %v5922, %v5922
    %v6169 = vmin.f32 16.0, %v6168
    %v6170 = vmul.f32 %v6169, 2.1237322e-06
    %v6171 = vadd.f32 %v6170, 0.00028619796
    %v6172 = vmul.f32 %v6169, %v6171
    %v6173 = vadd.f32 %v6172, 0.0036580483
    %v6174 = vmul.f32 %v6169, %v6173
    %v6175 = vadd.f32 %v6174, 0.05243302
    %v6176 = vmul.f32 %v6169, %v6175
    %v6177 = vadd.f32 %v6176, 0.18741608
    %v6178 = vmul.f32 %v6169, %v6177
    %v6179 = vadd.f32 %v6178, 1.1283791
    %v6180 = vmul.f32 %v5922, %v6179
    %v6181 = vmul.f32 %v6169, 3.8918573e-05
    %v6182 = vadd.f32 %v6181, 0.001143296
    %v6183 = vmul.f32 %v6169, %v6182
    %v6184 = vadd.f32 %v6183, 0.014752088
    %v6185 = vmul.f32 %v6169, %v6184
    %v6186 = vadd.f32 %v6185, 0.112945676
    %v6187 = vmul.f32 %v6169, %v6186
    %v6188 = vadd.f32 %v6187, 0.4994258
    %v6189 = vmul.f32 %v6169, %v6188
    %v6190 = vadd.f32 %v6189, 1.0
    %v6191 = vrcp.pop %v6190
    %v6192 = vmul.f32 %v6190, %v6191
    %v6193 = vsub.f32 1.0, %v6192
    %v6194 = vmul.f32 %v6191, %v6193
    %v6195 = vadd.f32 %v6191, %v6194
    %vm6196 = vweird.f32 %v6190
    %vm6197 = vweird.f32 %v6191
    %vm6198 = vmor %vm6196, %vm6197
    %v6199 = vsel %vm6198, %v6191, %v6195
    %v6200 = vand.u32 2147483647, %v6190
    %vm6201 = vcmp.eq.f32.partialorder %v6200, 8.507059e+37
    %v6202 = vand.u32 %v6190, 2147483648
    %v6203 = vor.u32 1.1754944e-38, %v6202
    %v6204 = vsel %vm6201, %v6203, %v6199
    %v6205 = vmul.f32 %v6180, %v6204
    %v6206 = vmin.f32 %v6205, 1.0
    %v6207 = vmax.f32 %v6206, -1.0
    %v6208 = vmul.f32 %v5923, %v5923
    %v6209 = vmin.f32 16.0, %v6208
    %v6210 = vmul.f32 %v6209, 2.1237322e-06
    %v6211 = vadd.f32 %v6210, 0.00028619796
    %v6212 = vmul.f32 %v6209, %v6211
    %v6213 = vadd.f32 %v6212, 0.0036580483
    %v6214 = vmul.f32 %v6209, %v6213
    %v6215 = vadd.f32 %v6214, 0.05243302
    %v6216 = vmul.f32 %v6209, %v6215
    %v6217 = vadd.f32 %v6216, 0.18741608
    %v6218 = vmul.f32 %v6209, %v6217
    %v6219 = vadd.f32 %v6218, 1.1283791
    %v6220 = vmul.f32 %v5923, %v6219
    %v6221 = vmul.f32 %v6209, 3.8918573e-05
    %v6222 = vadd.f32 %v6221, 0.001143296
    %v6223 = vmul.f32 %v6209, %v6222
    %v6224 = vadd.f32 %v6223, 0.014752088
    %v6225 = vmul.f32 %v6209, %v6224
    %v6226 = vadd.f32 %v6225, 0.112945676
    %v6227 = vmul.f32 %v6209, %v6226
    %v6228 = vadd.f32 %v6227, 0.4994258
    %v6229 = vmul.f32 %v6209, %v6228
    %v6230 = vadd.f32 %v6229, 1.0
    %v6231 = vrcp.pop %v6230
    %v6232 = vmul.f32 %v6230, %v6231
    %v6233 = vsub.f32 1.0, %v6232
    %v6234 = vmul.f32 %v6231, %v6233
    %v6235 = vadd.f32 %v6231, %v6234
    %vm6236 = vweird.f32 %v6230
    %vm6237 = vweird.f32 %v6231
    %vm6238 = vmor %vm6236, %vm6237
    %v6239 = vsel %vm6238, %v6231, %v6235
    %v6240 = vand.u32 2147483647, %v6230
    %vm6241 = vcmp.eq.f32.partialorder %v6240, 8.507059e+37
    %v6242 = vand.u32 %v6230, 2147483648
    %v6243 = vor.u32 1.1754944e-38, %v6242
    %v6244 = vsel %vm6241, %v6243, %v6239
    %v6245 = vmul.f32 %v6220, %v6244
    %v6246 = vmin.f32 %v6245, 1.0
    %v6247 = vmax.f32 %v6246, -1.0
    %v6248 = vmul.f32 %v5924, %v5924
    %v6249 = vmin.f32 16.0, %v6248
    %v6250 = vmul.f32 %v6249, 2.1237322e-06
    %v6251 = vadd.f32 %v6250, 0.00028619796
    %v6252 = vmul.f32 %v6249, %v6251
    %v6253 = vadd.f32 %v6252, 0.0036580483
    %v6254 = vmul.f32 %v6249, %v6253
    %v6255 = vadd.f32 %v6254, 0.05243302
    %v6256 = vmul.f32 %v6249, %v6255
    %v6257 = vadd.f32 %v6256, 0.18741608
    %v6258 = vmul.f32 %v6249, %v6257
    %v6259 = vadd.f32 %v6258, 1.1283791
    %v6260 = vmul.f32 %v5924, %v6259
    %v6261 = vmul.f32 %v6249, 3.8918573e-05
    %v6262 = vadd.f32 %v6261, 0.001143296
    %v6263 = vmul.f32 %v6249, %v6262
    %v6264 = vadd.f32 %v6263, 0.014752088
    %v6265 = vmul.f32 %v6249, %v6264
    %v6266 = vadd.f32 %v6265, 0.112945676
    %v6267 = vmul.f32 %v6249, %v6266
    %v6268 = vadd.f32 %v6267, 0.4994258
    %v6269 = vmul.f32 %v6249, %v6268
    %v6270 = vadd.f32 %v6269, 1.0
    %v6271 = vrcp.pop %v6270
    %v6272 = vmul.f32 %v6270, %v6271
    %v6273 = vsub.f32 1.0, %v6272
    %v6274 = vmul.f32 %v6271, %v6273
    %v6275 = vadd.f32 %v6271, %v6274
    %vm6276 = vweird.f32 %v6270
    %vm6277 = vweird.f32 %v6271
    %vm6278 = vmor %vm6276, %vm6277
    %v6279 = vsel %vm6278, %v6271, %v6275
    %v6280 = vand.u32 2147483647, %v6270
    %vm6281 = vcmp.eq.f32.partialorder %v6280, 8.507059e+37
    %v6282 = vand.u32 %v6270, 2147483648
    %v6283 = vor.u32 1.1754944e-38, %v6282
    %v6284 = vsel %vm6281, %v6283, %v6279
    %v6285 = vmul.f32 %v6260, %v6284
    %v6286 = vmin.f32 %v6285, 1.0
    %v6287 = vmax.f32 %v6286, -1.0
    %v6288 = vmul.f32 %v5925, %v5925
    %v6289 = vmin.f32 16.0, %v6288
    %v6290 = vmul.f32 %v6289, 2.1237322e-06
    %v6291 = vadd.f32 %v6290, 0.00028619796
    %v6292 = vmul.f32 %v6289, %v6291
    %v6293 = vadd.f32 %v6292, 0.0036580483
    %v6294 = vmul.f32 %v6289, %v6293
    %v6295 = vadd.f32 %v6294, 0.05243302
    %v6296 = vmul.f32 %v6289, %v6295
    %v6297 = vadd.f32 %v6296, 0.18741608
    %v6298 = vmul.f32 %v6289, %v6297
    %v6299 = vadd.f32 %v6298, 1.1283791
    %v6300 = vmul.f32 %v5925, %v6299
    %v6301 = vmul.f32 %v6289, 3.8918573e-05
    %v6302 = vadd.f32 %v6301, 0.001143296
    %v6303 = vmul.f32 %v6289, %v6302
    %v6304 = vadd.f32 %v6303, 0.014752088
    %v6305 = vmul.f32 %v6289, %v6304
    %v6306 = vadd.f32 %v6305, 0.112945676
    %v6307 = vmul.f32 %v6289, %v6306
    %v6308 = vadd.f32 %v6307, 0.4994258
    %v6309 = vmul.f32 %v6289, %v6308
    %v6310 = vadd.f32 %v6309, 1.0
    %v6311 = vrcp.pop %v6310
    %v6312 = vmul.f32 %v6310, %v6311
    %v6313 = vsub.f32 1.0, %v6312
    %v6314 = vmul.f32 %v6311, %v6313
    %v6315 = vadd.f32 %v6311, %v6314
    %vm6316 = vweird.f32 %v6310
    %vm6317 = vweird.f32 %v6311
    %vm6318 = vmor %vm6316, %vm6317
    %v6319 = vsel %vm6318, %v6311, %v6315
    %v6320 = vand.u32 2147483647, %v6310
    %vm6321 = vcmp.eq.f32.partialorder %v6320, 8.507059e+37
    %v6322 = vand.u32 %v6310, 2147483648
    %v6323 = vor.u32 1.1754944e-38, %v6322
    %v6324 = vsel %vm6321, %v6323, %v6319
    %v6325 = vmul.f32 %v6300, %v6324
    %v6326 = vmin.f32 %v6325, 1.0
    %v6327 = vmax.f32 %v6326, -1.0
    %v6328 = vmul.f32 %v5926, %v5926
    %v6329 = vmin.f32 16.0, %v6328
    %v6330 = vmul.f32 %v6329, 2.1237322e-06
    %v6331 = vadd.f32 %v6330, 0.00028619796
    %v6332 = vmul.f32 %v6329, %v6331
    %v6333 = vadd.f32 %v6332, 0.0036580483
    %v6334 = vmul.f32 %v6329, %v6333
    %v6335 = vadd.f32 %v6334, 0.05243302
    %v6336 = vmul.f32 %v6329, %v6335
    %v6337 = vadd.f32 %v6336, 0.18741608
    %v6338 = vmul.f32 %v6329, %v6337
    %v6339 = vadd.f32 %v6338, 1.1283791
    %v6340 = vmul.f32 %v5926, %v6339
    %v6341 = vmul.f32 %v6329, 3.8918573e-05
    %v6342 = vadd.f32 %v6341, 0.001143296
    %v6343 = vmul.f32 %v6329, %v6342
    %v6344 = vadd.f32 %v6343, 0.014752088
    %v6345 = vmul.f32 %v6329, %v6344
    %v6346 = vadd.f32 %v6345, 0.112945676
    %v6347 = vmul.f32 %v6329, %v6346
    %v6348 = vadd.f32 %v6347, 0.4994258
    %v6349 = vmul.f32 %v6329, %v6348
    %v6350 = vadd.f32 %v6349, 1.0
    %v6351 = vrcp.pop %v6350
    %v6352 = vmul.f32 %v6350, %v6351
    %v6353 = vsub.f32 1.0, %v6352
    %v6354 = vmul.f32 %v6351, %v6353
    %v6355 = vadd.f32 %v6351, %v6354
    %vm6356 = vweird.f32 %v6350
    %vm6357 = vweird.f32 %v6351
    %vm6358 = vmor %vm6356, %vm6357
    %v6359 = vsel %vm6358, %v6351, %v6355
    %v6360 = vand.u32 2147483647, %v6350
    %vm6361 = vcmp.eq.f32.partialorder %v6360, 8.507059e+37
    %v6362 = vand.u32 %v6350, 2147483648
    %v6363 = vor.u32 1.1754944e-38, %v6362
    %v6364 = vsel %vm6361, %v6363, %v6359
    %v6365 = vmul.f32 %v6340, %v6364
    %v6366 = vmin.f32 %v6365, 1.0
    %v6367 = vmax.f32 %v6366, -1.0
    %v6368 = vmul.f32 %v5927, %v5927
    %v6369 = vmin.f32 16.0, %v6368
    %v6370 = vmul.f32 %v6369, 2.1237322e-06
    %v6371 = vadd.f32 %v6370, 0.00028619796
    %v6372 = vmul.f32 %v6369, %v6371
    %v6373 = vadd.f32 %v6372, 0.0036580483
    %v6374 = vmul.f32 %v6369, %v6373
    %v6375 = vadd.f32 %v6374, 0.05243302
    %v6376 = vmul.f32 %v6369, %v6375
    %v6377 = vadd.f32 %v6376, 0.18741608
    %v6378 = vmul.f32 %v6369, %v6377
    %v6379 = vadd.f32 %v6378, 1.1283791
    %v6380 = vmul.f32 %v5927, %v6379
    %v6381 = vmul.f32 %v6369, 3.8918573e-05
    %v6382 = vadd.f32 %v6381, 0.001143296
    %v6383 = vmul.f32 %v6369, %v6382
    %v6384 = vadd.f32 %v6383, 0.014752088
    %v6385 = vmul.f32 %v6369, %v6384
    %v6386 = vadd.f32 %v6385, 0.112945676
    %v6387 = vmul.f32 %v6369, %v6386
    %v6388 = vadd.f32 %v6387, 0.4994258
    %v6389 = vmul.f32 %v6369, %v6388
    %v6390 = vadd.f32 %v6389, 1.0
    %v6391 = vrcp.pop %v6390
    %v6392 = vmul.f32 %v6390, %v6391
    %v6393 = vsub.f32 1.0, %v6392
    %v6394 = vmul.f32 %v6391, %v6393
    %v6395 = vadd.f32 %v6391, %v6394
    %vm6396 = vweird.f32 %v6390
    %vm6397 = vweird.f32 %v6391
    %vm6398 = vmor %vm6396, %vm6397
    %v6399 = vsel %vm6398, %v6391, %v6395
    %v6400 = vand.u32 2147483647, %v6390
    %vm6401 = vcmp.eq.f32.partialorder %v6400, 8.507059e+37
    %v6402 = vand.u32 %v6390, 2147483648
    %v6403 = vor.u32 1.1754944e-38, %v6402
    %v6404 = vsel %vm6401, %v6403, %v6399
    %v6405 = vmul.f32 %v6380, %v6404
    %v6406 = vmin.f32 %v6405, 1.0
    %v6407 = vmax.f32 %v6406, -1.0
    %v6408 = vadd.f32 %v5967, 1.0
    %v6409 = vadd.f32 %v6007, 1.0
    %v6410 = vadd.f32 %v6047, 1.0
    %v6411 = vadd.f32 %v6087, 1.0
    %v6412 = vadd.f32 %v6127, 1.0
    %v6413 = vadd.f32 %v6167, 1.0
    %v6414 = vadd.f32 %v6207, 1.0
    %v6415 = vadd.f32 %v6247, 1.0
    %v6416 = vadd.f32 %v6287, 1.0
    %v6417 = vadd.f32 %v6327, 1.0
    %v6418 = vadd.f32 %v6367, 1.0
    %v6419 = vadd.f32 %v6407, 1.0
    %v6420 = vmul.f32 %v5904, %v6408
    %v6421 = vmul.f32 %v5905, %v6409
    %v6422 = vmul.f32 %v5906, %v6410
    %v6423 = vmul.f32 %v5907, %v6411
    %v6424 = vmul.f32 %v5908, %v6412
    %v6425 = vmul.f32 %v5909, %v6413
    %v6426 = vmul.f32 %v5910, %v6414
    %v6427 = vmul.f32 %v5911, %v6415
    %v6428 = vmul.f32 %v5912, %v6416
    %v6429 = vmul.f32 %v5913, %v6417
    %v6430 = vmul.f32 %v5914, %v6418
    %v6431 = vmul.f32 %v5915, %v6419
    %v6432 = vpack.c.bf16 %v6426, %v6420
    %v6433 = vpack.c.bf16 %v6427, %v6421
    %v6434 = vpack.c.bf16 %v6428, %v6422
    %v6435 = vpack.c.bf16 %v6429, %v6423
    %v6436 = vpack.c.bf16 %v6430, %v6424
    %v6437 = vpack.c.bf16 %v6431, %v6425
    %v6438 = vld [vmem:[%s7] sm:$0xf]
    %v6439 = vld [vmem:[%s7 + $0x4] sm:$0xf]
    %v6440 = vld [vmem:[%s7 + $0x8] sm:$0xf]
    %v6441 = vld [vmem:[%s7 + $0xc] sm:$0xf]
    %v6442 = vld [vmem:[%s7 + $0x10] sm:$0xf]
    %v6443 = vld [vmem:[%s7 + $0x14] sm:$0xf]
    %v6444 = vld [vmem:[%s7 + $0x18] sm:$0xf]
    %v6445 = vld [vmem:[%s7 + $0x1c] sm:$0xf]
    %v6446 = vld [vmem:[%s7 + $0x20] sm:$0xf]
    %v6447 = vld [vmem:[%s7 + $0x24] sm:$0xf]
    %v6448 = vld [vmem:[%s7 + $0x28] sm:$0xf]
    %v6449 = vld [vmem:[%s7 + $0x2c] sm:$0xf]
    %v6450 = vld [vmem:[%s7 + $0x30] sm:$0xf]
    %v6451 = vld [vmem:[%s7 + $0x34] sm:$0xf]
    %v6452 = vld [vmem:[%s7 + $0x38] sm:$0xf]
    %v6453 = vld [vmem:[%s7 + $0x3c] sm:$0xf]
    %v6454 = vld [vmem:[%s7 + $0x40] sm:$0xf]
    %v6455 = vld [vmem:[%s7 + $0x44] sm:$0xf]
    %v6456 = vld [vmem:[%s7 + $0x48] sm:$0xf]
    %v6457 = vld [vmem:[%s7 + $0x4c] sm:$0xf]
    %v6458 = vld [vmem:[%s7 + $0x50] sm:$0xf]
    %v6459 = vld [vmem:[%s7 + $0x54] sm:$0xf]
    %v6460 = vld [vmem:[%s7 + $0x58] sm:$0xf]
    %v6461 = vld [vmem:[%s7 + $0x5c] sm:$0xf]
    %v6462 = vld [vmem:[%s7 + $0x60] sm:$0xf]
    %v6463 = vld [vmem:[%s7 + $0x64] sm:$0xf]
    %v6464 = vld [vmem:[%s7 + $0x68] sm:$0xf]
    %v6465 = vld [vmem:[%s7 + $0x6c] sm:$0xf]
    %v6466 = vld [vmem:[%s7 + $0x70] sm:$0xf]
    %v6467 = vld [vmem:[%s7 + $0x74] sm:$0xf]
    %v6468 = vld [vmem:[%s7 + $0x78] sm:$0xf]
    %v6469 = vld [vmem:[%s7 + $0x7c] sm:$0xf]
    %v6470 = vld [vmem:[%s7 + $0x80] sm:$0xf]
    %v6471 = vld [vmem:[%s7 + $0x84] sm:$0xf]
    %v6472 = vld [vmem:[%s7 + $0x88] sm:$0xf]
    %v6473 = vld [vmem:[%s7 + $0x8c] sm:$0xf]
    %v6474 = vld [vmem:[%s7 + $0x90] sm:$0xf]
    %v6475 = vld [vmem:[%s7 + $0x94] sm:$0xf]
    %v6476 = vld [vmem:[%s7 + $0x98] sm:$0xf]
    %v6477 = vld [vmem:[%s7 + $0x9c] sm:$0xf]
    %v6478 = vld [vmem:[%s7 + $0xa0] sm:$0xf]
    %v6479 = vld [vmem:[%s7 + $0xa4] sm:$0xf]
    %v6480 = vld [vmem:[%s7 + $0xa8] sm:$0xf]
    %v6481 = vld [vmem:[%s7 + $0xac] sm:$0xf]
    %v6482 = vld [vmem:[%s7 + $0xb0] sm:$0xf]
    %v6483 = vld [vmem:[%s7 + $0xb4] sm:$0xf]
    %v6484 = vld [vmem:[%s7 + $0xb8] sm:$0xf]
    %v6485 = vld [vmem:[%s7 + $0xbc] sm:$0xf]
    %v6486 = vld [vmem:[%s7 + $0xc0] sm:$0xf]
    %v6487 = vld [vmem:[%s7 + $0xc4] sm:$0xf]
    %v6488 = vld [vmem:[%s7 + $0xc8] sm:$0xf]
    %v6489 = vld [vmem:[%s7 + $0xcc] sm:$0xf]
    %v6490 = vld [vmem:[%s7 + $0xd0] sm:$0xf]
    %v6491 = vld [vmem:[%s7 + $0xd4] sm:$0xf]
    %v6492 = vld [vmem:[%s7 + $0xd8] sm:$0xf]
    %v6493 = vld [vmem:[%s7 + $0xdc] sm:$0xf]
    %v6494 = vld [vmem:[%s7 + $0xe0] sm:$0xf]
    %v6495 = vld [vmem:[%s7 + $0xe4] sm:$0xf]
    %v6496 = vld [vmem:[%s7 + $0xe8] sm:$0xf]
    %v6497 = vld [vmem:[%s7 + $0xec] sm:$0xf]
    %v6498 = vld [vmem:[%s7 + $0xf0] sm:$0xf]
    %v6499 = vld [vmem:[%s7 + $0xf4] sm:$0xf]
    %v6500 = vld [vmem:[%s7 + $0xf8] sm:$0xf]
    %v6501 = vld [vmem:[%s7 + $0xfc] sm:$0xf]
    %v6502 = vld [vmem:[%s7 + $0x100] sm:$0xf]
    %v6503 = vld [vmem:[%s7 + $0x104] sm:$0xf]
    %v6504 = vld [vmem:[%s7 + $0x108] sm:$0xf]
    %v6505 = vld [vmem:[%s7 + $0x10c] sm:$0xf]
    %v6506 = vld [vmem:[%s7 + $0x110] sm:$0xf]
    %v6507 = vld [vmem:[%s7 + $0x114] sm:$0xf]
    %v6508 = vld [vmem:[%s7 + $0x118] sm:$0xf]
    %v6509 = vld [vmem:[%s7 + $0x11c] sm:$0xf]
    %v6510 = vld [vmem:[%s7 + $0x120] sm:$0xf]
    %v6511 = vld [vmem:[%s7 + $0x124] sm:$0xf]
    %v6512 = vld [vmem:[%s7 + $0x128] sm:$0xf]
    %v6513 = vld [vmem:[%s7 + $0x12c] sm:$0xf]
    %v6514 = vld [vmem:[%s7 + $0x130] sm:$0xf]
    %v6515 = vld [vmem:[%s7 + $0x134] sm:$0xf]
    %v6516 = vld [vmem:[%s7 + $0x138] sm:$0xf]
    %v6517 = vld [vmem:[%s7 + $0x13c] sm:$0xf]
    %v6518 = vld [vmem:[%s7 + $0x140] sm:$0xf]
    %v6519 = vld [vmem:[%s7 + $0x144] sm:$0xf]
    %v6520 = vld [vmem:[%s7 + $0x148] sm:$0xf]
    %v6521 = vld [vmem:[%s7 + $0x14c] sm:$0xf]
    %v6522 = vld [vmem:[%s7 + $0x150] sm:$0xf]
    %v6523 = vld [vmem:[%s7 + $0x154] sm:$0xf]
    %v6524 = vld [vmem:[%s7 + $0x158] sm:$0xf]
    %v6525 = vld [vmem:[%s7 + $0x15c] sm:$0xf]
    %v6526 = vld [vmem:[%s7 + $0x160] sm:$0xf]
    %v6527 = vld [vmem:[%s7 + $0x164] sm:$0xf]
    %v6528 = vld [vmem:[%s7 + $0x168] sm:$0xf]
    %v6529 = vld [vmem:[%s7 + $0x16c] sm:$0xf]
    %v6530 = vld [vmem:[%s7 + $0x170] sm:$0xf]
    %v6531 = vld [vmem:[%s7 + $0x174] sm:$0xf]
    %v6532 = vld [vmem:[%s7 + $0x178] sm:$0xf]
    %v6533 = vld [vmem:[%s7 + $0x17c] sm:$0xf]
    %v6534 = vperm.slane %v99, 1
    %v6631 = vunpack.c.l.b16 %v6438
    %v6632 = vunpack.c.l.b16 %v6439
    %v6633 = vunpack.c.l.b16 %v6440
    %v6634 = vunpack.c.l.b16 %v6441
    %v6635 = vunpack.c.l.b16 %v6442
    %v6636 = vunpack.c.l.b16 %v6443
    %v6637 = vunpack.c.l.b16 %v6444
    %v6638 = vunpack.c.l.b16 %v6445
    %v6639 = vunpack.c.l.b16 %v6446
    %v6640 = vunpack.c.l.b16 %v6447
    %v6641 = vunpack.c.l.b16 %v6448
    %v6642 = vunpack.c.l.b16 %v6449
    %v6643 = vunpack.c.l.b16 %v6450
    %v6644 = vunpack.c.l.b16 %v6451
    %v6645 = vunpack.c.l.b16 %v6452
    %v6646 = vunpack.c.l.b16 %v6453
    %v6647 = vunpack.c.l.b16 %v6454
    %v6648 = vunpack.c.l.b16 %v6455
    %v6649 = vunpack.c.l.b16 %v6456
    %v6650 = vunpack.c.l.b16 %v6457
    %v6651 = vunpack.c.l.b16 %v6458
    %v6652 = vunpack.c.l.b16 %v6459
    %v6653 = vunpack.c.l.b16 %v6460
    %v6654 = vunpack.c.l.b16 %v6461
    %v6655 = vunpack.c.l.b16 %v6462
    %v6656 = vunpack.c.l.b16 %v6463
    %v6657 = vunpack.c.l.b16 %v6464
    %v6658 = vunpack.c.l.b16 %v6465
    %v6659 = vunpack.c.l.b16 %v6466
    %v6660 = vunpack.c.l.b16 %v6467
    %v6661 = vunpack.c.l.b16 %v6468
    %v6662 = vunpack.c.l.b16 %v6469
    %v6663 = vunpack.c.l.b16 %v6470
    %v6664 = vunpack.c.l.b16 %v6471
    %v6665 = vunpack.c.l.b16 %v6472
    %v6666 = vunpack.c.l.b16 %v6473
    %v6667 = vunpack.c.l.b16 %v6474
    %v6668 = vunpack.c.l.b16 %v6475
    %v6669 = vunpack.c.l.b16 %v6476
    %v6670 = vunpack.c.l.b16 %v6477
    %v6671 = vunpack.c.l.b16 %v6478
    %v6672 = vunpack.c.l.b16 %v6479
    %v6673 = vunpack.c.l.b16 %v6480
    %v6674 = vunpack.c.l.b16 %v6481
    %v6675 = vunpack.c.l.b16 %v6482
    %v6676 = vunpack.c.l.b16 %v6483
    %v6677 = vunpack.c.l.b16 %v6484
    %v6678 = vunpack.c.l.b16 %v6485
    %v6679 = vunpack.c.l.b16 %v6486
    %v6680 = vunpack.c.l.b16 %v6487
    %v6681 = vunpack.c.l.b16 %v6488
    %v6682 = vunpack.c.l.b16 %v6489
    %v6683 = vunpack.c.l.b16 %v6490
    %v6684 = vunpack.c.l.b16 %v6491
    %v6685 = vunpack.c.l.b16 %v6492
    %v6686 = vunpack.c.l.b16 %v6493
    %v6687 = vunpack.c.l.b16 %v6494
    %v6688 = vunpack.c.l.b16 %v6495
    %v6689 = vunpack.c.l.b16 %v6496
    %v6690 = vunpack.c.l.b16 %v6497
    %v6691 = vunpack.c.l.b16 %v6498
    %v6692 = vunpack.c.l.b16 %v6499
    %v6693 = vunpack.c.l.b16 %v6500
    %v6694 = vunpack.c.l.b16 %v6501
    %v6695 = vunpack.c.l.b16 %v6502
    %v6696 = vunpack.c.l.b16 %v6503
    %v6697 = vunpack.c.l.b16 %v6504
    %v6698 = vunpack.c.l.b16 %v6505
    %v6699 = vunpack.c.l.b16 %v6506
    %v6700 = vunpack.c.l.b16 %v6507
    %v6701 = vunpack.c.l.b16 %v6508
    %v6702 = vunpack.c.l.b16 %v6509
    %v6703 = vunpack.c.l.b16 %v6510
    %v6704 = vunpack.c.l.b16 %v6511
    %v6705 = vunpack.c.l.b16 %v6512
    %v6706 = vunpack.c.l.b16 %v6513
    %v6707 = vunpack.c.l.b16 %v6514
    %v6708 = vunpack.c.l.b16 %v6515
    %v6709 = vunpack.c.l.b16 %v6516
    %v6710 = vunpack.c.l.b16 %v6517
    %v6711 = vunpack.c.l.b16 %v6518
    %v6712 = vunpack.c.l.b16 %v6519
    %v6713 = vunpack.c.l.b16 %v6520
    %v6714 = vunpack.c.l.b16 %v6521
    %v6715 = vunpack.c.l.b16 %v6522
    %v6716 = vunpack.c.l.b16 %v6523
    %v6717 = vunpack.c.l.b16 %v6524
    %v6718 = vunpack.c.l.b16 %v6525
    %v6719 = vunpack.c.l.b16 %v6526
    %v6720 = vunpack.c.l.b16 %v6527
    %v6721 = vunpack.c.l.b16 %v6528
    %v6722 = vunpack.c.l.b16 %v6529
    %v6723 = vunpack.c.l.b16 %v6530
    %v6724 = vunpack.c.l.b16 %v6531
    %v6725 = vunpack.c.l.b16 %v6532
    %v6726 = vunpack.c.l.b16 %v6533
    %v6727 = vpack.c.b16 %v6632, %v6631
    %v6728 = vpack.c.b16 %v6634, %v6633
    %v6729 = vpack.c.b16 %v6636, %v6635
    %v6730 = vpack.c.b16 %v6638, %v6637
    %v6731 = vpack.c.b16 %v6640, %v6639
    %v6732 = vpack.c.b16 %v6642, %v6641
    %v6733 = vpack.c.b16 %v6644, %v6643
    %v6734 = vpack.c.b16 %v6646, %v6645
    %v6735 = vpack.c.b16 %v6648, %v6647
    %v6736 = vpack.c.b16 %v6650, %v6649
    %v6737 = vpack.c.b16 %v6652, %v6651
    %v6738 = vpack.c.b16 %v6654, %v6653
    %v6739 = vpack.c.b16 %v6656, %v6655
    %v6740 = vpack.c.b16 %v6658, %v6657
    %v6741 = vpack.c.b16 %v6660, %v6659
    %v6742 = vpack.c.b16 %v6662, %v6661
    %v6743 = vpack.c.b16 %v6664, %v6663
    %v6744 = vpack.c.b16 %v6666, %v6665
    %v6745 = vpack.c.b16 %v6668, %v6667
    %v6746 = vpack.c.b16 %v6670, %v6669
    %v6747 = vpack.c.b16 %v6672, %v6671
    %v6748 = vpack.c.b16 %v6674, %v6673
    %v6749 = vpack.c.b16 %v6676, %v6675
    %v6750 = vpack.c.b16 %v6678, %v6677
    %v6751 = vpack.c.b16 %v6680, %v6679
    %v6752 = vpack.c.b16 %v6682, %v6681
    %v6753 = vpack.c.b16 %v6684, %v6683
    %v6754 = vpack.c.b16 %v6686, %v6685
    %v6755 = vpack.c.b16 %v6688, %v6687
    %v6756 = vpack.c.b16 %v6690, %v6689
    %v6757 = vpack.c.b16 %v6692, %v6691
    %v6758 = vpack.c.b16 %v6694, %v6693
    %v6759 = vpack.c.b16 %v6696, %v6695
    %v6760 = vpack.c.b16 %v6698, %v6697
    %v6761 = vpack.c.b16 %v6700, %v6699
    %v6762 = vpack.c.b16 %v6702, %v6701
    %v6763 = vpack.c.b16 %v6704, %v6703
    %v6764 = vpack.c.b16 %v6706, %v6705
    %v6765 = vpack.c.b16 %v6708, %v6707
    %v6766 = vpack.c.b16 %v6710, %v6709
    %v6767 = vpack.c.b16 %v6712, %v6711
    %v6768 = vpack.c.b16 %v6714, %v6713
    %v6769 = vpack.c.b16 %v6716, %v6715
    %v6770 = vpack.c.b16 %v6718, %v6717
    %v6771 = vpack.c.b16 %v6720, %v6719
    %v6772 = vpack.c.b16 %v6722, %v6721
    %v6773 = vpack.c.b16 %v6724, %v6723
    %v6774 = vpack.c.b16 %v6726, %v6725
    %6823 = vmatpush.bf16.msra.mxu0 %v6734
    %6824 = vmatpush.bf16.msra.mxu0 %v6733
    %6825 = vmatpush.bf16.msra.mxu0 %v6732
    %6826 = vmatpush.bf16.msra.mxu0 %v6731
    %6827 = vmatpush.bf16.msra.mxu0 %v6730
    %6828 = vmatpush.bf16.msra.mxu0 %v6729
    %6829 = vmatpush.bf16.msra.mxu0 %v6728
    %6830 = vmatpush.bf16.msra.mxu0 %v6727
    %6831 = vmatmul.bf16.gmra.mxu0 %v6432
    %v6832 = vpop.f32.mrf.mxu0
    %v6833 = vadd.f32 %v6534, %v6832
    %v6834 = vpop.f32.mrf.mxu0
    %v6835 = vadd.f32 %v6534, %v6834
    %6836 = vdwg.mxu0
    %6837 = vmatpush.bf16.msra.mxu0 %v6742
    %6838 = vmatpush.bf16.msra.mxu0 %v6741
    %6839 = vmatpush.bf16.msra.mxu0 %v6740
    %6840 = vmatpush.bf16.msra.mxu0 %v6739
    %6841 = vmatpush.bf16.msra.mxu0 %v6738
    %6842 = vmatpush.bf16.msra.mxu0 %v6737
    %6843 = vmatpush.bf16.msra.mxu0 %v6736
    %6844 = vmatpush.bf16.msra.mxu0 %v6735
    %6845 = vmatmul.bf16.gmra.mxu0 %v6433
    %v6846 = vpop.f32.mrf.mxu0
    %v6847 = vadd.f32 %v6833, %v6846
    %v6848 = vpop.f32.mrf.mxu0
    %v6849 = vadd.f32 %v6835, %v6848
    %6850 = vdwg.mxu0
    %6851 = vmatpush.bf16.msra.mxu0 %v6750
    %6852 = vmatpush.bf16.msra.mxu0 %v6749
    %6853 = vmatpush.bf16.msra.mxu0 %v6748
    %6854 = vmatpush.bf16.msra.mxu0 %v6747
    %6855 = vmatpush.bf16.msra.mxu0 %v6746
    %6856 = vmatpush.bf16.msra.mxu0 %v6745
    %6857 = vmatpush.bf16.msra.mxu0 %v6744
    %6858 = vmatpush.bf16.msra.mxu0 %v6743
    %6859 = vmatmul.bf16.gmra.mxu0 %v6434
    %v6860 = vpop.f32.mrf.mxu0
    %v6861 = vadd.f32 %v6847, %v6860
    %v6862 = vpop.f32.mrf.mxu0
    %v6863 = vadd.f32 %v6849, %v6862
    %6864 = vdwg.mxu0
    %6865 = vmatpush.bf16.msra.mxu0 %v6758
    %6866 = vmatpush.bf16.msra.mxu0 %v6757
    %6867 = vmatpush.bf16.msra.mxu0 %v6756
    %6868 = vmatpush.bf16.msra.mxu0 %v6755
    %6869 = vmatpush.bf16.msra.mxu0 %v6754
    %6870 = vmatpush.bf16.msra.mxu0 %v6753
    %6871 = vmatpush.bf16.msra.mxu0 %v6752
    %6872 = vmatpush.bf16.msra.mxu0 %v6751
    %6873 = vmatmul.bf16.gmra.mxu0 %v6435
    %v6874 = vpop.f32.mrf.mxu0
    %v6875 = vadd.f32 %v6861, %v6874
    %v6876 = vpop.f32.mrf.mxu0
    %v6877 = vadd.f32 %v6863, %v6876
    %6878 = vdwg.mxu0
    %6879 = vmatpush.bf16.msra.mxu0 %v6766
    %6880 = vmatpush.bf16.msra.mxu0 %v6765
    %6881 = vmatpush.bf16.msra.mxu0 %v6764
    %6882 = vmatpush.bf16.msra.mxu0 %v6763
    %6883 = vmatpush.bf16.msra.mxu0 %v6762
    %6884 = vmatpush.bf16.msra.mxu0 %v6761
    %6885 = vmatpush.bf16.msra.mxu0 %v6760
    %6886 = vmatpush.bf16.msra.mxu0 %v6759
    %6887 = vmatmul.bf16.gmra.mxu0 %v6436
    %v6888 = vpop.f32.mrf.mxu0
    %v6889 = vadd.f32 %v6875, %v6888
    %v6890 = vpop.f32.mrf.mxu0
    %v6891 = vadd.f32 %v6877, %v6890
    %6892 = vdwg.mxu0
    %6893 = vmatpush.bf16.msra.mxu0 %v6774
    %6894 = vmatpush.bf16.msra.mxu0 %v6773
    %6895 = vmatpush.bf16.msra.mxu0 %v6772
    %6896 = vmatpush.bf16.msra.mxu0 %v6771
    %6897 = vmatpush.bf16.msra.mxu0 %v6770
    %6898 = vmatpush.bf16.msra.mxu0 %v6769
    %6899 = vmatpush.bf16.msra.mxu0 %v6768
    %6900 = vmatpush.bf16.msra.mxu0 %v6767
    %6901 = vmatmul.bf16.gmra.mxu0 %v6437
    %v6902 = vpop.f32.mrf.mxu0
    %v6903 = vadd.f32 %v6889, %v6902
    %v6904 = vpop.f32.mrf.mxu0
    %v6905 = vadd.f32 %v6891, %v6904
    %6906 = vdwg.mxu0
    %v6907 = vld [vmem:[%s2] sm:$0xff]
    %v6908 = vld [vmem:[%s2 + $0x8] sm:$0xff]
    %v6909 = vsub.f32 0.0, %v6903
    %v6910 = vsub.f32 0.0, %v6905
    %6912 = vset.pattern.permute.xlu0 0
    %6913 = vperm.xlu0 %6912, %v6907
    %v6914 = vpop.permute.xlu0 %6913
    %6917 = vset.pattern.permute.xlu0 0
    %6918 = vperm.xlu0 %6917, %v6908
    %v6919 = vpop.permute.xlu0 %6918
    %v6921 = vmul.f32 %v6909, %v6914
    %v6922 = vmul.f32 %v6910, %v6919
    %v6923 = vmul.f32 %v6921, 1.442695
    %v6924 = vpow.pop %v6923
    %v6925 = vmul.f32 %v6922, 1.442695
    %v6926 = vpow.pop %v6925
    %v6927 = vsub.f32 1.0, %v6924
    %v6928 = vsub.f32 1.0, %v6926
    %v6929 = vmul.f32 %v3506, %v6927
    %v6930 = vmul.f32 %v3508, %v6928
    %vm6931 = vcmask 15360
    %6932 = vst.msk [vmem:[%s9] sm:$0xff] %vm6931, %v6929
    %6933 = vst.msk [vmem:[%s9 + $0x8] sm:$0xff] %vm6931, %v6930
    %6934 = vrot.lane.b32.xlu0 %v6907, 127
    %v6935 = vpop.permute.xlu0 %6934
    %6936 = vrot.lane.b32.xlu0 %v6908, 127
    %v6937 = vpop.permute.xlu0 %6936
    %v6940 = vsub.f32 %v6929, %v6935
    %v6941 = vsub.f32 %v6930, %v6937
    %v6942 = vand.u32 2147483647, %v6940
    %v6943 = vand.u32 2147483647, %v6941
    %vm6944 = vcmp.lt.f32.partialorder %v6942, 1.0
    %vm6945 = vcmp.lt.f32.partialorder %v6943, 1.0
    %v6946 = vmul.f32 %v6940, 0.5
    %v6947 = vmul.f32 %v6941, 0.5
    %v6948 = vmul.f32 %v6946, %v6940
    %v6949 = vmul.f32 %v6947, %v6941
    %v6950 = vsub.f32 %v6942, 0.5
    %v6951 = vsub.f32 %v6943, 0.5
    %v6952 = vsel %vm6944, %v6948, %v6950
    %v6953 = vsel %vm6945, %v6949, %v6951
    %6954 = vset.pattern.permute.xlu0 3
    %6955 = vperm.xlu0 %6954, %v6907
    %v6956 = vpop.permute.xlu0 %6955
    %6958 = vset.pattern.permute.xlu0 3
    %6959 = vperm.xlu0 %6958, %v6908
    %v6960 = vpop.permute.xlu0 %6959
    %v6962 = vmul.f32 %v6952, %v6956
    %v6963 = vmul.f32 %v6953, %v6960
    %v6964 = vsel %vm6931, %v6962, 0.0
    %v6965 = vsel %vm6931, %v6963, 0.0
    %v6966 = vadd.f32 %v6964, %v6965
    %v6967 = vrot.slane %v6966, 4
    %v6968 = vadd.f32 %v6966, %v6967
    %v6969 = vrot.slane %v6968, 2
    %v6970 = vadd.f32 %v6968, %v6969
    %v6971 = vrot.slane %v6970, 1
    %v6972 = vadd.f32 %v6970, %v6971
    %6973 = vst.msk [vmem:[%s10] sm:$0xff] %vm6931, %v6972
    // Predicated region
    $region54: #{lngrowth_forward.1} parent=1 // pred_check
      _
    $region55: #{lngrowth_forward.1} parent=1 // pred_check_branch
      %6975 = sbr.rel (0) target = $region57
    $region56: #{lngrowth_forward.1} parent=1 // pred_region
      _
    $region57: #{lngrowth_forward.1} parent=1 // pred_fallthru
      _
    // Predicated region
    $region58: #{lngrowth_forward.1} parent=1 // pred_check
      _
    $region59: #{lngrowth_forward.1} parent=1 // pred_check_branch
      %6977 = sbr.rel (0) target = $region61
    $region60: #{lngrowth_forward.1} parent=1 // pred_region
      _
    $region61: #{lngrowth_forward.1} parent=1 // pred_fallthru
      _
    // Predicated region
    $region62: #{lngrowth_forward.1} parent=1 // pred_check
      _
    $region63: #{lngrowth_forward.1} parent=1 // pred_check_branch
      %6979 = sbr.rel (0) target = $region65
    $region64: #{lngrowth_forward.1} parent=1 // pred_region
      _
    $region65: #{lngrowth_forward.1} parent=1 // pred_fallthru
      _
    // Predicated region
    $region66: #{lngrowth_forward.1} parent=1 // pred_check
      _
    $region67: #{lngrowth_forward.1} parent=1 // pred_check_branch
      %6981 = sbr.rel (0) target = $region69
    $region68: #{lngrowth_forward.1} parent=1 // pred_region
      _
    $region69: #{lngrowth_forward.1} parent=1 // pred_fallthru
      _
    %6982 = vsyncpa [#allocation3], 1
    %6983 = vsyncpa [#allocation5], 1
    %6984 = vsyncpa [#allocation8], 1

</llo_original>
